<compile_context>
chip_gen: v5e
topology: v5e:2x2
jax: 0.10.0
libtpu: 0.0.40
codegen_flags: <defaults>
</compile_context>

<pallas_src>
import numpy as np
import jax
import jax.numpy as jnp
from jax import lax
from jax.experimental import pallas as pl
from jax.experimental.pallas import tpu as pltpu

HID = 128        # hidden width (nn.Linear(7,128) ... Linear(128,3))
IN_PAD = 8       # 7 input features -> 8 (sublane-aligned K for the first matmul)
PI = float(np.pi)
TWO_PI = 2.0 * PI


def _wrap_angle(t):
    # wrap_angle(t) == ((t - pi) mod 2pi) - pi   -> [-pi, pi)
    return t - TWO_PI * jnp.floor((t + PI) / TWO_PI)


def dynamics_kernel(consts_ref,                  # (3, 8) f32: offsets / inv_scales / steps
                    packed_ref,                  # (TM, 8) f32: [x, y, th, th, a0, a1, a2, 0]
                    w1_ref, b1_ref, w2_ref, b2_ref,
                    w3_ref, b3_ref, w4_ref, b4_ref,
                    out_ref):                    # (TM, 3) block
    packed = packed_ref[...]                     # (TM, 8) f32
    offs = consts_ref[0:1, :]                    # (1, 8)
    invs = consts_ref[1:2, :]                    # (1, 8)
    steps3 = consts_ref[2:3, 0:3]                # (1, 3)

    # --- transform_particles + model_input, as lane-vector math ---
    inp = (packed - offs) * invs                 # lanes 0,1 -> norm pos; 4..6 -> norm actions
    lane = lax.broadcasted_iota(jnp.int32, inp.shape, 1)
    trig = jnp.where(lane == 2, jnp.cos(packed), jnp.sin(packed))
    inp = jnp.where((lane == 2) | (lane == 3), trig, inp)  # lanes 2,3 -> cos/sin(theta)

    # --- MLP: 7->128 ReLU -> 128->128 ReLU -> 128->128 ReLU -> 128->3 (padded) ---
    # bf16 matmuls on the MXU, f32 accumulation; biases/activations added in f32.
    h = jnp.dot(inp.astype(jnp.bfloat16), w1_ref[...],
                preferred_element_type=jnp.float32) + b1_ref[...]
    h = jnp.maximum(h, 0.0)
    h = jnp.dot(h.astype(jnp.bfloat16), w2_ref[...],
                preferred_element_type=jnp.float32) + b2_ref[...]
    h = jnp.maximum(h, 0.0)
    h = jnp.dot(h.astype(jnp.bfloat16), w3_ref[...],
                preferred_element_type=jnp.float32) + b3_ref[...]
    h = jnp.maximum(h, 0.0)
    h = jnp.dot(h.astype(jnp.bfloat16), w4_ref[...],
                preferred_element_type=jnp.float32) + b4_ref[...]   # (TM, 128), cols 0..2 used

    # --- epilogue: scale by step sizes, add particles, wrap angle lane, one store ---
    x3 = packed[:, 0:3]                          # original particles (f32, exact)
    moved = x3 + h[:, 0:3] * steps3
    wrapped = _wrap_angle(moved)
    lane3 = lax.broadcasted_iota(jnp.int32, moved.shape, 1)
    out_ref[...] = jnp.where(lane3 == 2, wrapped, moved)


def dynamics_forward(noisy_actions, particles, state_step_sizes, stds, means, params,
                     *, tm=512):
    """Pallas implementation of DynamicsModel.forward."""
    B, N, _ = particles.shape
    M = B * N
    # Cap the row tile so the grid keeps >= 2 steps (both v7x TensorCores busy)
    # while staying a multiple of 8 (sublane alignment).
    half = (M + 1) // 2
    tm = int(max(8, min(tm, -(-half // 8) * 8)))
    M_pad = -(-M // tm) * tm

    p = particles.reshape(M, 3).astype(jnp.float32)
    a = noisy_actions.reshape(M, 3).astype(jnp.float32)
    packed = jnp.zeros((M_pad, 8), jnp.float32)
    packed = packed.at[:M, 0:3].set(p)
    packed = packed.at[:M, 3].set(p[:, 2])       # duplicate theta into lane 3 (for sin)
    packed = packed.at[:M, 4:7].set(a)

    means_s = jnp.asarray(means['s'], jnp.float32)
    stds_s = jnp.asarray(stds['s'], jnp.float32)
    stds_a = jnp.asarray(stds['a'], jnp.float32)
    steps = jnp.asarray(state_step_sizes, jnp.float32)

    offsets = jnp.zeros((8,), jnp.float32).at[0:2].set(means_s[0:2])
    inv_scales = (jnp.zeros((8,), jnp.float32)
                  .at[0:2].set(1.0 / stds_s[0:2])
                  .at[2:4].set(1.0)
                  .at[4:7].set(1.0 / stds_a))
    steps_row = jnp.zeros((8,), jnp.float32).at[0:3].set(steps)
    consts = jnp.stack([offsets, inv_scales, steps_row], axis=0)   # (3, 8)

    # Weights padded to lane/sublane-friendly shapes (extra rows/cols zero), cast
    # to bf16 for the MXU. Biases stay f32 (added after the f32-accumulated dot).
    w1p = jnp.zeros((IN_PAD, HID), jnp.float32).at[:7].set(params['w1']).astype(jnp.bfloat16)
    w2b = params['w2'].astype(jnp.bfloat16)
    w3b = params['w3'].astype(jnp.bfloat16)
    w4p = jnp.zeros((HID, HID), jnp.float32).at[:, :3].set(params['w4']).astype(jnp.bfloat16)
    b1 = params['b1'][None, :].astype(jnp.float32)
    b2 = params['b2'][None, :].astype(jnp.float32)
    b3 = params['b3'][None, :].astype(jnp.float32)
    b4p = jnp.zeros((1, HID), jnp.float32).at[:, :3].set(params['b4'][None, :])

    grid = (M_pad // tm,)
    out = pl.pallas_call(
        dynamics_kernel,
        out_shape=jax.ShapeDtypeStruct((M_pad, 3), jnp.float32),
        grid_spec=pltpu.PrefetchScalarGridSpec(
            num_scalar_prefetch=0,
            grid=grid,
            in_specs=[
                pl.BlockSpec((3, 8), lambda i: (0, 0)),          # consts table
                pl.BlockSpec((tm, 8), lambda i: (i, 0)),         # packed particles+actions
                pl.BlockSpec((IN_PAD, HID), lambda i: (0, 0)),   # w1 (padded, bf16)
                pl.BlockSpec((1, HID), lambda i: (0, 0)),        # b1
                pl.BlockSpec((HID, HID), lambda i: (0, 0)),      # w2 (bf16)
                pl.BlockSpec((1, HID), lambda i: (0, 0)),        # b2
                pl.BlockSpec((HID, HID), lambda i: (0, 0)),      # w3 (bf16)
                pl.BlockSpec((1, HID), lambda i: (0, 0)),        # b3
                pl.BlockSpec((HID, HID), lambda i: (0, 0)),      # w4 (padded, bf16)
                pl.BlockSpec((1, HID), lambda i: (0, 0)),        # b4 (padded)
            ],
            out_specs=pl.BlockSpec((tm, 3), lambda i: (i, 0)),
        ),
        compiler_params=pltpu.CompilerParams(
            dimension_semantics=("parallel",)),
    )(consts, packed, w1p, b1, w2b, b2, w3b, b3, w4p, b4p)

    return out[:M].reshape(B, N, 3)


def dynamics_forward_ref(noisy_actions, particles, state_step_sizes, stds, means, params):
    """Pure-JAX f32 reference mirroring the PyTorch forward."""
    B, N, _ = particles.shape
    px = (particles[..., 0:1] - means['s'][0]) / stds['s'][0]
    py = (particles[..., 1:2] - means['s'][1]) / stds['s'][1]
    ct = jnp.cos(particles[..., 2:3])
    st = jnp.sin(particles[..., 2:3])
    act = noisy_actions / jnp.asarray(stds['a'], jnp.float32)
    inp = jnp.concatenate([px, py, ct, st, act], axis=-1).reshape(-1, 7)
    h = jnp.maximum(inp @ params['w1'] + params['b1'], 0.0)
    h = jnp.maximum(h @ params['w2'] + params['b2'], 0.0)
    h = jnp.maximum(h @ params['w3'] + params['b3'], 0.0)
    delta = (h @ params['w4'] + params['b4']).reshape(B, N, 3)
    delta = delta * jnp.asarray(state_step_sizes, jnp.float32)
    moved = particles + delta
    theta = _wrap_angle(moved[..., 2:3])
    return jnp.concatenate([moved[..., 0:2], theta], axis=-1)


def _init_params(key):
    """Deterministic synthetic init (shapes from the module's __init__).
    Weights are stored as (in, out), i.e. W.T relative to torch's nn.Linear."""
    dims = [(7, HID), (HID, HID), (HID, HID), (HID, 3)]
    params = {}
    for idx, (fin, fout) in enumerate(dims, start=1):
        key, kw, kb = jax.random.split(key, 3)
        bound = 1.0 / np.sqrt(fin)
        params[f'w{idx}'] = jax.random.uniform(kw, (fin, fout), jnp.float32, -bound, bound)
        params[f'b{idx}'] = jax.random.uniform(kb, (fout,), jnp.float32, -bound, bound)
    return params


if __name__ == "__main__":
    key = jax.random.PRNGKey(0)
    k1, k2, kparams = jax.random.split(key, 3)

    B, N = 2, 64   # batch_size, num_particles (small test shapes)
    particles = jax.random.normal(k1, (B, N, 3), jnp.float32)
    noisy_actions = jax.random.normal(k2, (B, N, 3), jnp.float32) * 0.5

    state_step_sizes = jnp.asarray([0.2, 0.3, 0.15], jnp.float32)
    stds = {'s': jnp.asarray([1.2, 0.8, 1.0], jnp.float32),
            'a': jnp.asarray([0.7, 0.9, 1.1], jnp.float32)}
    means = {'s': jnp.asarray([0.5, -0.3, 0.0], jnp.float32),
             'a': jnp.asarray([0.0, 0.0, 0.0], jnp.float32)}

    params = _init_params(kparams)

    out = dynamics_forward(noisy_actions, particles, state_step_sizes, stds, means, params)
    out = jax.block_until_ready(out)

    ref = dynamics_forward_ref(noisy_actions, particles, state_step_sizes, stds, means, params)
    # bf16 matmuls with f32 accumulation stay well inside this tolerance
    # (output is particles (exact f32) + step*delta with ~1e-4 worst-case error).
    np.testing.assert_allclose(np.asarray(out), np.asarray(ref), rtol=2e-3, atol=2e-3)

    print("KERNEL_OK")
</pallas_src>

<mosaic_0001>
module attributes {stable_mosaic.version = 11 : i64} {
  func.func @dynamics_kernel(%arg0: i32, %arg1: memref<3x8xf32, #tpu.memory_space<vmem>>, %arg2: memref<64x8xf32, #tpu.memory_space<vmem>>, %arg3: memref<8x128xbf16, #tpu.memory_space<vmem>>, %arg4: memref<1x128xf32, #tpu.memory_space<vmem>>, %arg5: memref<128x128xbf16, #tpu.memory_space<vmem>>, %arg6: memref<1x128xf32, #tpu.memory_space<vmem>>, %arg7: memref<128x128xbf16, #tpu.memory_space<vmem>>, %arg8: memref<1x128xf32, #tpu.memory_space<vmem>>, %arg9: memref<128x128xbf16, #tpu.memory_space<vmem>>, %arg10: memref<1x128xf32, #tpu.memory_space<vmem>>, %arg11: memref<64x3xf32, #tpu.memory_space<vmem>>) attributes {dimension_semantics = [#tpu.dimension_semantics<parallel>], iteration_bounds = array<i64: 2>, scalar_prefetch = 0 : i64, scratch_operands = 0 : i64, tpu.core_type = #tpu.core_type<tc>, window_params = [{pipeline_mode = #tpu.pipeline_mode<synchronous>, transform_indices = @transform_0, window_bounds = array<i64: 3, 8>}, {transform_indices = @transform_1, window_bounds = array<i64: 64, 8>}, {pipeline_mode = #tpu.pipeline_mode<synchronous>, transform_indices = @transform_2, window_bounds = array<i64: 8, 128>}, {pipeline_mode = #tpu.pipeline_mode<synchronous>, transform_indices = @transform_3, window_bounds = array<i64: 1, 128>}, {pipeline_mode = #tpu.pipeline_mode<synchronous>, transform_indices = @transform_4, window_bounds = array<i64: 128, 128>}, {pipeline_mode = #tpu.pipeline_mode<synchronous>, transform_indices = @transform_5, window_bounds = array<i64: 1, 128>}, {pipeline_mode = #tpu.pipeline_mode<synchronous>, transform_indices = @transform_6, window_bounds = array<i64: 128, 128>}, {pipeline_mode = #tpu.pipeline_mode<synchronous>, transform_indices = @transform_7, window_bounds = array<i64: 1, 128>}, {pipeline_mode = #tpu.pipeline_mode<synchronous>, transform_indices = @transform_8, window_bounds = array<i64: 128, 128>}, {pipeline_mode = #tpu.pipeline_mode<synchronous>, transform_indices = @transform_9, window_bounds = array<i64: 1, 128>}, {transform_indices = @transform_10, window_bounds = array<i64: 64, 3>}]} {
    %c0 = arith.constant 0 : index
    %c0_0 = arith.constant 0 : index
    %0 = vector.load %arg2[%c0, %c0_0] : memref<64x8xf32, #tpu.memory_space<vmem>>, vector<64x8xf32>
    %c0_1 = arith.constant 0 : index
    %c0_2 = arith.constant 0 : index
    %1 = vector.load %arg1[%c0_1, %c0_2] : memref<3x8xf32, #tpu.memory_space<vmem>>, vector<1x8xf32>
    %c1 = arith.constant 1 : index
    %c0_3 = arith.constant 0 : index
    %2 = vector.load %arg1[%c1, %c0_3] : memref<3x8xf32, #tpu.memory_space<vmem>>, vector<1x8xf32>
    %c2 = arith.constant 2 : index
    %c0_4 = arith.constant 0 : index
    %3 = vector.load %arg1[%c2, %c0_4] : memref<3x8xf32, #tpu.memory_space<vmem>>, vector<1x3xf32>
    %4 = vector.broadcast %1 : vector<1x8xf32> to vector<64x8xf32>
    %5 = arith.subf %0, %4 : vector<64x8xf32>
    %6 = vector.broadcast %2 : vector<1x8xf32> to vector<64x8xf32>
    %7 = arith.mulf %5, %6 : vector<64x8xf32>
    %8 = tpu.iota {dimensions = array<i32: 1>} : vector<64x8xi32>
    %c2_i32 = arith.constant 2 : i32
    %9 = vector.broadcast %c2_i32 : i32 to vector<64x8xi32>
    %10 = arith.cmpi eq, %8, %9 : vector<64x8xi32>
    %11 = math.cos %0 : vector<64x8xf32>
    %12 = math.sin %0 : vector<64x8xf32>
    %13 = arith.select %10, %11, %12 : vector<64x8xi1>, vector<64x8xf32>
    %c2_i32_5 = arith.constant 2 : i32
    %14 = vector.broadcast %c2_i32_5 : i32 to vector<64x8xi32>
    %15 = arith.cmpi eq, %8, %14 : vector<64x8xi32>
    %c3_i32 = arith.constant 3 : i32
    %16 = vector.broadcast %c3_i32 : i32 to vector<64x8xi32>
    %17 = arith.cmpi eq, %8, %16 : vector<64x8xi32>
    %18 = arith.ori %15, %17 : vector<64x8xi1>
    %19 = arith.select %18, %13, %7 : vector<64x8xi1>, vector<64x8xf32>
    %20 = arith.truncf %19 : vector<64x8xf32> to vector<64x8xbf16>
    %c0_6 = arith.constant 0 : index
    %c0_7 = arith.constant 0 : index
    %21 = vector.load %arg3[%c0_6, %c0_7] : memref<8x128xbf16, #tpu.memory_space<vmem>>, vector<8x128xbf16>
    %cst = arith.constant dense<0.000000e+00> : vector<64x128xf32>
    %22 = tpu.matmul %20, %21, %cst {dimension_numbers = #tpu.dot_dimension_numbers<[1], [0], [0], [1], [0, 0, 1, 1], [], []>} : vector<64x8xbf16>, vector<8x128xbf16>, vector<64x128xf32> -> vector<64x128xf32>
    %c0_8 = arith.constant 0 : index
    %c0_9 = arith.constant 0 : index
    %23 = vector.load %arg4[%c0_8, %c0_9] : memref<1x128xf32, #tpu.memory_space<vmem>>, vector<1x128xf32>
    %24 = vector.broadcast %23 : vector<1x128xf32> to vector<64x128xf32>
    %25 = arith.addf %22, %24 : vector<64x128xf32>
    %cst_10 = arith.constant 0.000000e+00 : f32
    %26 = vector.broadcast %cst_10 : f32 to vector<64x128xf32>
    %27 = arith.maximumf %25, %26 : vector<64x128xf32>
    %28 = arith.truncf %27 : vector<64x128xf32> to vector<64x128xbf16>
    %c0_11 = arith.constant 0 : index
    %c0_12 = arith.constant 0 : index
    %29 = vector.load %arg5[%c0_11, %c0_12] : memref<128x128xbf16, #tpu.memory_space<vmem>>, vector<128x128xbf16>
    %cst_13 = arith.constant dense<0.000000e+00> : vector<64x128xf32>
    %30 = tpu.matmul %28, %29, %cst_13 {dimension_numbers = #tpu.dot_dimension_numbers<[1], [0], [0], [1], [0, 0, 1, 1], [], []>} : vector<64x128xbf16>, vector<128x128xbf16>, vector<64x128xf32> -> vector<64x128xf32>
    %c0_14 = arith.constant 0 : index
    %c0_15 = arith.constant 0 : index
    %31 = vector.load %arg6[%c0_14, %c0_15] : memref<1x128xf32, #tpu.memory_space<vmem>>, vector<1x128xf32>
    %32 = vector.broadcast %31 : vector<1x128xf32> to vector<64x128xf32>
    %33 = arith.addf %30, %32 : vector<64x128xf32>
    %cst_16 = arith.constant 0.000000e+00 : f32
    %34 = vector.broadcast %cst_16 : f32 to vector<64x128xf32>
    %35 = arith.maximumf %33, %34 : vector<64x128xf32>
    %36 = arith.truncf %35 : vector<64x128xf32> to vector<64x128xbf16>
    %c0_17 = arith.constant 0 : index
    %c0_18 = arith.constant 0 : index
    %37 = vector.load %arg7[%c0_17, %c0_18] : memref<128x128xbf16, #tpu.memory_space<vmem>>, vector<128x128xbf16>
    %cst_19 = arith.constant dense<0.000000e+00> : vector<64x128xf32>
    %38 = tpu.matmul %36, %37, %cst_19 {dimension_numbers = #tpu.dot_dimension_numbers<[1], [0], [0], [1], [0, 0, 1, 1], [], []>} : vector<64x128xbf16>, vector<128x128xbf16>, vector<64x128xf32> -> vector<64x128xf32>
    %c0_20 = arith.constant 0 : index
    %c0_21 = arith.constant 0 : index
    %39 = vector.load %arg8[%c0_20, %c0_21] : memref<1x128xf32, #tpu.memory_space<vmem>>, vector<1x128xf32>
    %40 = vector.broadcast %39 : vector<1x128xf32> to vector<64x128xf32>
    %41 = arith.addf %38, %40 : vector<64x128xf32>
    %cst_22 = arith.constant 0.000000e+00 : f32
    %42 = vector.broadcast %cst_22 : f32 to vector<64x128xf32>
    %43 = arith.maximumf %41, %42 : vector<64x128xf32>
    %44 = arith.truncf %43 : vector<64x128xf32> to vector<64x128xbf16>
    %c0_23 = arith.constant 0 : index
    %c0_24 = arith.constant 0 : index
    %45 = vector.load %arg9[%c0_23, %c0_24] : memref<128x128xbf16, #tpu.memory_space<vmem>>, vector<128x128xbf16>
    %cst_25 = arith.constant dense<0.000000e+00> : vector<64x128xf32>
    %46 = tpu.matmul %44, %45, %cst_25 {dimension_numbers = #tpu.dot_dimension_numbers<[1], [0], [0], [1], [0, 0, 1, 1], [], []>} : vector<64x128xbf16>, vector<128x128xbf16>, vector<64x128xf32> -> vector<64x128xf32>
    %c0_26 = arith.constant 0 : index
    %c0_27 = arith.constant 0 : index
    %47 = vector.load %arg10[%c0_26, %c0_27] : memref<1x128xf32, #tpu.memory_space<vmem>>, vector<1x128xf32>
    %48 = vector.broadcast %47 : vector<1x128xf32> to vector<64x128xf32>
    %49 = arith.addf %46, %48 : vector<64x128xf32>
    %50 = vector.extract_strided_slice %0 {offsets = [0, 0], sizes = [64, 3], strides = [1, 1]} : vector<64x8xf32> to vector<64x3xf32>
    %51 = vector.extract_strided_slice %49 {offsets = [0, 0], sizes = [64, 3], strides = [1, 1]} : vector<64x128xf32> to vector<64x3xf32>
    %52 = vector.broadcast %3 : vector<1x3xf32> to vector<64x3xf32>
    %53 = arith.mulf %51, %52 : vector<64x3xf32>
    %54 = arith.addf %50, %53 : vector<64x3xf32>
    %cst_28 = arith.constant 3.14159274 : f32
    %55 = vector.broadcast %cst_28 : f32 to vector<64x3xf32>
    %56 = arith.addf %54, %55 : vector<64x3xf32>
    %cst_29 = arith.constant 6.28318548 : f32
    %57 = vector.broadcast %cst_29 : f32 to vector<64x3xf32>
    %58 = arith.divf %56, %57 : vector<64x3xf32>
    %59 = math.floor %58 : vector<64x3xf32>
    %cst_30 = arith.constant 6.28318548 : f32
    %60 = vector.broadcast %cst_30 : f32 to vector<64x3xf32>
    %61 = arith.mulf %60, %59 : vector<64x3xf32>
    %62 = arith.subf %54, %61 : vector<64x3xf32>
    %63 = tpu.iota {dimensions = array<i32: 1>} : vector<64x3xi32>
    %c2_i32_31 = arith.constant 2 : i32
    %64 = vector.broadcast %c2_i32_31 : i32 to vector<64x3xi32>
    %65 = arith.cmpi eq, %63, %64 : vector<64x3xi32>
    %66 = arith.select %65, %62, %54 : vector<64x3xi1>, vector<64x3xf32>
    %c0_32 = arith.constant 0 : index
    %c0_33 = arith.constant 0 : index
    %67 = vector.load %arg11[%c0_32, %c0_33] : memref<64x3xf32, #tpu.memory_space<vmem>>, vector<64x3xf32>
    tpu.vector_store %arg11[%c0_32, %c0_33], %66 {strides = array<i32>} : memref<64x3xf32, #tpu.memory_space<vmem>>, vector<64x3xf32>,
    return
  }
  func.func @transform_0(%arg0: i32) -> (i32, i32) {
    %c0_i32 = arith.constant 0 : i32
    %c0_i32_0 = arith.constant 0 : i32
    %c0_i32_1 = arith.constant 0 : i32
    return %c0_i32, %c0_i32_0 : i32, i32
  }
  func.func @transform_1(%arg0: i32) -> (i32, i32) {
    %c0_i32 = arith.constant 0 : i32
    %c0_i32_0 = arith.constant 0 : i32
    return %arg0, %c0_i32 : i32, i32
  }
  func.func @transform_2(%arg0: i32) -> (i32, i32) {
    %c0_i32 = arith.constant 0 : i32
    %c0_i32_0 = arith.constant 0 : i32
    %c0_i32_1 = arith.constant 0 : i32
    return %c0_i32, %c0_i32_0 : i32, i32
  }
  func.func @transform_3(%arg0: i32) -> (i32, i32) {
    %c0_i32 = arith.constant 0 : i32
    %c0_i32_0 = arith.constant 0 : i32
    %c0_i32_1 = arith.constant 0 : i32
    return %c0_i32, %c0_i32_0 : i32, i32
  }
  func.func @transform_4(%arg0: i32) -> (i32, i32) {
    %c0_i32 = arith.constant 0 : i32
    %c0_i32_0 = arith.constant 0 : i32
    %c0_i32_1 = arith.constant 0 : i32
    return %c0_i32, %c0_i32_0 : i32, i32
  }
  func.func @transform_5(%arg0: i32) -> (i32, i32) {
    %c0_i32 = arith.constant 0 : i32
    %c0_i32_0 = arith.constant 0 : i32
    %c0_i32_1 = arith.constant 0 : i32
    return %c0_i32, %c0_i32_0 : i32, i32
  }
  func.func @transform_6(%arg0: i32) -> (i32, i32) {
    %c0_i32 = arith.constant 0 : i32
    %c0_i32_0 = arith.constant 0 : i32
    %c0_i32_1 = arith.constant 0 : i32
    return %c0_i32, %c0_i32_0 : i32, i32
  }
  func.func @transform_7(%arg0: i32) -> (i32, i32) {
    %c0_i32 = arith.constant 0 : i32
    %c0_i32_0 = arith.constant 0 : i32
    %c0_i32_1 = arith.constant 0 : i32
    return %c0_i32, %c0_i32_0 : i32, i32
  }
  func.func @transform_8(%arg0: i32) -> (i32, i32) {
    %c0_i32 = arith.constant 0 : i32
    %c0_i32_0 = arith.constant 0 : i32
    %c0_i32_1 = arith.constant 0 : i32
    return %c0_i32, %c0_i32_0 : i32, i32
  }
  func.func @transform_9(%arg0: i32) -> (i32, i32) {
    %c0_i32 = arith.constant 0 : i32
    %c0_i32_0 = arith.constant 0 : i32
    %c0_i32_1 = arith.constant 0 : i32
    return %c0_i32, %c0_i32_0 : i32, i32
  }
  func.func @transform_10(%arg0: i32) -> (i32, i32) {
    %c0_i32 = arith.constant 0 : i32
    %c0_i32_0 = arith.constant 0 : i32
    return %arg0, %c0_i32 : i32, i32
  }
}

</mosaic_0001>

<llo_original>
// kernel: tpu_custom_call.1
$region0: #{tpu_custom_call.1}
  #allocation0 [shape = 'u32[]', space=smem, size = 0x4, offset = 0x4, fixed_abs, tag = 'smem constant byte address 0x4 - core index']
  #allocation1 [shape = 'u32[72,128]{1,0:T(1,128)}', space=vmem, size = 0x9000, scoped, tag = 'internal scratch']
  %s0 = inlined_call_operand.vmem [shape: f32[3,8], index: 0, kind: input, shape index: {}]
  %s1 = inlined_call_operand.vmem [shape: f32[128,8], index: 1, kind: input, shape index: {}]
  %s2 = inlined_call_operand.vmem [shape: bf16[8,128], index: 2, kind: input, shape index: {}]
  %s3 = inlined_call_operand.vmem [shape: f32[1,128], index: 3, kind: input, shape index: {}]
  %s4 = inlined_call_operand.vmem [shape: bf16[128,128], index: 4, kind: input, shape index: {}]
  %s5 = inlined_call_operand.vmem [shape: f32[1,128], index: 5, kind: input, shape index: {}]
  %s6 = inlined_call_operand.vmem [shape: bf16[128,128], index: 6, kind: input, shape index: {}]
  %s7 = inlined_call_operand.vmem [shape: f32[1,128], index: 7, kind: input, shape index: {}]
  %s8 = inlined_call_operand.hbm [shape: bf16[128,128], index: 8, kind: input, shape index: {}]
  %s9 = inlined_call_operand.vmem [shape: f32[1,128], index: 9, kind: input, shape index: {}]
  %s10 = inlined_call_operand.vmem [shape: f32[128,3], index: 10, kind: output, shape index: {}]
  %s11 = sld [smem:[#allocation0]]
  $region77: #{tpu_custom_call.1} parent=0
    _
  %s13 = ssub.s32 1, %s11
  %s14 = scalar_select 0, %s13, %s11
  $region1: #{tpu_custom_call.1} parent=0
    #allocation2 [shape = 'u8[32768]{0}', space=vmem, size = 0x8000, scoped, tag = 'input window, operand 8, single buffered']
    #allocation3 [shape = 's32[2]{0}', space=sflag, size = 0x8, scoped, tag = 'scoped memory for tpu_custom_call.1']
    %15 = vsyncpa [#allocation3], 0
    loop: start=0, step=1, limit=4
    $region2: #{tpu_custom_call.1} parent=1 // loop_pre_header
      _
    $region3: #{tpu_custom_call.1} parent=1 // loop_header
      %s17 = sphi 0, %s21
      %p18 = scmp.ge.s32.totalorder %s17, 4
      %s25 = sphi 0, %s25
      %s27 = sphi 0, %s25
      %s28 = sphi 0, %s27
      %s42 = sphi 0, %s28
      %s48 = sphi 0, %s50
      %s51 = sphi 0, %s48
      %s52 = sphi 0, %s51
      %s68 = sphi 0, %s52
      %s72 = sphi 0, %s72
      %s74 = sphi 0, %s72
      %s75 = sphi 0, %s74
      %s89 = sphi 0, %s75
      %s93 = sphi 0, %s93
      %s95 = sphi 0, %s93
      %s96 = sphi 0, %s95
      %s110 = sphi 0, %s96
      %s114 = sphi 0, %s114
      %s116 = sphi 0, %s114
      %s117 = sphi 0, %s116
      %s131 = sphi 0, %s117
      %s135 = sphi 0, %s135
      %s137 = sphi 0, %s135
      %s138 = sphi 0, %s137
      %s152 = sphi 0, %s138
      %s156 = sphi 0, %s156
      %s158 = sphi 0, %s156
      %s159 = sphi 0, %s158
      %s173 = sphi 0, %s159
      %s177 = sphi 0, %s177
      %s179 = sphi 0, %s177
      %s180 = sphi 0, %s179
      %s194 = sphi 0, %s180
      %s198 = sphi 0, %s198
      %s200 = sphi 0, %s198
      %s201 = sphi 0, %s200
      %s215 = sphi 0, %s201
      %s219 = sphi 0, %s219
      %s221 = sphi 0, %s219
      %s222 = sphi 0, %s221
      %s236 = sphi 0, %s222
      %s242 = sphi 0, %s244
      %s245 = sphi 0, %s242
      %s246 = sphi 0, %s245
      %s262 = sphi 0, %s246
    $region4: #{tpu_custom_call.1} parent=1 // loop_header_branch
      %20 = sbr.rel (%p18) target = $region8
    $region5: #{tpu_custom_call.1} parent=1 // loop_body
      %s22 = ssub.s32 %s17, 1
      %s23 = ssub.s32 %s17, 2
      %s24 = sadd.s32 %s17, 1
      %s26 = sadd.s32 %s25, 1
      %p29 = scmp.eq.s32.totalorder %s17, 1
      %p30 = scmp.ne.s32.totalorder %s25, %s27
      %p31 = scmp.eq.s32.totalorder %s17, 0
      %p32 = por %p30, %p31
      %p33 = scmp.ne.s32.totalorder %s25, %s27
      %p34 = scmp.eq.s32.totalorder %s22, 1
      %p35 = por %p33, %p34
      %p36 = scmp.ne.s32.totalorder %s27, %s28
      %p37 = scmp.eq.s32.totalorder %s22, 0
      %p38 = por %p36, %p37
      %p39 = scmp.ne.s32.totalorder %s27, %s28
      %p40 = scmp.eq.s32.totalorder %s23, 1
      %p41 = por %p39, %p40
      %p43 = scmp.ne.s32.totalorder %s28, %s42
      %p44 = scmp.eq.s32.totalorder %s23, 0
      %p45 = por %p43, %p44
      %s46 = ssub.s32 %s17, %s24
      %p47 = scmp.eq.s32.totalorder %s46, 0
      %s49 = sadd.s32 %s48, 1
      %s50 = scalar_select %p47, %s48, %s49
      %p53 = pneg %p47
      %p54 = scmp.eq.s32.totalorder %s17, 1
      %p55 = por %p53, %p54
      %p56 = scmp.ne.s32.totalorder %s48, %s51
      %p57 = scmp.eq.s32.totalorder %s17, 0
      %p58 = por %p56, %p57
      %p59 = scmp.ne.s32.totalorder %s48, %s51
      %p60 = scmp.eq.s32.totalorder %s22, 1
      %p61 = por %p59, %p60
      %p62 = scmp.ne.s32.totalorder %s51, %s52
      %p63 = scmp.eq.s32.totalorder %s22, 0
      %p64 = por %p62, %p63
      %p65 = scmp.ne.s32.totalorder %s51, %s52
      %p66 = scmp.eq.s32.totalorder %s23, 1
      %p67 = por %p65, %p66
      %p69 = scmp.ne.s32.totalorder %s52, %s68
      %p70 = scmp.eq.s32.totalorder %s23, 0
      %p71 = por %p69, %p70
      %s73 = sadd.s32 %s72, 1
      %p76 = scmp.eq.s32.totalorder %s17, 1
      %p77 = scmp.ne.s32.totalorder %s72, %s74
      %p78 = scmp.eq.s32.totalorder %s17, 0
      %p79 = por %p77, %p78
      %p80 = scmp.ne.s32.totalorder %s72, %s74
      %p81 = scmp.eq.s32.totalorder %s22, 1
      %p82 = por %p80, %p81
      %p83 = scmp.ne.s32.totalorder %s74, %s75
      %p84 = scmp.eq.s32.totalorder %s22, 0
      %p85 = por %p83, %p84
      %p86 = scmp.ne.s32.totalorder %s74, %s75
      %p87 = scmp.eq.s32.totalorder %s23, 1
      %p88 = por %p86, %p87
      %p90 = scmp.ne.s32.totalorder %s75, %s89
      %p91 = scmp.eq.s32.totalorder %s23, 0
      %p92 = por %p90, %p91
      %s94 = sadd.s32 %s93, 1
      %p97 = scmp.eq.s32.totalorder %s17, 1
      %p98 = scmp.ne.s32.totalorder %s93, %s95
      %p99 = scmp.eq.s32.totalorder %s17, 0
      %p100 = por %p98, %p99
      %p101 = scmp.ne.s32.totalorder %s93, %s95
      %p102 = scmp.eq.s32.totalorder %s22, 1
      %p103 = por %p101, %p102
      %p104 = scmp.ne.s32.totalorder %s95, %s96
      %p105 = scmp.eq.s32.totalorder %s22, 0
      %p106 = por %p104, %p105
      %p107 = scmp.ne.s32.totalorder %s95, %s96
      %p108 = scmp.eq.s32.totalorder %s23, 1
      %p109 = por %p107, %p108
      %p111 = scmp.ne.s32.totalorder %s96, %s110
      %p112 = scmp.eq.s32.totalorder %s23, 0
      %p113 = por %p111, %p112
      %s115 = sadd.s32 %s114, 1
      %p118 = scmp.eq.s32.totalorder %s17, 1
      %p119 = scmp.ne.s32.totalorder %s114, %s116
      %p120 = scmp.eq.s32.totalorder %s17, 0
      %p121 = por %p119, %p120
      %p122 = scmp.ne.s32.totalorder %s114, %s116
      %p123 = scmp.eq.s32.totalorder %s22, 1
      %p124 = por %p122, %p123
      %p125 = scmp.ne.s32.totalorder %s116, %s117
      %p126 = scmp.eq.s32.totalorder %s22, 0
      %p127 = por %p125, %p126
      %p128 = scmp.ne.s32.totalorder %s116, %s117
      %p129 = scmp.eq.s32.totalorder %s23, 1
      %p130 = por %p128, %p129
      %p132 = scmp.ne.s32.totalorder %s117, %s131
      %p133 = scmp.eq.s32.totalorder %s23, 0
      %p134 = por %p132, %p133
      %s136 = sadd.s32 %s135, 1
      %p139 = scmp.eq.s32.totalorder %s17, 1
      %p140 = scmp.ne.s32.totalorder %s135, %s137
      %p141 = scmp.eq.s32.totalorder %s17, 0
      %p142 = por %p140, %p141
      %p143 = scmp.ne.s32.totalorder %s135, %s137
      %p144 = scmp.eq.s32.totalorder %s22, 1
      %p145 = por %p143, %p144
      %p146 = scmp.ne.s32.totalorder %s137, %s138
      %p147 = scmp.eq.s32.totalorder %s22, 0
      %p148 = por %p146, %p147
      %p149 = scmp.ne.s32.totalorder %s137, %s138
      %p150 = scmp.eq.s32.totalorder %s23, 1
      %p151 = por %p149, %p150
      %p153 = scmp.ne.s32.totalorder %s138, %s152
      %p154 = scmp.eq.s32.totalorder %s23, 0
      %p155 = por %p153, %p154
      %s157 = sadd.s32 %s156, 1
      %p160 = scmp.eq.s32.totalorder %s17, 1
      %p161 = scmp.ne.s32.totalorder %s156, %s158
      %p162 = scmp.eq.s32.totalorder %s17, 0
      %p163 = por %p161, %p162
      %p164 = scmp.ne.s32.totalorder %s156, %s158
      %p165 = scmp.eq.s32.totalorder %s22, 1
      %p166 = por %p164, %p165
      %p167 = scmp.ne.s32.totalorder %s158, %s159
      %p168 = scmp.eq.s32.totalorder %s22, 0
      %p169 = por %p167, %p168
      %p170 = scmp.ne.s32.totalorder %s158, %s159
      %p171 = scmp.eq.s32.totalorder %s23, 1
      %p172 = por %p170, %p171
      %p174 = scmp.ne.s32.totalorder %s159, %s173
      %p175 = scmp.eq.s32.totalorder %s23, 0
      %p176 = por %p174, %p175
      %s178 = sadd.s32 %s177, 1
      %p181 = scmp.eq.s32.totalorder %s17, 1
      %p182 = scmp.ne.s32.totalorder %s177, %s179
      %p183 = scmp.eq.s32.totalorder %s17, 0
      %p184 = por %p182, %p183
      %p185 = scmp.ne.s32.totalorder %s177, %s179
      %p186 = scmp.eq.s32.totalorder %s22, 1
      %p187 = por %p185, %p186
      %p188 = scmp.ne.s32.totalorder %s179, %s180
      %p189 = scmp.eq.s32.totalorder %s22, 0
      %p190 = por %p188, %p189
      %p191 = scmp.ne.s32.totalorder %s179, %s180
      %p192 = scmp.eq.s32.totalorder %s23, 1
      %p193 = por %p191, %p192
      %p195 = scmp.ne.s32.totalorder %s180, %s194
      %p196 = scmp.eq.s32.totalorder %s23, 0
      %p197 = por %p195, %p196
      %s199 = sadd.s32 %s198, 1
      %p202 = scmp.eq.s32.totalorder %s17, 1
      %p203 = scmp.ne.s32.totalorder %s198, %s200
      %p204 = scmp.eq.s32.totalorder %s17, 0
      %p205 = por %p203, %p204
      %p206 = scmp.ne.s32.totalorder %s198, %s200
      %p207 = scmp.eq.s32.totalorder %s22, 1
      %p208 = por %p206, %p207
      %p209 = scmp.ne.s32.totalorder %s200, %s201
      %p210 = scmp.eq.s32.totalorder %s22, 0
      %p211 = por %p209, %p210
      %p212 = scmp.ne.s32.totalorder %s200, %s201
      %p213 = scmp.eq.s32.totalorder %s23, 1
      %p214 = por %p212, %p213
      %p216 = scmp.ne.s32.totalorder %s201, %s215
      %p217 = scmp.eq.s32.totalorder %s23, 0
      %p218 = por %p216, %p217
      %s220 = sadd.s32 %s219, 1
      %p223 = scmp.eq.s32.totalorder %s17, 1
      %p224 = scmp.ne.s32.totalorder %s219, %s221
      %p225 = scmp.eq.s32.totalorder %s17, 0
      %p226 = por %p224, %p225
      %p227 = scmp.ne.s32.totalorder %s219, %s221
      %p228 = scmp.eq.s32.totalorder %s22, 1
      %p229 = por %p227, %p228
      %p230 = scmp.ne.s32.totalorder %s221, %s222
      %p231 = scmp.eq.s32.totalorder %s22, 0
      %p232 = por %p230, %p231
      %p233 = scmp.ne.s32.totalorder %s221, %s222
      %p234 = scmp.eq.s32.totalorder %s23, 1
      %p235 = por %p233, %p234
      %p237 = scmp.ne.s32.totalorder %s222, %s236
      %p238 = scmp.eq.s32.totalorder %s23, 0
      %p239 = por %p237, %p238
      %s240 = ssub.s32 %s17, %s24
      %p241 = scmp.eq.s32.totalorder %s240, 0
      %s243 = sadd.s32 %s242, 1
      %s244 = scalar_select %p241, %s242, %s243
      %p247 = pneg %p241
      %p248 = scmp.eq.s32.totalorder %s17, 1
      %p249 = por %p247, %p248
      %p250 = scmp.ne.s32.totalorder %s242, %s245
      %p251 = scmp.eq.s32.totalorder %s17, 0
      %p252 = por %p250, %p251
      %p253 = scmp.ne.s32.totalorder %s242, %s245
      %p254 = scmp.eq.s32.totalorder %s22, 1
      %p255 = por %p253, %p254
      %p256 = scmp.ne.s32.totalorder %s245, %s246
      %p257 = scmp.eq.s32.totalorder %s22, 0
      %p258 = por %p256, %p257
      %p259 = scmp.ne.s32.totalorder %s245, %s246
      %p260 = scmp.eq.s32.totalorder %s23, 1
      %p261 = por %p259, %p260
      %p263 = scmp.ne.s32.totalorder %s246, %s262
      %p264 = scmp.eq.s32.totalorder %s23, 0
      %p265 = por %p263, %p264
      %p266 = scmp.le.s32.totalorder 1, %s17
      %p267 = scmp.lt.s32.totalorder %s17, 3
      %p268 = pnand %p266, %p267
      %p269 = pneg %p268
      // Predicated region
      $region9: #{tpu_custom_call.1} parent=5 // pred_check
        _
      $region10: #{tpu_custom_call.1} parent=5 // pred_check_branch
        %271 = sbr.rel (%p268) target = $region12
      $region11: #{tpu_custom_call.1} parent=5 // pred_region
        %s272 = ssub.s32 %s17, 1
        // Predicated region
        $region13: #{tpu_custom_call.1} parent=11 // pred_check
          %p273 = pneg %p38
        $region14: #{tpu_custom_call.1} parent=11 // pred_check_branch
          %275 = sbr.rel (%p273) target = $region16
        $region15: #{tpu_custom_call.1} parent=11 // pred_region
          _
        $region16: #{tpu_custom_call.1} parent=11 // pred_fallthru
          _
        // Predicated region
        $region17: #{tpu_custom_call.1} parent=11 // pred_check
          %p276 = pneg %p85
        $region18: #{tpu_custom_call.1} parent=11 // pred_check_branch
          %278 = sbr.rel (%p276) target = $region20
        $region19: #{tpu_custom_call.1} parent=11 // pred_region
          _
        $region20: #{tpu_custom_call.1} parent=11 // pred_fallthru
          _
        // Predicated region
        $region21: #{tpu_custom_call.1} parent=11 // pred_check
          %p279 = pneg %p106
        $region22: #{tpu_custom_call.1} parent=11 // pred_check_branch
          %281 = sbr.rel (%p279) target = $region24
        $region23: #{tpu_custom_call.1} parent=11 // pred_region
          _
        $region24: #{tpu_custom_call.1} parent=11 // pred_fallthru
          _
        // Predicated region
        $region25: #{tpu_custom_call.1} parent=11 // pred_check
          %p282 = pneg %p127
        $region26: #{tpu_custom_call.1} parent=11 // pred_check_branch
          %284 = sbr.rel (%p282) target = $region28
        $region27: #{tpu_custom_call.1} parent=11 // pred_region
          _
        $region28: #{tpu_custom_call.1} parent=11 // pred_fallthru
          _
        // Predicated region
        $region29: #{tpu_custom_call.1} parent=11 // pred_check
          %p285 = pneg %p148
        $region30: #{tpu_custom_call.1} parent=11 // pred_check_branch
          %287 = sbr.rel (%p285) target = $region32
        $region31: #{tpu_custom_call.1} parent=11 // pred_region
          _
        $region32: #{tpu_custom_call.1} parent=11 // pred_fallthru
          _
        // Predicated region
        $region33: #{tpu_custom_call.1} parent=11 // pred_check
          %p288 = pneg %p169
        $region34: #{tpu_custom_call.1} parent=11 // pred_check_branch
          %290 = sbr.rel (%p288) target = $region36
        $region35: #{tpu_custom_call.1} parent=11 // pred_region
          _
        $region36: #{tpu_custom_call.1} parent=11 // pred_fallthru
          _
        // Predicated region
        $region37: #{tpu_custom_call.1} parent=11 // pred_check
          %p291 = pneg %p190
        $region38: #{tpu_custom_call.1} parent=11 // pred_check_branch
          %293 = sbr.rel (%p291) target = $region40
        $region39: #{tpu_custom_call.1} parent=11 // pred_region
          _
        $region40: #{tpu_custom_call.1} parent=11 // pred_fallthru
          _
        // Predicated region
        $region41: #{tpu_custom_call.1} parent=11 // pred_check
          %p294 = pneg %p211
        $region42: #{tpu_custom_call.1} parent=11 // pred_check_branch
          %296 = sbr.rel (%p294) target = $region44
        $region43: #{tpu_custom_call.1} parent=11 // pred_region
          %298 = vsyncadd [#allocation3], 0
          %s299 = sshll.u32 %s8, 4
          %s300 = int_to_ptr.hbm [resolvable:$true] %s299
          %s301 = sshll.u32 [#allocation2], 4
          %s302 = int_to_ptr.vmem [resolvable:$true] %s301
          %307 = dma.hbm_to_vmem [thread:$0]  %s300, 1024, %s302, [#allocation3], 64, 64, 4
        $region44: #{tpu_custom_call.1} parent=11 // pred_fallthru
          _
        // Predicated region
        $region45: #{tpu_custom_call.1} parent=11 // pred_check
          %p308 = pneg %p232
        $region46: #{tpu_custom_call.1} parent=11 // pred_check_branch
          %310 = sbr.rel (%p308) target = $region48
        $region47: #{tpu_custom_call.1} parent=11 // pred_region
          _
        $region48: #{tpu_custom_call.1} parent=11 // pred_fallthru
          _
      $region12: #{tpu_custom_call.1} parent=5 // pred_fallthru
        _
      %p311 = scmp.lt.s32.totalorder %s17, 2
      // Predicated region
      $region49: #{tpu_custom_call.1} parent=5 // pred_check
        %p312 = pneg %p311
      $region50: #{tpu_custom_call.1} parent=5 // pred_check_branch
        %314 = sbr.rel (%p312) target = $region52
      $region51: #{tpu_custom_call.1} parent=5 // pred_region
        // Predicated region
        $region53: #{tpu_custom_call.1} parent=51 // pred_check
          %p315 = pneg %p58
        $region54: #{tpu_custom_call.1} parent=51 // pred_check_branch
          %317 = sbr.rel (%p315) target = $region56
        $region55: #{tpu_custom_call.1} parent=51 // pred_region
          %s318 = smul.u32 8, %s17
          %p319 = scmp.lt.s32.totalorder %s318, 15
          %s320 = scalar_select %p319, %s318, 15
          %s321 = smul.addr %s320, 8
          %s322 = scalar_lea.vmem %s1, %s321
          %s323 = smul.u32 8, %s17
        $region56: #{tpu_custom_call.1} parent=51 // pred_fallthru
          _
      $region52: #{tpu_custom_call.1} parent=5 // pred_fallthru
        _
      %p324 = scmp.le.s32.totalorder 1, %s17
      %p325 = scmp.lt.s32.totalorder %s17, 3
      %p326 = pnand %p324, %p325
      %p327 = pneg %p326
      // Predicated region
      $region57: #{tpu_custom_call.1} parent=5 // pred_check
        _
      $region58: #{tpu_custom_call.1} parent=5 // pred_check_branch
        %329 = sbr.rel (%p326) target = $region60
      $region59: #{tpu_custom_call.1} parent=5 // pred_region
        %s330 = ssub.s32 %s17, 1
        // Predicated region
        $region61: #{tpu_custom_call.1} parent=59 // pred_check
          %p331 = pneg %p211
        $region62: #{tpu_custom_call.1} parent=59 // pred_check_branch
          %333 = sbr.rel (%p331) target = $region64
        $region63: #{tpu_custom_call.1} parent=59 // pred_region
          %335 = dma.done [#allocation3], 1024
        $region64: #{tpu_custom_call.1} parent=59 // pred_fallthru
          _
        %p336 = pneg %p38
        %p337 = pneg %p35
        %s338 = smul.u32 8, %s22
        %p339 = scmp.lt.s32.totalorder %s338, 15
        %s340 = scalar_select %p339, %s338, 15
        %s341 = smul.addr %s340, 8
        %s342 = scalar_lea.vmem %s1, %s341
        %p343 = pneg %p64
        %p344 = pneg %p61
        %p345 = pneg %p85
        %p346 = pneg %p82
        %p347 = pneg %p106
        %p348 = pneg %p103
        %p349 = pneg %p127
        %p350 = pneg %p124
        %p351 = pneg %p148
        %p352 = pneg %p145
        %p353 = pneg %p169
        %p354 = pneg %p166
        %p355 = pneg %p190
        %p356 = pneg %p187
        %p357 = pneg %p211
        %p358 = pneg %p208
        %p359 = pneg %p232
        %p360 = pneg %p229
        %p361 = pneg %p258
        %p362 = pneg %p255
        %s363 = smul.u32 8, %s22
        %p364 = scmp.lt.s32.totalorder %s363, 15
        %s365 = scalar_select %p364, %s363, 15
        %s366 = smul.addr %s365, 8
        %s367 = scalar_lea.vmem %s10, %s366
        %s368 = smul.u32 8, %s22
        %p369 = scmp.lt.s32.totalorder %s368, 15
        %s370 = scalar_select %p369, %s368, 15
        %s371 = smul.addr %s370, 8
        %s372 = scalar_lea.vmem %s1, %s371
        %s373 = smul.u32 8, %s22
        %s374 = smul.u32 8, %s22
        %p375 = scmp.lt.s32.totalorder %s374, 15
        %s376 = scalar_select %p375, %s374, 15
        %s377 = smul.addr %s376, 8
        %s378 = scalar_lea.vmem %s10, %s377
        %s379 = smul.u32 8, %s22
        %v381 = vld [vmem:[%s372] sm:$0xff]
        %v382 = vld [vmem:[%s372 + $0x8] sm:$0xff]
        %v383 = vld [vmem:[%s372 + $0x10] sm:$0xff]
        %v384 = vld [vmem:[%s372 + $0x18] sm:$0xff]
        %v385 = vld [vmem:[%s372 + $0x20] sm:$0xff]
        %v386 = vld [vmem:[%s372 + $0x28] sm:$0xff]
        %v387 = vld [vmem:[%s372 + $0x30] sm:$0xff]
        %v388 = vld [vmem:[%s372 + $0x38] sm:$0xff]
        %v389 = vld [vmem:[%s0] sm:$0x1]
        %v390 = vld [vmem:[%s0 + $0x1] sm:$0x1]
        %v391 = vld [vmem:[%s0 + $0x2] sm:$0x1]
        %v392 = vperm.slane %v389, 0
        %v393 = vsub.f32 %v381, %v392
        %v394 = vsub.f32 %v382, %v392
        %v395 = vsub.f32 %v383, %v392
        %v396 = vsub.f32 %v384, %v392
        %v397 = vsub.f32 %v385, %v392
        %v398 = vsub.f32 %v386, %v392
        %v399 = vsub.f32 %v387, %v392
        %v400 = vsub.f32 %v388, %v392
        %v401 = vperm.slane %v390, 0
        %v402 = vmul.f32 %v393, %v401
        %v403 = vmul.f32 %v394, %v401
        %v404 = vmul.f32 %v395, %v401
        %v405 = vmul.f32 %v396, %v401
        %v406 = vmul.f32 %v397, %v401
        %v407 = vmul.f32 %v398, %v401
        %v408 = vmul.f32 %v399, %v401
        %v409 = vmul.f32 %v400, %v401
        %v410 = vlaneseq
        %v411 = vand.u32 %v410, 127
        %vm412 = vcmp.eq.s32.totalorder %v411, 2
        %v413 = vand.u32 2147483647, %v381
        %vm414 = vcmp.le.f32.partialorder %v413, 0.7853982
        %vm415 = vcmp.lt.s32.totalorder %v381, 0
        %v416 = vand.u32 %v381, 2139095040
        %v417 = vshrl.u32 %v416, 23
        %v418 = vsub.s32 %v417, 127
        %v419 = vand.u32 2147483647, %v381
        %v420 = vand.u32 %v419, 8388607
        %v421 = vor.u32 %v420, 8388608
        %v422 = vsub.s32 0, %v421
        %v423 = vadd.s32 %v418, 1
        %vm424 = vcmp.gt.s32.totalorder %v423, 0
        %v425 = vsel %vm424, %v423, 0
        %v426 = vshrl.u32 %v425, 5
        %v427 = vand.u32 %v425, 31
        %v428 = vsub.s32 32, %v427
        %v429 = vshrl.u32 683565275, %v428
        %v430 = vshll.u32 683565275, %v427
        %v431 = vshrl.u32 2475754826, %v428
        %v432 = vor.u32 %v430, %v431
        %v433 = vshll.u32 2475754826, %v427
        %v434 = vshrl.u32 2131351028, %v428
        %v435 = vor.u32 %v433, %v434
        %v436 = vshll.u32 2131351028, %v427
        %v437 = vshrl.u32 2102212464, %v428
        %v438 = vor.u32 %v436, %v437
        %v439 = vshll.u32 2102212464, %v427
        %v440 = vshrl.u32 920167782, %v428
        %v441 = vor.u32 %v439, %v440
        %v442 = vshll.u32 920167782, %v427
        %v443 = vshrl.u32 1326507024, %v428
        %v444 = vor.u32 %v442, %v443
        %vm445 = vcmp.lt.s32.totalorder %v426, 1
        %vm446 = vcmp.lt.s32.totalorder %v426, 2
        %vm447 = vcmp.lt.s32.totalorder %v426, 3
        %vm448 = vcmp.lt.s32.totalorder %v426, 4
        %v449 = vsel %vm445, %v429, %v432
        %v450 = vsel %vm448, %v438, 2102212464
        %v451 = vsel %vm447, %v435, %v450
        %v452 = vsel %vm446, %v449, %v451
        %v453 = vsel %vm445, %v432, %v435
        %v454 = vsel %vm448, %v441, 920167782
        %v455 = vsel %vm447, %v438, %v454
        %v456 = vsel %vm446, %v453, %v455
        %v457 = vsel %vm445, %v435, %v438
        %v458 = vsel %vm448, %v444, 1326507024
        %v459 = vsel %vm447, %v441, %v458
        %v460 = vsel %vm446, %v457, %v459
        %v461 = vshll.u32 %v421, 8
        %v462 = vand.u32 %v461, 65535
        %v463 = vshrl.u32 %v461, 16
        %v464 = vand.u32 %v460, 65535
        %v465 = vshrl.u32 %v460, 16
        %v466 = vmul.u32 %v462, %v464
        %v467 = vmul.u32 %v462, %v465
        %v468 = vmul.u32 %v463, %v464
        %v469 = vmul.u32 %v463, %v465
        %v470 = vshll.u32 %v467, 16
        %v471 = vshrl.u32 %v467, 16
        %v472 = vshll.u32 %v468, 16
        %v473 = vshrl.u32 %v468, 16
        %vm474 = vc.u32 %v466, %v470
        %v475 = vsel %vm474, 1, 0
        %v476 = vadd.s32 %v466, %v470
        %v477 = vadd.s32 %v469, %v475
        %vm478 = vc.u32 %v476, %v472
        %v479 = vsel %vm478, 1, 0
        %v480 = vadd.s32 %v476, %v472
        %v481 = vadd.s32 %v477, %v479
        %v482 = vadd.s32 %v481, %v471
        %v483 = vadd.s32 %v482, %v473
        %v484 = vand.u32 %v461, 65535
        %v485 = vshrl.u32 %v461, 16
        %v486 = vand.u32 %v456, 65535
        %v487 = vshrl.u32 %v456, 16
        %v488 = vmul.u32 %v484, %v486
        %v489 = vmul.u32 %v484, %v487
        %v490 = vmul.u32 %v485, %v486
        %v491 = vmul.u32 %v485, %v487
        %v492 = vshll.u32 %v489, 16
        %v493 = vshrl.u32 %v489, 16
        %v494 = vshll.u32 %v490, 16
        %v495 = vshrl.u32 %v490, 16
        %vm496 = vc.u32 %v488, %v492
        %v497 = vsel %vm496, 1, 0
        %v498 = vadd.s32 %v488, %v492
        %v499 = vadd.s32 %v491, %v497
        %vm500 = vc.u32 %v498, %v494
        %v501 = vsel %vm500, 1, 0
        %v502 = vadd.s32 %v498, %v494
        %v503 = vadd.s32 %v499, %v501
        %v504 = vadd.s32 %v503, %v493
        %v505 = vadd.s32 %v504, %v495
        %v506 = vmul.u32 %v461, %v452
        %v507 = vadd.s32 %v483, %v502
        %vm508 = vc.u32 %v483, %v502
        %v509 = vadd.s32 %v505, 1
        %v510 = vsel %vm508, %v509, %v505
        %v511 = vadd.s32 %v506, %v510
        %v512 = vadd.s32 %v511, 536870912
        %v513 = vshrl.u32 %v512, 30
        %v514 = vshll.u32 %v513, 30
        %v515 = vsub.s32 %v511, %v514
        %vm516 = vcmp.lt.s32.totalorder %v515, 0
        %v517 = vsub.s32 0, %v515
        %v518 = vsel %vm516, %v517, %v515
        %v519 = vclz %v518
        %v520 = vsub.s32 %v519, 2
        %vm521 = vcmp.gt.s32.totalorder 0, %v520
        %v522 = vsel %vm521, 0, %v520
        %v523 = vsub.s32 32, %v522
        %v524 = vshll.u32 %v515, %v522
        %v525 = vshrl.u32 %v507, %v523
        %v526 = vor.u32 %v524, %v525
        %v527 = vsub.s32 4294967266, %v522
        %v528 = vadd.s32 %v527, 127
        %v529 = vshll.u32 %v528, 23
        %v530 = vor.u32 4788187, %v529
        %v531 = vand.u32 2147483647, %v530
        %v533 = vcvt.s32.f32 %v526
        %v534 = vmul.f32 %v533, %v531
        %v535 = vxor.u32 %v534, 2147483648
        %v536 = vsel %vm415, %v535, %v534
        %v537 = vsub.s32 4, %v513
        %v538 = vsel %vm415, %v537, %v513
        %v539 = vsel %vm414, %v381, %v536
        %v540 = vsel %vm414, 0, %v538
        %v541 = vmul.f32 %v539, %v539
        %v542 = vmul.f32 %v541, -0.001358992
        %v543 = vadd.f32 %v542, 0.041655596
        %v544 = vmul.f32 %v541, %v543
        %v545 = vadd.f32 %v544, -0.4999988
        %v546 = vmul.f32 %v541, %v545
        %v547 = vadd.f32 1.0, %v546
        %v548 = vmul.f32 %v539, %v539
        %v549 = vmul.f32 %v548, -0.00019511016
        %v550 = vadd.f32 %v549, 0.008332121
        %v551 = vmul.f32 %v548, %v550
        %v552 = vadd.f32 %v551, -0.16666654
        %v553 = vmul.f32 %v548, %v552
        %v554 = vadd.f32 %v553, 1.0
        %v555 = vmul.f32 %v554, %v539
        %vm556 = vweird.f32 %v381
        %v557 = vand.u32 %v540, 3
        %vm558 = vcmp.lt.s32.totalorder %v557, 2
        %vm559 = vcmp.eq.s32.totalorder %v557, 0
        %v560 = vxor.u32 %v555, 2147483648
        %v561 = vsel %vm559, %v547, %v560
        %vm562 = vcmp.eq.s32.totalorder %v557, 2
        %v563 = vxor.u32 %v547, 2147483648
        %v564 = vsel %vm562, %v563, %v555
        %v565 = vsel %vm558, %v561, %v564
        %v566 = vsel %vm556, nan, %v565
        %v567 = vand.u32 2147483647, %v382
        %vm568 = vcmp.le.f32.partialorder %v567, 0.7853982
        %vm569 = vcmp.lt.s32.totalorder %v382, 0
        %v570 = vand.u32 %v382, 2139095040
        %v571 = vshrl.u32 %v570, 23
        %v572 = vsub.s32 %v571, 127
        %v573 = vand.u32 2147483647, %v382
        %v574 = vand.u32 %v573, 8388607
        %v575 = vor.u32 %v574, 8388608
        %v576 = vsub.s32 0, %v575
        %v577 = vadd.s32 %v572, 1
        %vm578 = vcmp.gt.s32.totalorder %v577, 0
        %v579 = vsel %vm578, %v577, 0
        %v580 = vshrl.u32 %v579, 5
        %v581 = vand.u32 %v579, 31
        %v582 = vsub.s32 32, %v581
        %v583 = vshrl.u32 683565275, %v582
        %v584 = vshll.u32 683565275, %v581
        %v585 = vshrl.u32 2475754826, %v582
        %v586 = vor.u32 %v584, %v585
        %v587 = vshll.u32 2475754826, %v581
        %v588 = vshrl.u32 2131351028, %v582
        %v589 = vor.u32 %v587, %v588
        %v590 = vshll.u32 2131351028, %v581
        %v591 = vshrl.u32 2102212464, %v582
        %v592 = vor.u32 %v590, %v591
        %v593 = vshll.u32 2102212464, %v581
        %v594 = vshrl.u32 920167782, %v582
        %v595 = vor.u32 %v593, %v594
        %v596 = vshll.u32 920167782, %v581
        %v597 = vshrl.u32 1326507024, %v582
        %v598 = vor.u32 %v596, %v597
        %vm599 = vcmp.lt.s32.totalorder %v580, 1
        %vm600 = vcmp.lt.s32.totalorder %v580, 2
        %vm601 = vcmp.lt.s32.totalorder %v580, 3
        %vm602 = vcmp.lt.s32.totalorder %v580, 4
        %v603 = vsel %vm599, %v583, %v586
        %v604 = vsel %vm602, %v592, 2102212464
        %v605 = vsel %vm601, %v589, %v604
        %v606 = vsel %vm600, %v603, %v605
        %v607 = vsel %vm599, %v586, %v589
        %v608 = vsel %vm602, %v595, 920167782
        %v609 = vsel %vm601, %v592, %v608
        %v610 = vsel %vm600, %v607, %v609
        %v611 = vsel %vm599, %v589, %v592
        %v612 = vsel %vm602, %v598, 1326507024
        %v613 = vsel %vm601, %v595, %v612
        %v614 = vsel %vm600, %v611, %v613
        %v615 = vshll.u32 %v575, 8
        %v616 = vand.u32 %v615, 65535
        %v617 = vshrl.u32 %v615, 16
        %v618 = vand.u32 %v614, 65535
        %v619 = vshrl.u32 %v614, 16
        %v620 = vmul.u32 %v616, %v618
        %v621 = vmul.u32 %v616, %v619
        %v622 = vmul.u32 %v617, %v618
        %v623 = vmul.u32 %v617, %v619
        %v624 = vshll.u32 %v621, 16
        %v625 = vshrl.u32 %v621, 16
        %v626 = vshll.u32 %v622, 16
        %v627 = vshrl.u32 %v622, 16
        %vm628 = vc.u32 %v620, %v624
        %v629 = vsel %vm628, 1, 0
        %v630 = vadd.s32 %v620, %v624
        %v631 = vadd.s32 %v623, %v629
        %vm632 = vc.u32 %v630, %v626
        %v633 = vsel %vm632, 1, 0
        %v634 = vadd.s32 %v630, %v626
        %v635 = vadd.s32 %v631, %v633
        %v636 = vadd.s32 %v635, %v625
        %v637 = vadd.s32 %v636, %v627
        %v638 = vand.u32 %v615, 65535
        %v639 = vshrl.u32 %v615, 16
        %v640 = vand.u32 %v610, 65535
        %v641 = vshrl.u32 %v610, 16
        %v642 = vmul.u32 %v638, %v640
        %v643 = vmul.u32 %v638, %v641
        %v644 = vmul.u32 %v639, %v640
        %v645 = vmul.u32 %v639, %v641
        %v646 = vshll.u32 %v643, 16
        %v647 = vshrl.u32 %v643, 16
        %v648 = vshll.u32 %v644, 16
        %v649 = vshrl.u32 %v644, 16
        %vm650 = vc.u32 %v642, %v646
        %v651 = vsel %vm650, 1, 0
        %v652 = vadd.s32 %v642, %v646
        %v653 = vadd.s32 %v645, %v651
        %vm654 = vc.u32 %v652, %v648
        %v655 = vsel %vm654, 1, 0
        %v656 = vadd.s32 %v652, %v648
        %v657 = vadd.s32 %v653, %v655
        %v658 = vadd.s32 %v657, %v647
        %v659 = vadd.s32 %v658, %v649
        %v660 = vmul.u32 %v615, %v606
        %v661 = vadd.s32 %v637, %v656
        %vm662 = vc.u32 %v637, %v656
        %v663 = vadd.s32 %v659, 1
        %v664 = vsel %vm662, %v663, %v659
        %v665 = vadd.s32 %v660, %v664
        %v666 = vadd.s32 %v665, 536870912
        %v667 = vshrl.u32 %v666, 30
        %v668 = vshll.u32 %v667, 30
        %v669 = vsub.s32 %v665, %v668
        %vm670 = vcmp.lt.s32.totalorder %v669, 0
        %v671 = vsub.s32 0, %v669
        %v672 = vsel %vm670, %v671, %v669
        %v673 = vclz %v672
        %v674 = vsub.s32 %v673, 2
        %vm675 = vcmp.gt.s32.totalorder 0, %v674
        %v676 = vsel %vm675, 0, %v674
        %v677 = vsub.s32 32, %v676
        %v678 = vshll.u32 %v669, %v676
        %v679 = vshrl.u32 %v661, %v677
        %v680 = vor.u32 %v678, %v679
        %v681 = vsub.s32 4294967266, %v676
        %v682 = vadd.s32 %v681, 127
        %v683 = vshll.u32 %v682, 23
        %v684 = vor.u32 4788187, %v683
        %v685 = vand.u32 2147483647, %v684
        %v687 = vcvt.s32.f32 %v680
        %v688 = vmul.f32 %v687, %v685
        %v689 = vxor.u32 %v688, 2147483648
        %v690 = vsel %vm569, %v689, %v688
        %v691 = vsub.s32 4, %v667
        %v692 = vsel %vm569, %v691, %v667
        %v693 = vsel %vm568, %v382, %v690
        %v694 = vsel %vm568, 0, %v692
        %v695 = vmul.f32 %v693, %v693
        %v696 = vmul.f32 %v695, -0.001358992
        %v697 = vadd.f32 %v696, 0.041655596
        %v698 = vmul.f32 %v695, %v697
        %v699 = vadd.f32 %v698, -0.4999988
        %v700 = vmul.f32 %v695, %v699
        %v701 = vadd.f32 1.0, %v700
        %v702 = vmul.f32 %v693, %v693
        %v703 = vmul.f32 %v702, -0.00019511016
        %v704 = vadd.f32 %v703, 0.008332121
        %v705 = vmul.f32 %v702, %v704
        %v706 = vadd.f32 %v705, -0.16666654
        %v707 = vmul.f32 %v702, %v706
        %v708 = vadd.f32 %v707, 1.0
        %v709 = vmul.f32 %v708, %v693
        %vm710 = vweird.f32 %v382
        %v711 = vand.u32 %v694, 3
        %vm712 = vcmp.lt.s32.totalorder %v711, 2
        %vm713 = vcmp.eq.s32.totalorder %v711, 0
        %v714 = vxor.u32 %v709, 2147483648
        %v715 = vsel %vm713, %v701, %v714
        %vm716 = vcmp.eq.s32.totalorder %v711, 2
        %v717 = vxor.u32 %v701, 2147483648
        %v718 = vsel %vm716, %v717, %v709
        %v719 = vsel %vm712, %v715, %v718
        %v720 = vsel %vm710, nan, %v719
        %v721 = vand.u32 2147483647, %v383
        %vm722 = vcmp.le.f32.partialorder %v721, 0.7853982
        %vm723 = vcmp.lt.s32.totalorder %v383, 0
        %v724 = vand.u32 %v383, 2139095040
        %v725 = vshrl.u32 %v724, 23
        %v726 = vsub.s32 %v725, 127
        %v727 = vand.u32 2147483647, %v383
        %v728 = vand.u32 %v727, 8388607
        %v729 = vor.u32 %v728, 8388608
        %v730 = vsub.s32 0, %v729
        %v731 = vadd.s32 %v726, 1
        %vm732 = vcmp.gt.s32.totalorder %v731, 0
        %v733 = vsel %vm732, %v731, 0
        %v734 = vshrl.u32 %v733, 5
        %v735 = vand.u32 %v733, 31
        %v736 = vsub.s32 32, %v735
        %v737 = vshrl.u32 683565275, %v736
        %v738 = vshll.u32 683565275, %v735
        %v739 = vshrl.u32 2475754826, %v736
        %v740 = vor.u32 %v738, %v739
        %v741 = vshll.u32 2475754826, %v735
        %v742 = vshrl.u32 2131351028, %v736
        %v743 = vor.u32 %v741, %v742
        %v744 = vshll.u32 2131351028, %v735
        %v745 = vshrl.u32 2102212464, %v736
        %v746 = vor.u32 %v744, %v745
        %v747 = vshll.u32 2102212464, %v735
        %v748 = vshrl.u32 920167782, %v736
        %v749 = vor.u32 %v747, %v748
        %v750 = vshll.u32 920167782, %v735
        %v751 = vshrl.u32 1326507024, %v736
        %v752 = vor.u32 %v750, %v751
        %vm753 = vcmp.lt.s32.totalorder %v734, 1
        %vm754 = vcmp.lt.s32.totalorder %v734, 2
        %vm755 = vcmp.lt.s32.totalorder %v734, 3
        %vm756 = vcmp.lt.s32.totalorder %v734, 4
        %v757 = vsel %vm753, %v737, %v740
        %v758 = vsel %vm756, %v746, 2102212464
        %v759 = vsel %vm755, %v743, %v758
        %v760 = vsel %vm754, %v757, %v759
        %v761 = vsel %vm753, %v740, %v743
        %v762 = vsel %vm756, %v749, 920167782
        %v763 = vsel %vm755, %v746, %v762
        %v764 = vsel %vm754, %v761, %v763
        %v765 = vsel %vm753, %v743, %v746
        %v766 = vsel %vm756, %v752, 1326507024
        %v767 = vsel %vm755, %v749, %v766
        %v768 = vsel %vm754, %v765, %v767
        %v769 = vshll.u32 %v729, 8
        %v770 = vand.u32 %v769, 65535
        %v771 = vshrl.u32 %v769, 16
        %v772 = vand.u32 %v768, 65535
        %v773 = vshrl.u32 %v768, 16
        %v774 = vmul.u32 %v770, %v772
        %v775 = vmul.u32 %v770, %v773
        %v776 = vmul.u32 %v771, %v772
        %v777 = vmul.u32 %v771, %v773
        %v778 = vshll.u32 %v775, 16
        %v779 = vshrl.u32 %v775, 16
        %v780 = vshll.u32 %v776, 16
        %v781 = vshrl.u32 %v776, 16
        %vm782 = vc.u32 %v774, %v778
        %v783 = vsel %vm782, 1, 0
        %v784 = vadd.s32 %v774, %v778
        %v785 = vadd.s32 %v777, %v783
        %vm786 = vc.u32 %v784, %v780
        %v787 = vsel %vm786, 1, 0
        %v788 = vadd.s32 %v784, %v780
        %v789 = vadd.s32 %v785, %v787
        %v790 = vadd.s32 %v789, %v779
        %v791 = vadd.s32 %v790, %v781
        %v792 = vand.u32 %v769, 65535
        %v793 = vshrl.u32 %v769, 16
        %v794 = vand.u32 %v764, 65535
        %v795 = vshrl.u32 %v764, 16
        %v796 = vmul.u32 %v792, %v794
        %v797 = vmul.u32 %v792, %v795
        %v798 = vmul.u32 %v793, %v794
        %v799 = vmul.u32 %v793, %v795
        %v800 = vshll.u32 %v797, 16
        %v801 = vshrl.u32 %v797, 16
        %v802 = vshll.u32 %v798, 16
        %v803 = vshrl.u32 %v798, 16
        %vm804 = vc.u32 %v796, %v800
        %v805 = vsel %vm804, 1, 0
        %v806 = vadd.s32 %v796, %v800
        %v807 = vadd.s32 %v799, %v805
        %vm808 = vc.u32 %v806, %v802
        %v809 = vsel %vm808, 1, 0
        %v810 = vadd.s32 %v806, %v802
        %v811 = vadd.s32 %v807, %v809
        %v812 = vadd.s32 %v811, %v801
        %v813 = vadd.s32 %v812, %v803
        %v814 = vmul.u32 %v769, %v760
        %v815 = vadd.s32 %v791, %v810
        %vm816 = vc.u32 %v791, %v810
        %v817 = vadd.s32 %v813, 1
        %v818 = vsel %vm816, %v817, %v813
        %v819 = vadd.s32 %v814, %v818
        %v820 = vadd.s32 %v819, 536870912
        %v821 = vshrl.u32 %v820, 30
        %v822 = vshll.u32 %v821, 30
        %v823 = vsub.s32 %v819, %v822
        %vm824 = vcmp.lt.s32.totalorder %v823, 0
        %v825 = vsub.s32 0, %v823
        %v826 = vsel %vm824, %v825, %v823
        %v827 = vclz %v826
        %v828 = vsub.s32 %v827, 2
        %vm829 = vcmp.gt.s32.totalorder 0, %v828
        %v830 = vsel %vm829, 0, %v828
        %v831 = vsub.s32 32, %v830
        %v832 = vshll.u32 %v823, %v830
        %v833 = vshrl.u32 %v815, %v831
        %v834 = vor.u32 %v832, %v833
        %v835 = vsub.s32 4294967266, %v830
        %v836 = vadd.s32 %v835, 127
        %v837 = vshll.u32 %v836, 23
        %v838 = vor.u32 4788187, %v837
        %v839 = vand.u32 2147483647, %v838
        %v841 = vcvt.s32.f32 %v834
        %v842 = vmul.f32 %v841, %v839
        %v843 = vxor.u32 %v842, 2147483648
        %v844 = vsel %vm723, %v843, %v842
        %v845 = vsub.s32 4, %v821
        %v846 = vsel %vm723, %v845, %v821
        %v847 = vsel %vm722, %v383, %v844
        %v848 = vsel %vm722, 0, %v846
        %v849 = vmul.f32 %v847, %v847
        %v850 = vmul.f32 %v849, -0.001358992
        %v851 = vadd.f32 %v850, 0.041655596
        %v852 = vmul.f32 %v849, %v851
        %v853 = vadd.f32 %v852, -0.4999988
        %v854 = vmul.f32 %v849, %v853
        %v855 = vadd.f32 1.0, %v854
        %v856 = vmul.f32 %v847, %v847
        %v857 = vmul.f32 %v856, -0.00019511016
        %v858 = vadd.f32 %v857, 0.008332121
        %v859 = vmul.f32 %v856, %v858
        %v860 = vadd.f32 %v859, -0.16666654
        %v861 = vmul.f32 %v856, %v860
        %v862 = vadd.f32 %v861, 1.0
        %v863 = vmul.f32 %v862, %v847
        %vm864 = vweird.f32 %v383
        %v865 = vand.u32 %v848, 3
        %vm866 = vcmp.lt.s32.totalorder %v865, 2
        %vm867 = vcmp.eq.s32.totalorder %v865, 0
        %v868 = vxor.u32 %v863, 2147483648
        %v869 = vsel %vm867, %v855, %v868
        %vm870 = vcmp.eq.s32.totalorder %v865, 2
        %v871 = vxor.u32 %v855, 2147483648
        %v872 = vsel %vm870, %v871, %v863
        %v873 = vsel %vm866, %v869, %v872
        %v874 = vsel %vm864, nan, %v873
        %v875 = vand.u32 2147483647, %v384
        %vm876 = vcmp.le.f32.partialorder %v875, 0.7853982
        %vm877 = vcmp.lt.s32.totalorder %v384, 0
        %v878 = vand.u32 %v384, 2139095040
        %v879 = vshrl.u32 %v878, 23
        %v880 = vsub.s32 %v879, 127
        %v881 = vand.u32 2147483647, %v384
        %v882 = vand.u32 %v881, 8388607
        %v883 = vor.u32 %v882, 8388608
        %v884 = vsub.s32 0, %v883
        %v885 = vadd.s32 %v880, 1
        %vm886 = vcmp.gt.s32.totalorder %v885, 0
        %v887 = vsel %vm886, %v885, 0
        %v888 = vshrl.u32 %v887, 5
        %v889 = vand.u32 %v887, 31
        %v890 = vsub.s32 32, %v889
        %v891 = vshrl.u32 683565275, %v890
        %v892 = vshll.u32 683565275, %v889
        %v893 = vshrl.u32 2475754826, %v890
        %v894 = vor.u32 %v892, %v893
        %v895 = vshll.u32 2475754826, %v889
        %v896 = vshrl.u32 2131351028, %v890
        %v897 = vor.u32 %v895, %v896
        %v898 = vshll.u32 2131351028, %v889
        %v899 = vshrl.u32 2102212464, %v890
        %v900 = vor.u32 %v898, %v899
        %v901 = vshll.u32 2102212464, %v889
        %v902 = vshrl.u32 920167782, %v890
        %v903 = vor.u32 %v901, %v902
        %v904 = vshll.u32 920167782, %v889
        %v905 = vshrl.u32 1326507024, %v890
        %v906 = vor.u32 %v904, %v905
        %vm907 = vcmp.lt.s32.totalorder %v888, 1
        %vm908 = vcmp.lt.s32.totalorder %v888, 2
        %vm909 = vcmp.lt.s32.totalorder %v888, 3
        %vm910 = vcmp.lt.s32.totalorder %v888, 4
        %v911 = vsel %vm907, %v891, %v894
        %v912 = vsel %vm910, %v900, 2102212464
        %v913 = vsel %vm909, %v897, %v912
        %v914 = vsel %vm908, %v911, %v913
        %v915 = vsel %vm907, %v894, %v897
        %v916 = vsel %vm910, %v903, 920167782
        %v917 = vsel %vm909, %v900, %v916
        %v918 = vsel %vm908, %v915, %v917
        %v919 = vsel %vm907, %v897, %v900
        %v920 = vsel %vm910, %v906, 1326507024
        %v921 = vsel %vm909, %v903, %v920
        %v922 = vsel %vm908, %v919, %v921
        %v923 = vshll.u32 %v883, 8
        %v924 = vand.u32 %v923, 65535
        %v925 = vshrl.u32 %v923, 16
        %v926 = vand.u32 %v922, 65535
        %v927 = vshrl.u32 %v922, 16
        %v928 = vmul.u32 %v924, %v926
        %v929 = vmul.u32 %v924, %v927
        %v930 = vmul.u32 %v925, %v926
        %v931 = vmul.u32 %v925, %v927
        %v932 = vshll.u32 %v929, 16
        %v933 = vshrl.u32 %v929, 16
        %v934 = vshll.u32 %v930, 16
        %v935 = vshrl.u32 %v930, 16
        %vm936 = vc.u32 %v928, %v932
        %v937 = vsel %vm936, 1, 0
        %v938 = vadd.s32 %v928, %v932
        %v939 = vadd.s32 %v931, %v937
        %vm940 = vc.u32 %v938, %v934
        %v941 = vsel %vm940, 1, 0
        %v942 = vadd.s32 %v938, %v934
        %v943 = vadd.s32 %v939, %v941
        %v944 = vadd.s32 %v943, %v933
        %v945 = vadd.s32 %v944, %v935
        %v946 = vand.u32 %v923, 65535
        %v947 = vshrl.u32 %v923, 16
        %v948 = vand.u32 %v918, 65535
        %v949 = vshrl.u32 %v918, 16
        %v950 = vmul.u32 %v946, %v948
        %v951 = vmul.u32 %v946, %v949
        %v952 = vmul.u32 %v947, %v948
        %v953 = vmul.u32 %v947, %v949
        %v954 = vshll.u32 %v951, 16
        %v955 = vshrl.u32 %v951, 16
        %v956 = vshll.u32 %v952, 16
        %v957 = vshrl.u32 %v952, 16
        %vm958 = vc.u32 %v950, %v954
        %v959 = vsel %vm958, 1, 0
        %v960 = vadd.s32 %v950, %v954
        %v961 = vadd.s32 %v953, %v959
        %vm962 = vc.u32 %v960, %v956
        %v963 = vsel %vm962, 1, 0
        %v964 = vadd.s32 %v960, %v956
        %v965 = vadd.s32 %v961, %v963
        %v966 = vadd.s32 %v965, %v955
        %v967 = vadd.s32 %v966, %v957
        %v968 = vmul.u32 %v923, %v914
        %v969 = vadd.s32 %v945, %v964
        %vm970 = vc.u32 %v945, %v964
        %v971 = vadd.s32 %v967, 1
        %v972 = vsel %vm970, %v971, %v967
        %v973 = vadd.s32 %v968, %v972
        %v974 = vadd.s32 %v973, 536870912
        %v975 = vshrl.u32 %v974, 30
        %v976 = vshll.u32 %v975, 30
        %v977 = vsub.s32 %v973, %v976
        %vm978 = vcmp.lt.s32.totalorder %v977, 0
        %v979 = vsub.s32 0, %v977
        %v980 = vsel %vm978, %v979, %v977
        %v981 = vclz %v980
        %v982 = vsub.s32 %v981, 2
        %vm983 = vcmp.gt.s32.totalorder 0, %v982
        %v984 = vsel %vm983, 0, %v982
        %v985 = vsub.s32 32, %v984
        %v986 = vshll.u32 %v977, %v984
        %v987 = vshrl.u32 %v969, %v985
        %v988 = vor.u32 %v986, %v987
        %v989 = vsub.s32 4294967266, %v984
        %v990 = vadd.s32 %v989, 127
        %v991 = vshll.u32 %v990, 23
        %v992 = vor.u32 4788187, %v991
        %v993 = vand.u32 2147483647, %v992
        %v995 = vcvt.s32.f32 %v988
        %v996 = vmul.f32 %v995, %v993
        %v997 = vxor.u32 %v996, 2147483648
        %v998 = vsel %vm877, %v997, %v996
        %v999 = vsub.s32 4, %v975
        %v1000 = vsel %vm877, %v999, %v975
        %v1001 = vsel %vm876, %v384, %v998
        %v1002 = vsel %vm876, 0, %v1000
        %v1003 = vmul.f32 %v1001, %v1001
        %v1004 = vmul.f32 %v1003, -0.001358992
        %v1005 = vadd.f32 %v1004, 0.041655596
        %v1006 = vmul.f32 %v1003, %v1005
        %v1007 = vadd.f32 %v1006, -0.4999988
        %v1008 = vmul.f32 %v1003, %v1007
        %v1009 = vadd.f32 1.0, %v1008
        %v1010 = vmul.f32 %v1001, %v1001
        %v1011 = vmul.f32 %v1010, -0.00019511016
        %v1012 = vadd.f32 %v1011, 0.008332121
        %v1013 = vmul.f32 %v1010, %v1012
        %v1014 = vadd.f32 %v1013, -0.16666654
        %v1015 = vmul.f32 %v1010, %v1014
        %v1016 = vadd.f32 %v1015, 1.0
        %v1017 = vmul.f32 %v1016, %v1001
        %vm1018 = vweird.f32 %v384
        %v1019 = vand.u32 %v1002, 3
        %vm1020 = vcmp.lt.s32.totalorder %v1019, 2
        %vm1021 = vcmp.eq.s32.totalorder %v1019, 0
        %v1022 = vxor.u32 %v1017, 2147483648
        %v1023 = vsel %vm1021, %v1009, %v1022
        %vm1024 = vcmp.eq.s32.totalorder %v1019, 2
        %v1025 = vxor.u32 %v1009, 2147483648
        %v1026 = vsel %vm1024, %v1025, %v1017
        %v1027 = vsel %vm1020, %v1023, %v1026
        %v1028 = vsel %vm1018, nan, %v1027
        %v1029 = vand.u32 2147483647, %v385
        %vm1030 = vcmp.le.f32.partialorder %v1029, 0.7853982
        %vm1031 = vcmp.lt.s32.totalorder %v385, 0
        %v1032 = vand.u32 %v385, 2139095040
        %v1033 = vshrl.u32 %v1032, 23
        %v1034 = vsub.s32 %v1033, 127
        %v1035 = vand.u32 2147483647, %v385
        %v1036 = vand.u32 %v1035, 8388607
        %v1037 = vor.u32 %v1036, 8388608
        %v1038 = vsub.s32 0, %v1037
        %v1039 = vadd.s32 %v1034, 1
        %vm1040 = vcmp.gt.s32.totalorder %v1039, 0
        %v1041 = vsel %vm1040, %v1039, 0
        %v1042 = vshrl.u32 %v1041, 5
        %v1043 = vand.u32 %v1041, 31
        %v1044 = vsub.s32 32, %v1043
        %v1045 = vshrl.u32 683565275, %v1044
        %v1046 = vshll.u32 683565275, %v1043
        %v1047 = vshrl.u32 2475754826, %v1044
        %v1048 = vor.u32 %v1046, %v1047
        %v1049 = vshll.u32 2475754826, %v1043
        %v1050 = vshrl.u32 2131351028, %v1044
        %v1051 = vor.u32 %v1049, %v1050
        %v1052 = vshll.u32 2131351028, %v1043
        %v1053 = vshrl.u32 2102212464, %v1044
        %v1054 = vor.u32 %v1052, %v1053
        %v1055 = vshll.u32 2102212464, %v1043
        %v1056 = vshrl.u32 920167782, %v1044
        %v1057 = vor.u32 %v1055, %v1056
        %v1058 = vshll.u32 920167782, %v1043
        %v1059 = vshrl.u32 1326507024, %v1044
        %v1060 = vor.u32 %v1058, %v1059
        %vm1061 = vcmp.lt.s32.totalorder %v1042, 1
        %vm1062 = vcmp.lt.s32.totalorder %v1042, 2
        %vm1063 = vcmp.lt.s32.totalorder %v1042, 3
        %vm1064 = vcmp.lt.s32.totalorder %v1042, 4
        %v1065 = vsel %vm1061, %v1045, %v1048
        %v1066 = vsel %vm1064, %v1054, 2102212464
        %v1067 = vsel %vm1063, %v1051, %v1066
        %v1068 = vsel %vm1062, %v1065, %v1067
        %v1069 = vsel %vm1061, %v1048, %v1051
        %v1070 = vsel %vm1064, %v1057, 920167782
        %v1071 = vsel %vm1063, %v1054, %v1070
        %v1072 = vsel %vm1062, %v1069, %v1071
        %v1073 = vsel %vm1061, %v1051, %v1054
        %v1074 = vsel %vm1064, %v1060, 1326507024
        %v1075 = vsel %vm1063, %v1057, %v1074
        %v1076 = vsel %vm1062, %v1073, %v1075
        %v1077 = vshll.u32 %v1037, 8
        %v1078 = vand.u32 %v1077, 65535
        %v1079 = vshrl.u32 %v1077, 16
        %v1080 = vand.u32 %v1076, 65535
        %v1081 = vshrl.u32 %v1076, 16
        %v1082 = vmul.u32 %v1078, %v1080
        %v1083 = vmul.u32 %v1078, %v1081
        %v1084 = vmul.u32 %v1079, %v1080
        %v1085 = vmul.u32 %v1079, %v1081
        %v1086 = vshll.u32 %v1083, 16
        %v1087 = vshrl.u32 %v1083, 16
        %v1088 = vshll.u32 %v1084, 16
        %v1089 = vshrl.u32 %v1084, 16
        %vm1090 = vc.u32 %v1082, %v1086
        %v1091 = vsel %vm1090, 1, 0
        %v1092 = vadd.s32 %v1082, %v1086
        %v1093 = vadd.s32 %v1085, %v1091
        %vm1094 = vc.u32 %v1092, %v1088
        %v1095 = vsel %vm1094, 1, 0
        %v1096 = vadd.s32 %v1092, %v1088
        %v1097 = vadd.s32 %v1093, %v1095
        %v1098 = vadd.s32 %v1097, %v1087
        %v1099 = vadd.s32 %v1098, %v1089
        %v1100 = vand.u32 %v1077, 65535
        %v1101 = vshrl.u32 %v1077, 16
        %v1102 = vand.u32 %v1072, 65535
        %v1103 = vshrl.u32 %v1072, 16
        %v1104 = vmul.u32 %v1100, %v1102
        %v1105 = vmul.u32 %v1100, %v1103
        %v1106 = vmul.u32 %v1101, %v1102
        %v1107 = vmul.u32 %v1101, %v1103
        %v1108 = vshll.u32 %v1105, 16
        %v1109 = vshrl.u32 %v1105, 16
        %v1110 = vshll.u32 %v1106, 16
        %v1111 = vshrl.u32 %v1106, 16
        %vm1112 = vc.u32 %v1104, %v1108
        %v1113 = vsel %vm1112, 1, 0
        %v1114 = vadd.s32 %v1104, %v1108
        %v1115 = vadd.s32 %v1107, %v1113
        %vm1116 = vc.u32 %v1114, %v1110
        %v1117 = vsel %vm1116, 1, 0
        %v1118 = vadd.s32 %v1114, %v1110
        %v1119 = vadd.s32 %v1115, %v1117
        %v1120 = vadd.s32 %v1119, %v1109
        %v1121 = vadd.s32 %v1120, %v1111
        %v1122 = vmul.u32 %v1077, %v1068
        %v1123 = vadd.s32 %v1099, %v1118
        %vm1124 = vc.u32 %v1099, %v1118
        %v1125 = vadd.s32 %v1121, 1
        %v1126 = vsel %vm1124, %v1125, %v1121
        %v1127 = vadd.s32 %v1122, %v1126
        %v1128 = vadd.s32 %v1127, 536870912
        %v1129 = vshrl.u32 %v1128, 30
        %v1130 = vshll.u32 %v1129, 30
        %v1131 = vsub.s32 %v1127, %v1130
        %vm1132 = vcmp.lt.s32.totalorder %v1131, 0
        %v1133 = vsub.s32 0, %v1131
        %v1134 = vsel %vm1132, %v1133, %v1131
        %v1135 = vclz %v1134
        %v1136 = vsub.s32 %v1135, 2
        %vm1137 = vcmp.gt.s32.totalorder 0, %v1136
        %v1138 = vsel %vm1137, 0, %v1136
        %v1139 = vsub.s32 32, %v1138
        %v1140 = vshll.u32 %v1131, %v1138
        %v1141 = vshrl.u32 %v1123, %v1139
        %v1142 = vor.u32 %v1140, %v1141
        %v1143 = vsub.s32 4294967266, %v1138
        %v1144 = vadd.s32 %v1143, 127
        %v1145 = vshll.u32 %v1144, 23
        %v1146 = vor.u32 4788187, %v1145
        %v1147 = vand.u32 2147483647, %v1146
        %v1149 = vcvt.s32.f32 %v1142
        %v1150 = vmul.f32 %v1149, %v1147
        %v1151 = vxor.u32 %v1150, 2147483648
        %v1152 = vsel %vm1031, %v1151, %v1150
        %v1153 = vsub.s32 4, %v1129
        %v1154 = vsel %vm1031, %v1153, %v1129
        %v1155 = vsel %vm1030, %v385, %v1152
        %v1156 = vsel %vm1030, 0, %v1154
        %v1157 = vmul.f32 %v1155, %v1155
        %v1158 = vmul.f32 %v1157, -0.001358992
        %v1159 = vadd.f32 %v1158, 0.041655596
        %v1160 = vmul.f32 %v1157, %v1159
        %v1161 = vadd.f32 %v1160, -0.4999988
        %v1162 = vmul.f32 %v1157, %v1161
        %v1163 = vadd.f32 1.0, %v1162
        %v1164 = vmul.f32 %v1155, %v1155
        %v1165 = vmul.f32 %v1164, -0.00019511016
        %v1166 = vadd.f32 %v1165, 0.008332121
        %v1167 = vmul.f32 %v1164, %v1166
        %v1168 = vadd.f32 %v1167, -0.16666654
        %v1169 = vmul.f32 %v1164, %v1168
        %v1170 = vadd.f32 %v1169, 1.0
        %v1171 = vmul.f32 %v1170, %v1155
        %vm1172 = vweird.f32 %v385
        %v1173 = vand.u32 %v1156, 3
        %vm1174 = vcmp.lt.s32.totalorder %v1173, 2
        %vm1175 = vcmp.eq.s32.totalorder %v1173, 0
        %v1176 = vxor.u32 %v1171, 2147483648
        %v1177 = vsel %vm1175, %v1163, %v1176
        %vm1178 = vcmp.eq.s32.totalorder %v1173, 2
        %v1179 = vxor.u32 %v1163, 2147483648
        %v1180 = vsel %vm1178, %v1179, %v1171
        %v1181 = vsel %vm1174, %v1177, %v1180
        %v1182 = vsel %vm1172, nan, %v1181
        %v1183 = vand.u32 2147483647, %v386
        %vm1184 = vcmp.le.f32.partialorder %v1183, 0.7853982
        %vm1185 = vcmp.lt.s32.totalorder %v386, 0
        %v1186 = vand.u32 %v386, 2139095040
        %v1187 = vshrl.u32 %v1186, 23
        %v1188 = vsub.s32 %v1187, 127
        %v1189 = vand.u32 2147483647, %v386
        %v1190 = vand.u32 %v1189, 8388607
        %v1191 = vor.u32 %v1190, 8388608
        %v1192 = vsub.s32 0, %v1191
        %v1193 = vadd.s32 %v1188, 1
        %vm1194 = vcmp.gt.s32.totalorder %v1193, 0
        %v1195 = vsel %vm1194, %v1193, 0
        %v1196 = vshrl.u32 %v1195, 5
        %v1197 = vand.u32 %v1195, 31
        %v1198 = vsub.s32 32, %v1197
        %v1199 = vshrl.u32 683565275, %v1198
        %v1200 = vshll.u32 683565275, %v1197
        %v1201 = vshrl.u32 2475754826, %v1198
        %v1202 = vor.u32 %v1200, %v1201
        %v1203 = vshll.u32 2475754826, %v1197
        %v1204 = vshrl.u32 2131351028, %v1198
        %v1205 = vor.u32 %v1203, %v1204
        %v1206 = vshll.u32 2131351028, %v1197
        %v1207 = vshrl.u32 2102212464, %v1198
        %v1208 = vor.u32 %v1206, %v1207
        %v1209 = vshll.u32 2102212464, %v1197
        %v1210 = vshrl.u32 920167782, %v1198
        %v1211 = vor.u32 %v1209, %v1210
        %v1212 = vshll.u32 920167782, %v1197
        %v1213 = vshrl.u32 1326507024, %v1198
        %v1214 = vor.u32 %v1212, %v1213
        %vm1215 = vcmp.lt.s32.totalorder %v1196, 1
        %vm1216 = vcmp.lt.s32.totalorder %v1196, 2
        %vm1217 = vcmp.lt.s32.totalorder %v1196, 3
        %vm1218 = vcmp.lt.s32.totalorder %v1196, 4
        %v1219 = vsel %vm1215, %v1199, %v1202
        %v1220 = vsel %vm1218, %v1208, 2102212464
        %v1221 = vsel %vm1217, %v1205, %v1220
        %v1222 = vsel %vm1216, %v1219, %v1221
        %v1223 = vsel %vm1215, %v1202, %v1205
        %v1224 = vsel %vm1218, %v1211, 920167782
        %v1225 = vsel %vm1217, %v1208, %v1224
        %v1226 = vsel %vm1216, %v1223, %v1225
        %v1227 = vsel %vm1215, %v1205, %v1208
        %v1228 = vsel %vm1218, %v1214, 1326507024
        %v1229 = vsel %vm1217, %v1211, %v1228
        %v1230 = vsel %vm1216, %v1227, %v1229
        %v1231 = vshll.u32 %v1191, 8
        %v1232 = vand.u32 %v1231, 65535
        %v1233 = vshrl.u32 %v1231, 16
        %v1234 = vand.u32 %v1230, 65535
        %v1235 = vshrl.u32 %v1230, 16
        %v1236 = vmul.u32 %v1232, %v1234
        %v1237 = vmul.u32 %v1232, %v1235
        %v1238 = vmul.u32 %v1233, %v1234
        %v1239 = vmul.u32 %v1233, %v1235
        %v1240 = vshll.u32 %v1237, 16
        %v1241 = vshrl.u32 %v1237, 16
        %v1242 = vshll.u32 %v1238, 16
        %v1243 = vshrl.u32 %v1238, 16
        %vm1244 = vc.u32 %v1236, %v1240
        %v1245 = vsel %vm1244, 1, 0
        %v1246 = vadd.s32 %v1236, %v1240
        %v1247 = vadd.s32 %v1239, %v1245
        %vm1248 = vc.u32 %v1246, %v1242
        %v1249 = vsel %vm1248, 1, 0
        %v1250 = vadd.s32 %v1246, %v1242
        %v1251 = vadd.s32 %v1247, %v1249
        %v1252 = vadd.s32 %v1251, %v1241
        %v1253 = vadd.s32 %v1252, %v1243
        %v1254 = vand.u32 %v1231, 65535
        %v1255 = vshrl.u32 %v1231, 16
        %v1256 = vand.u32 %v1226, 65535
        %v1257 = vshrl.u32 %v1226, 16
        %v1258 = vmul.u32 %v1254, %v1256
        %v1259 = vmul.u32 %v1254, %v1257
        %v1260 = vmul.u32 %v1255, %v1256
        %v1261 = vmul.u32 %v1255, %v1257
        %v1262 = vshll.u32 %v1259, 16
        %v1263 = vshrl.u32 %v1259, 16
        %v1264 = vshll.u32 %v1260, 16
        %v1265 = vshrl.u32 %v1260, 16
        %vm1266 = vc.u32 %v1258, %v1262
        %v1267 = vsel %vm1266, 1, 0
        %v1268 = vadd.s32 %v1258, %v1262
        %v1269 = vadd.s32 %v1261, %v1267
        %vm1270 = vc.u32 %v1268, %v1264
        %v1271 = vsel %vm1270, 1, 0
        %v1272 = vadd.s32 %v1268, %v1264
        %v1273 = vadd.s32 %v1269, %v1271
        %v1274 = vadd.s32 %v1273, %v1263
        %v1275 = vadd.s32 %v1274, %v1265
        %v1276 = vmul.u32 %v1231, %v1222
        %v1277 = vadd.s32 %v1253, %v1272
        %vm1278 = vc.u32 %v1253, %v1272
        %v1279 = vadd.s32 %v1275, 1
        %v1280 = vsel %vm1278, %v1279, %v1275
        %v1281 = vadd.s32 %v1276, %v1280
        %v1282 = vadd.s32 %v1281, 536870912
        %v1283 = vshrl.u32 %v1282, 30
        %v1284 = vshll.u32 %v1283, 30
        %v1285 = vsub.s32 %v1281, %v1284
        %vm1286 = vcmp.lt.s32.totalorder %v1285, 0
        %v1287 = vsub.s32 0, %v1285
        %v1288 = vsel %vm1286, %v1287, %v1285
        %v1289 = vclz %v1288
        %v1290 = vsub.s32 %v1289, 2
        %vm1291 = vcmp.gt.s32.totalorder 0, %v1290
        %v1292 = vsel %vm1291, 0, %v1290
        %v1293 = vsub.s32 32, %v1292
        %v1294 = vshll.u32 %v1285, %v1292
        %v1295 = vshrl.u32 %v1277, %v1293
        %v1296 = vor.u32 %v1294, %v1295
        %v1297 = vsub.s32 4294967266, %v1292
        %v1298 = vadd.s32 %v1297, 127
        %v1299 = vshll.u32 %v1298, 23
        %v1300 = vor.u32 4788187, %v1299
        %v1301 = vand.u32 2147483647, %v1300
        %v1303 = vcvt.s32.f32 %v1296
        %v1304 = vmul.f32 %v1303, %v1301
        %v1305 = vxor.u32 %v1304, 2147483648
        %v1306 = vsel %vm1185, %v1305, %v1304
        %v1307 = vsub.s32 4, %v1283
        %v1308 = vsel %vm1185, %v1307, %v1283
        %v1309 = vsel %vm1184, %v386, %v1306
        %v1310 = vsel %vm1184, 0, %v1308
        %v1311 = vmul.f32 %v1309, %v1309
        %v1312 = vmul.f32 %v1311, -0.001358992
        %v1313 = vadd.f32 %v1312, 0.041655596
        %v1314 = vmul.f32 %v1311, %v1313
        %v1315 = vadd.f32 %v1314, -0.4999988
        %v1316 = vmul.f32 %v1311, %v1315
        %v1317 = vadd.f32 1.0, %v1316
        %v1318 = vmul.f32 %v1309, %v1309
        %v1319 = vmul.f32 %v1318, -0.00019511016
        %v1320 = vadd.f32 %v1319, 0.008332121
        %v1321 = vmul.f32 %v1318, %v1320
        %v1322 = vadd.f32 %v1321, -0.16666654
        %v1323 = vmul.f32 %v1318, %v1322
        %v1324 = vadd.f32 %v1323, 1.0
        %v1325 = vmul.f32 %v1324, %v1309
        %vm1326 = vweird.f32 %v386
        %v1327 = vand.u32 %v1310, 3
        %vm1328 = vcmp.lt.s32.totalorder %v1327, 2
        %vm1329 = vcmp.eq.s32.totalorder %v1327, 0
        %v1330 = vxor.u32 %v1325, 2147483648
        %v1331 = vsel %vm1329, %v1317, %v1330
        %vm1332 = vcmp.eq.s32.totalorder %v1327, 2
        %v1333 = vxor.u32 %v1317, 2147483648
        %v1334 = vsel %vm1332, %v1333, %v1325
        %v1335 = vsel %vm1328, %v1331, %v1334
        %v1336 = vsel %vm1326, nan, %v1335
        %v1337 = vand.u32 2147483647, %v387
        %vm1338 = vcmp.le.f32.partialorder %v1337, 0.7853982
        %vm1339 = vcmp.lt.s32.totalorder %v387, 0
        %v1340 = vand.u32 %v387, 2139095040
        %v1341 = vshrl.u32 %v1340, 23
        %v1342 = vsub.s32 %v1341, 127
        %v1343 = vand.u32 2147483647, %v387
        %v1344 = vand.u32 %v1343, 8388607
        %v1345 = vor.u32 %v1344, 8388608
        %v1346 = vsub.s32 0, %v1345
        %v1347 = vadd.s32 %v1342, 1
        %vm1348 = vcmp.gt.s32.totalorder %v1347, 0
        %v1349 = vsel %vm1348, %v1347, 0
        %v1350 = vshrl.u32 %v1349, 5
        %v1351 = vand.u32 %v1349, 31
        %v1352 = vsub.s32 32, %v1351
        %v1353 = vshrl.u32 683565275, %v1352
        %v1354 = vshll.u32 683565275, %v1351
        %v1355 = vshrl.u32 2475754826, %v1352
        %v1356 = vor.u32 %v1354, %v1355
        %v1357 = vshll.u32 2475754826, %v1351
        %v1358 = vshrl.u32 2131351028, %v1352
        %v1359 = vor.u32 %v1357, %v1358
        %v1360 = vshll.u32 2131351028, %v1351
        %v1361 = vshrl.u32 2102212464, %v1352
        %v1362 = vor.u32 %v1360, %v1361
        %v1363 = vshll.u32 2102212464, %v1351
        %v1364 = vshrl.u32 920167782, %v1352
        %v1365 = vor.u32 %v1363, %v1364
        %v1366 = vshll.u32 920167782, %v1351
        %v1367 = vshrl.u32 1326507024, %v1352
        %v1368 = vor.u32 %v1366, %v1367
        %vm1369 = vcmp.lt.s32.totalorder %v1350, 1
        %vm1370 = vcmp.lt.s32.totalorder %v1350, 2
        %vm1371 = vcmp.lt.s32.totalorder %v1350, 3
        %vm1372 = vcmp.lt.s32.totalorder %v1350, 4
        %v1373 = vsel %vm1369, %v1353, %v1356
        %v1374 = vsel %vm1372, %v1362, 2102212464
        %v1375 = vsel %vm1371, %v1359, %v1374
        %v1376 = vsel %vm1370, %v1373, %v1375
        %v1377 = vsel %vm1369, %v1356, %v1359
        %v1378 = vsel %vm1372, %v1365, 920167782
        %v1379 = vsel %vm1371, %v1362, %v1378
        %v1380 = vsel %vm1370, %v1377, %v1379
        %v1381 = vsel %vm1369, %v1359, %v1362
        %v1382 = vsel %vm1372, %v1368, 1326507024
        %v1383 = vsel %vm1371, %v1365, %v1382
        %v1384 = vsel %vm1370, %v1381, %v1383
        %v1385 = vshll.u32 %v1345, 8
        %v1386 = vand.u32 %v1385, 65535
        %v1387 = vshrl.u32 %v1385, 16
        %v1388 = vand.u32 %v1384, 65535
        %v1389 = vshrl.u32 %v1384, 16
        %v1390 = vmul.u32 %v1386, %v1388
        %v1391 = vmul.u32 %v1386, %v1389
        %v1392 = vmul.u32 %v1387, %v1388
        %v1393 = vmul.u32 %v1387, %v1389
        %v1394 = vshll.u32 %v1391, 16
        %v1395 = vshrl.u32 %v1391, 16
        %v1396 = vshll.u32 %v1392, 16
        %v1397 = vshrl.u32 %v1392, 16
        %vm1398 = vc.u32 %v1390, %v1394
        %v1399 = vsel %vm1398, 1, 0
        %v1400 = vadd.s32 %v1390, %v1394
        %v1401 = vadd.s32 %v1393, %v1399
        %vm1402 = vc.u32 %v1400, %v1396
        %v1403 = vsel %vm1402, 1, 0
        %v1404 = vadd.s32 %v1400, %v1396
        %v1405 = vadd.s32 %v1401, %v1403
        %v1406 = vadd.s32 %v1405, %v1395
        %v1407 = vadd.s32 %v1406, %v1397
        %v1408 = vand.u32 %v1385, 65535
        %v1409 = vshrl.u32 %v1385, 16
        %v1410 = vand.u32 %v1380, 65535
        %v1411 = vshrl.u32 %v1380, 16
        %v1412 = vmul.u32 %v1408, %v1410
        %v1413 = vmul.u32 %v1408, %v1411
        %v1414 = vmul.u32 %v1409, %v1410
        %v1415 = vmul.u32 %v1409, %v1411
        %v1416 = vshll.u32 %v1413, 16
        %v1417 = vshrl.u32 %v1413, 16
        %v1418 = vshll.u32 %v1414, 16
        %v1419 = vshrl.u32 %v1414, 16
        %vm1420 = vc.u32 %v1412, %v1416
        %v1421 = vsel %vm1420, 1, 0
        %v1422 = vadd.s32 %v1412, %v1416
        %v1423 = vadd.s32 %v1415, %v1421
        %vm1424 = vc.u32 %v1422, %v1418
        %v1425 = vsel %vm1424, 1, 0
        %v1426 = vadd.s32 %v1422, %v1418
        %v1427 = vadd.s32 %v1423, %v1425
        %v1428 = vadd.s32 %v1427, %v1417
        %v1429 = vadd.s32 %v1428, %v1419
        %v1430 = vmul.u32 %v1385, %v1376
        %v1431 = vadd.s32 %v1407, %v1426
        %vm1432 = vc.u32 %v1407, %v1426
        %v1433 = vadd.s32 %v1429, 1
        %v1434 = vsel %vm1432, %v1433, %v1429
        %v1435 = vadd.s32 %v1430, %v1434
        %v1436 = vadd.s32 %v1435, 536870912
        %v1437 = vshrl.u32 %v1436, 30
        %v1438 = vshll.u32 %v1437, 30
        %v1439 = vsub.s32 %v1435, %v1438
        %vm1440 = vcmp.lt.s32.totalorder %v1439, 0
        %v1441 = vsub.s32 0, %v1439
        %v1442 = vsel %vm1440, %v1441, %v1439
        %v1443 = vclz %v1442
        %v1444 = vsub.s32 %v1443, 2
        %vm1445 = vcmp.gt.s32.totalorder 0, %v1444
        %v1446 = vsel %vm1445, 0, %v1444
        %v1447 = vsub.s32 32, %v1446
        %v1448 = vshll.u32 %v1439, %v1446
        %v1449 = vshrl.u32 %v1431, %v1447
        %v1450 = vor.u32 %v1448, %v1449
        %v1451 = vsub.s32 4294967266, %v1446
        %v1452 = vadd.s32 %v1451, 127
        %v1453 = vshll.u32 %v1452, 23
        %v1454 = vor.u32 4788187, %v1453
        %v1455 = vand.u32 2147483647, %v1454
        %v1457 = vcvt.s32.f32 %v1450
        %v1458 = vmul.f32 %v1457, %v1455
        %v1459 = vxor.u32 %v1458, 2147483648
        %v1460 = vsel %vm1339, %v1459, %v1458
        %v1461 = vsub.s32 4, %v1437
        %v1462 = vsel %vm1339, %v1461, %v1437
        %v1463 = vsel %vm1338, %v387, %v1460
        %v1464 = vsel %vm1338, 0, %v1462
        %v1465 = vmul.f32 %v1463, %v1463
        %v1466 = vmul.f32 %v1465, -0.001358992
        %v1467 = vadd.f32 %v1466, 0.041655596
        %v1468 = vmul.f32 %v1465, %v1467
        %v1469 = vadd.f32 %v1468, -0.4999988
        %v1470 = vmul.f32 %v1465, %v1469
        %v1471 = vadd.f32 1.0, %v1470
        %v1472 = vmul.f32 %v1463, %v1463
        %v1473 = vmul.f32 %v1472, -0.00019511016
        %v1474 = vadd.f32 %v1473, 0.008332121
        %v1475 = vmul.f32 %v1472, %v1474
        %v1476 = vadd.f32 %v1475, -0.16666654
        %v1477 = vmul.f32 %v1472, %v1476
        %v1478 = vadd.f32 %v1477, 1.0
        %v1479 = vmul.f32 %v1478, %v1463
        %vm1480 = vweird.f32 %v387
        %v1481 = vand.u32 %v1464, 3
        %vm1482 = vcmp.lt.s32.totalorder %v1481, 2
        %vm1483 = vcmp.eq.s32.totalorder %v1481, 0
        %v1484 = vxor.u32 %v1479, 2147483648
        %v1485 = vsel %vm1483, %v1471, %v1484
        %vm1486 = vcmp.eq.s32.totalorder %v1481, 2
        %v1487 = vxor.u32 %v1471, 2147483648
        %v1488 = vsel %vm1486, %v1487, %v1479
        %v1489 = vsel %vm1482, %v1485, %v1488
        %v1490 = vsel %vm1480, nan, %v1489
        %v1491 = vand.u32 2147483647, %v388
        %vm1492 = vcmp.le.f32.partialorder %v1491, 0.7853982
        %vm1493 = vcmp.lt.s32.totalorder %v388, 0
        %v1494 = vand.u32 %v388, 2139095040
        %v1495 = vshrl.u32 %v1494, 23
        %v1496 = vsub.s32 %v1495, 127
        %v1497 = vand.u32 2147483647, %v388
        %v1498 = vand.u32 %v1497, 8388607
        %v1499 = vor.u32 %v1498, 8388608
        %v1500 = vsub.s32 0, %v1499
        %v1501 = vadd.s32 %v1496, 1
        %vm1502 = vcmp.gt.s32.totalorder %v1501, 0
        %v1503 = vsel %vm1502, %v1501, 0
        %v1504 = vshrl.u32 %v1503, 5
        %v1505 = vand.u32 %v1503, 31
        %v1506 = vsub.s32 32, %v1505
        %v1507 = vshrl.u32 683565275, %v1506
        %v1508 = vshll.u32 683565275, %v1505
        %v1509 = vshrl.u32 2475754826, %v1506
        %v1510 = vor.u32 %v1508, %v1509
        %v1511 = vshll.u32 2475754826, %v1505
        %v1512 = vshrl.u32 2131351028, %v1506
        %v1513 = vor.u32 %v1511, %v1512
        %v1514 = vshll.u32 2131351028, %v1505
        %v1515 = vshrl.u32 2102212464, %v1506
        %v1516 = vor.u32 %v1514, %v1515
        %v1517 = vshll.u32 2102212464, %v1505
        %v1518 = vshrl.u32 920167782, %v1506
        %v1519 = vor.u32 %v1517, %v1518
        %v1520 = vshll.u32 920167782, %v1505
        %v1521 = vshrl.u32 1326507024, %v1506
        %v1522 = vor.u32 %v1520, %v1521
        %vm1523 = vcmp.lt.s32.totalorder %v1504, 1
        %vm1524 = vcmp.lt.s32.totalorder %v1504, 2
        %vm1525 = vcmp.lt.s32.totalorder %v1504, 3
        %vm1526 = vcmp.lt.s32.totalorder %v1504, 4
        %v1527 = vsel %vm1523, %v1507, %v1510
        %v1528 = vsel %vm1526, %v1516, 2102212464
        %v1529 = vsel %vm1525, %v1513, %v1528
        %v1530 = vsel %vm1524, %v1527, %v1529
        %v1531 = vsel %vm1523, %v1510, %v1513
        %v1532 = vsel %vm1526, %v1519, 920167782
        %v1533 = vsel %vm1525, %v1516, %v1532
        %v1534 = vsel %vm1524, %v1531, %v1533
        %v1535 = vsel %vm1523, %v1513, %v1516
        %v1536 = vsel %vm1526, %v1522, 1326507024
        %v1537 = vsel %vm1525, %v1519, %v1536
        %v1538 = vsel %vm1524, %v1535, %v1537
        %v1539 = vshll.u32 %v1499, 8
        %v1540 = vand.u32 %v1539, 65535
        %v1541 = vshrl.u32 %v1539, 16
        %v1542 = vand.u32 %v1538, 65535
        %v1543 = vshrl.u32 %v1538, 16
        %v1544 = vmul.u32 %v1540, %v1542
        %v1545 = vmul.u32 %v1540, %v1543
        %v1546 = vmul.u32 %v1541, %v1542
        %v1547 = vmul.u32 %v1541, %v1543
        %v1548 = vshll.u32 %v1545, 16
        %v1549 = vshrl.u32 %v1545, 16
        %v1550 = vshll.u32 %v1546, 16
        %v1551 = vshrl.u32 %v1546, 16
        %vm1552 = vc.u32 %v1544, %v1548
        %v1553 = vsel %vm1552, 1, 0
        %v1554 = vadd.s32 %v1544, %v1548
        %v1555 = vadd.s32 %v1547, %v1553
        %vm1556 = vc.u32 %v1554, %v1550
        %v1557 = vsel %vm1556, 1, 0
        %v1558 = vadd.s32 %v1554, %v1550
        %v1559 = vadd.s32 %v1555, %v1557
        %v1560 = vadd.s32 %v1559, %v1549
        %v1561 = vadd.s32 %v1560, %v1551
        %v1562 = vand.u32 %v1539, 65535
        %v1563 = vshrl.u32 %v1539, 16
        %v1564 = vand.u32 %v1534, 65535
        %v1565 = vshrl.u32 %v1534, 16
        %v1566 = vmul.u32 %v1562, %v1564
        %v1567 = vmul.u32 %v1562, %v1565
        %v1568 = vmul.u32 %v1563, %v1564
        %v1569 = vmul.u32 %v1563, %v1565
        %v1570 = vshll.u32 %v1567, 16
        %v1571 = vshrl.u32 %v1567, 16
        %v1572 = vshll.u32 %v1568, 16
        %v1573 = vshrl.u32 %v1568, 16
        %vm1574 = vc.u32 %v1566, %v1570
        %v1575 = vsel %vm1574, 1, 0
        %v1576 = vadd.s32 %v1566, %v1570
        %v1577 = vadd.s32 %v1569, %v1575
        %vm1578 = vc.u32 %v1576, %v1572
        %v1579 = vsel %vm1578, 1, 0
        %v1580 = vadd.s32 %v1576, %v1572
        %v1581 = vadd.s32 %v1577, %v1579
        %v1582 = vadd.s32 %v1581, %v1571
        %v1583 = vadd.s32 %v1582, %v1573
        %v1584 = vmul.u32 %v1539, %v1530
        %v1585 = vadd.s32 %v1561, %v1580
        %vm1586 = vc.u32 %v1561, %v1580
        %v1587 = vadd.s32 %v1583, 1
        %v1588 = vsel %vm1586, %v1587, %v1583
        %v1589 = vadd.s32 %v1584, %v1588
        %v1590 = vadd.s32 %v1589, 536870912
        %v1591 = vshrl.u32 %v1590, 30
        %v1592 = vshll.u32 %v1591, 30
        %v1593 = vsub.s32 %v1589, %v1592
        %vm1594 = vcmp.lt.s32.totalorder %v1593, 0
        %v1595 = vsub.s32 0, %v1593
        %v1596 = vsel %vm1594, %v1595, %v1593
        %v1597 = vclz %v1596
        %v1598 = vsub.s32 %v1597, 2
        %vm1599 = vcmp.gt.s32.totalorder 0, %v1598
        %v1600 = vsel %vm1599, 0, %v1598
        %v1601 = vsub.s32 32, %v1600
        %v1602 = vshll.u32 %v1593, %v1600
        %v1603 = vshrl.u32 %v1585, %v1601
        %v1604 = vor.u32 %v1602, %v1603
        %v1605 = vsub.s32 4294967266, %v1600
        %v1606 = vadd.s32 %v1605, 127
        %v1607 = vshll.u32 %v1606, 23
        %v1608 = vor.u32 4788187, %v1607
        %v1609 = vand.u32 2147483647, %v1608
        %v1611 = vcvt.s32.f32 %v1604
        %v1612 = vmul.f32 %v1611, %v1609
        %v1613 = vxor.u32 %v1612, 2147483648
        %v1614 = vsel %vm1493, %v1613, %v1612
        %v1615 = vsub.s32 4, %v1591
        %v1616 = vsel %vm1493, %v1615, %v1591
        %v1617 = vsel %vm1492, %v388, %v1614
        %v1618 = vsel %vm1492, 0, %v1616
        %v1619 = vmul.f32 %v1617, %v1617
        %v1620 = vmul.f32 %v1619, -0.001358992
        %v1621 = vadd.f32 %v1620, 0.041655596
        %v1622 = vmul.f32 %v1619, %v1621
        %v1623 = vadd.f32 %v1622, -0.4999988
        %v1624 = vmul.f32 %v1619, %v1623
        %v1625 = vadd.f32 1.0, %v1624
        %v1626 = vmul.f32 %v1617, %v1617
        %v1627 = vmul.f32 %v1626, -0.00019511016
        %v1628 = vadd.f32 %v1627, 0.008332121
        %v1629 = vmul.f32 %v1626, %v1628
        %v1630 = vadd.f32 %v1629, -0.16666654
        %v1631 = vmul.f32 %v1626, %v1630
        %v1632 = vadd.f32 %v1631, 1.0
        %v1633 = vmul.f32 %v1632, %v1617
        %vm1634 = vweird.f32 %v388
        %v1635 = vand.u32 %v1618, 3
        %vm1636 = vcmp.lt.s32.totalorder %v1635, 2
        %vm1637 = vcmp.eq.s32.totalorder %v1635, 0
        %v1638 = vxor.u32 %v1633, 2147483648
        %v1639 = vsel %vm1637, %v1625, %v1638
        %vm1640 = vcmp.eq.s32.totalorder %v1635, 2
        %v1641 = vxor.u32 %v1625, 2147483648
        %v1642 = vsel %vm1640, %v1641, %v1633
        %v1643 = vsel %vm1636, %v1639, %v1642
        %v1644 = vsel %vm1634, nan, %v1643
        %v1645 = vand.u32 2147483647, %v381
        %vm1646 = vcmp.le.f32.partialorder %v1645, 0.7853982
        %vm1647 = vcmp.lt.s32.totalorder %v381, 0
        %v1648 = vand.u32 %v381, 2139095040
        %v1649 = vshrl.u32 %v1648, 23
        %v1650 = vsub.s32 %v1649, 127
        %v1651 = vand.u32 2147483647, %v381
        %v1652 = vand.u32 %v1651, 8388607
        %v1653 = vor.u32 %v1652, 8388608
        %v1654 = vsub.s32 0, %v1653
        %v1655 = vadd.s32 %v1650, 1
        %vm1656 = vcmp.gt.s32.totalorder %v1655, 0
        %v1657 = vsel %vm1656, %v1655, 0
        %v1658 = vshrl.u32 %v1657, 5
        %v1659 = vand.u32 %v1657, 31
        %v1660 = vsub.s32 32, %v1659
        %v1661 = vshrl.u32 683565275, %v1660
        %v1662 = vshll.u32 683565275, %v1659
        %v1663 = vshrl.u32 2475754826, %v1660
        %v1664 = vor.u32 %v1662, %v1663
        %v1665 = vshll.u32 2475754826, %v1659
        %v1666 = vshrl.u32 2131351028, %v1660
        %v1667 = vor.u32 %v1665, %v1666
        %v1668 = vshll.u32 2131351028, %v1659
        %v1669 = vshrl.u32 2102212464, %v1660
        %v1670 = vor.u32 %v1668, %v1669
        %v1671 = vshll.u32 2102212464, %v1659
        %v1672 = vshrl.u32 920167782, %v1660
        %v1673 = vor.u32 %v1671, %v1672
        %v1674 = vshll.u32 920167782, %v1659
        %v1675 = vshrl.u32 1326507024, %v1660
        %v1676 = vor.u32 %v1674, %v1675
        %vm1677 = vcmp.lt.s32.totalorder %v1658, 1
        %vm1678 = vcmp.lt.s32.totalorder %v1658, 2
        %vm1679 = vcmp.lt.s32.totalorder %v1658, 3
        %vm1680 = vcmp.lt.s32.totalorder %v1658, 4
        %v1681 = vsel %vm1677, %v1661, %v1664
        %v1682 = vsel %vm1680, %v1670, 2102212464
        %v1683 = vsel %vm1679, %v1667, %v1682
        %v1684 = vsel %vm1678, %v1681, %v1683
        %v1685 = vsel %vm1677, %v1664, %v1667
        %v1686 = vsel %vm1680, %v1673, 920167782
        %v1687 = vsel %vm1679, %v1670, %v1686
        %v1688 = vsel %vm1678, %v1685, %v1687
        %v1689 = vsel %vm1677, %v1667, %v1670
        %v1690 = vsel %vm1680, %v1676, 1326507024
        %v1691 = vsel %vm1679, %v1673, %v1690
        %v1692 = vsel %vm1678, %v1689, %v1691
        %v1693 = vshll.u32 %v1653, 8
        %v1694 = vand.u32 %v1693, 65535
        %v1695 = vshrl.u32 %v1693, 16
        %v1696 = vand.u32 %v1692, 65535
        %v1697 = vshrl.u32 %v1692, 16
        %v1698 = vmul.u32 %v1694, %v1696
        %v1699 = vmul.u32 %v1694, %v1697
        %v1700 = vmul.u32 %v1695, %v1696
        %v1701 = vmul.u32 %v1695, %v1697
        %v1702 = vshll.u32 %v1699, 16
        %v1703 = vshrl.u32 %v1699, 16
        %v1704 = vshll.u32 %v1700, 16
        %v1705 = vshrl.u32 %v1700, 16
        %vm1706 = vc.u32 %v1698, %v1702
        %v1707 = vsel %vm1706, 1, 0
        %v1708 = vadd.s32 %v1698, %v1702
        %v1709 = vadd.s32 %v1701, %v1707
        %vm1710 = vc.u32 %v1708, %v1704
        %v1711 = vsel %vm1710, 1, 0
        %v1712 = vadd.s32 %v1708, %v1704
        %v1713 = vadd.s32 %v1709, %v1711
        %v1714 = vadd.s32 %v1713, %v1703
        %v1715 = vadd.s32 %v1714, %v1705
        %v1716 = vand.u32 %v1693, 65535
        %v1717 = vshrl.u32 %v1693, 16
        %v1718 = vand.u32 %v1688, 65535
        %v1719 = vshrl.u32 %v1688, 16
        %v1720 = vmul.u32 %v1716, %v1718
        %v1721 = vmul.u32 %v1716, %v1719
        %v1722 = vmul.u32 %v1717, %v1718
        %v1723 = vmul.u32 %v1717, %v1719
        %v1724 = vshll.u32 %v1721, 16
        %v1725 = vshrl.u32 %v1721, 16
        %v1726 = vshll.u32 %v1722, 16
        %v1727 = vshrl.u32 %v1722, 16
        %vm1728 = vc.u32 %v1720, %v1724
        %v1729 = vsel %vm1728, 1, 0
        %v1730 = vadd.s32 %v1720, %v1724
        %v1731 = vadd.s32 %v1723, %v1729
        %vm1732 = vc.u32 %v1730, %v1726
        %v1733 = vsel %vm1732, 1, 0
        %v1734 = vadd.s32 %v1730, %v1726
        %v1735 = vadd.s32 %v1731, %v1733
        %v1736 = vadd.s32 %v1735, %v1725
        %v1737 = vadd.s32 %v1736, %v1727
        %v1738 = vmul.u32 %v1693, %v1684
        %v1739 = vadd.s32 %v1715, %v1734
        %vm1740 = vc.u32 %v1715, %v1734
        %v1741 = vadd.s32 %v1737, 1
        %v1742 = vsel %vm1740, %v1741, %v1737
        %v1743 = vadd.s32 %v1738, %v1742
        %v1744 = vadd.s32 %v1743, 536870912
        %v1745 = vshrl.u32 %v1744, 30
        %v1746 = vshll.u32 %v1745, 30
        %v1747 = vsub.s32 %v1743, %v1746
        %vm1748 = vcmp.lt.s32.totalorder %v1747, 0
        %v1749 = vsub.s32 0, %v1747
        %v1750 = vsel %vm1748, %v1749, %v1747
        %v1751 = vclz %v1750
        %v1752 = vsub.s32 %v1751, 2
        %vm1753 = vcmp.gt.s32.totalorder 0, %v1752
        %v1754 = vsel %vm1753, 0, %v1752
        %v1755 = vsub.s32 32, %v1754
        %v1756 = vshll.u32 %v1747, %v1754
        %v1757 = vshrl.u32 %v1739, %v1755
        %v1758 = vor.u32 %v1756, %v1757
        %v1759 = vsub.s32 4294967266, %v1754
        %v1760 = vadd.s32 %v1759, 127
        %v1761 = vshll.u32 %v1760, 23
        %v1762 = vor.u32 4788187, %v1761
        %v1763 = vand.u32 2147483647, %v1762
        %v1765 = vcvt.s32.f32 %v1758
        %v1766 = vmul.f32 %v1765, %v1763
        %v1767 = vxor.u32 %v1766, 2147483648
        %v1768 = vsel %vm1647, %v1767, %v1766
        %v1769 = vsub.s32 4, %v1745
        %v1770 = vsel %vm1647, %v1769, %v1745
        %v1771 = vsel %vm1646, %v381, %v1768
        %v1772 = vsel %vm1646, 0, %v1770
        %v1773 = vmul.f32 %v1771, %v1771
        %v1774 = vmul.f32 %v1773, -0.001358992
        %v1775 = vadd.f32 %v1774, 0.041655596
        %v1776 = vmul.f32 %v1773, %v1775
        %v1777 = vadd.f32 %v1776, -0.4999988
        %v1778 = vmul.f32 %v1773, %v1777
        %v1779 = vadd.f32 1.0, %v1778
        %v1780 = vmul.f32 %v1771, %v1771
        %v1781 = vmul.f32 %v1780, -0.00019511016
        %v1782 = vadd.f32 %v1781, 0.008332121
        %v1783 = vmul.f32 %v1780, %v1782
        %v1784 = vadd.f32 %v1783, -0.16666654
        %v1785 = vmul.f32 %v1780, %v1784
        %v1786 = vadd.f32 %v1785, 1.0
        %v1787 = vmul.f32 %v1786, %v1771
        %vm1788 = vweird.f32 %v381
        %v1789 = vadd.s32 %v1772, 3
        %v1790 = vand.u32 %v1789, 3
        %vm1791 = vcmp.lt.s32.totalorder %v1790, 2
        %vm1792 = vcmp.eq.s32.totalorder %v1790, 0
        %v1793 = vxor.u32 %v1787, 2147483648
        %v1794 = vsel %vm1792, %v1779, %v1793
        %vm1795 = vcmp.eq.s32.totalorder %v1790, 2
        %v1796 = vxor.u32 %v1779, 2147483648
        %v1797 = vsel %vm1795, %v1796, %v1787
        %v1798 = vsel %vm1791, %v1794, %v1797
        %v1799 = vsel %vm1788, nan, %v1798
        %v1800 = vand.u32 2147483647, %v382
        %vm1801 = vcmp.le.f32.partialorder %v1800, 0.7853982
        %vm1802 = vcmp.lt.s32.totalorder %v382, 0
        %v1803 = vand.u32 %v382, 2139095040
        %v1804 = vshrl.u32 %v1803, 23
        %v1805 = vsub.s32 %v1804, 127
        %v1806 = vand.u32 2147483647, %v382
        %v1807 = vand.u32 %v1806, 8388607
        %v1808 = vor.u32 %v1807, 8388608
        %v1809 = vsub.s32 0, %v1808
        %v1810 = vadd.s32 %v1805, 1
        %vm1811 = vcmp.gt.s32.totalorder %v1810, 0
        %v1812 = vsel %vm1811, %v1810, 0
        %v1813 = vshrl.u32 %v1812, 5
        %v1814 = vand.u32 %v1812, 31
        %v1815 = vsub.s32 32, %v1814
        %v1816 = vshrl.u32 683565275, %v1815
        %v1817 = vshll.u32 683565275, %v1814
        %v1818 = vshrl.u32 2475754826, %v1815
        %v1819 = vor.u32 %v1817, %v1818
        %v1820 = vshll.u32 2475754826, %v1814
        %v1821 = vshrl.u32 2131351028, %v1815
        %v1822 = vor.u32 %v1820, %v1821
        %v1823 = vshll.u32 2131351028, %v1814
        %v1824 = vshrl.u32 2102212464, %v1815
        %v1825 = vor.u32 %v1823, %v1824
        %v1826 = vshll.u32 2102212464, %v1814
        %v1827 = vshrl.u32 920167782, %v1815
        %v1828 = vor.u32 %v1826, %v1827
        %v1829 = vshll.u32 920167782, %v1814
        %v1830 = vshrl.u32 1326507024, %v1815
        %v1831 = vor.u32 %v1829, %v1830
        %vm1832 = vcmp.lt.s32.totalorder %v1813, 1
        %vm1833 = vcmp.lt.s32.totalorder %v1813, 2
        %vm1834 = vcmp.lt.s32.totalorder %v1813, 3
        %vm1835 = vcmp.lt.s32.totalorder %v1813, 4
        %v1836 = vsel %vm1832, %v1816, %v1819
        %v1837 = vsel %vm1835, %v1825, 2102212464
        %v1838 = vsel %vm1834, %v1822, %v1837
        %v1839 = vsel %vm1833, %v1836, %v1838
        %v1840 = vsel %vm1832, %v1819, %v1822
        %v1841 = vsel %vm1835, %v1828, 920167782
        %v1842 = vsel %vm1834, %v1825, %v1841
        %v1843 = vsel %vm1833, %v1840, %v1842
        %v1844 = vsel %vm1832, %v1822, %v1825
        %v1845 = vsel %vm1835, %v1831, 1326507024
        %v1846 = vsel %vm1834, %v1828, %v1845
        %v1847 = vsel %vm1833, %v1844, %v1846
        %v1848 = vshll.u32 %v1808, 8
        %v1849 = vand.u32 %v1848, 65535
        %v1850 = vshrl.u32 %v1848, 16
        %v1851 = vand.u32 %v1847, 65535
        %v1852 = vshrl.u32 %v1847, 16
        %v1853 = vmul.u32 %v1849, %v1851
        %v1854 = vmul.u32 %v1849, %v1852
        %v1855 = vmul.u32 %v1850, %v1851
        %v1856 = vmul.u32 %v1850, %v1852
        %v1857 = vshll.u32 %v1854, 16
        %v1858 = vshrl.u32 %v1854, 16
        %v1859 = vshll.u32 %v1855, 16
        %v1860 = vshrl.u32 %v1855, 16
        %vm1861 = vc.u32 %v1853, %v1857
        %v1862 = vsel %vm1861, 1, 0
        %v1863 = vadd.s32 %v1853, %v1857
        %v1864 = vadd.s32 %v1856, %v1862
        %vm1865 = vc.u32 %v1863, %v1859
        %v1866 = vsel %vm1865, 1, 0
        %v1867 = vadd.s32 %v1863, %v1859
        %v1868 = vadd.s32 %v1864, %v1866
        %v1869 = vadd.s32 %v1868, %v1858
        %v1870 = vadd.s32 %v1869, %v1860
        %v1871 = vand.u32 %v1848, 65535
        %v1872 = vshrl.u32 %v1848, 16
        %v1873 = vand.u32 %v1843, 65535
        %v1874 = vshrl.u32 %v1843, 16
        %v1875 = vmul.u32 %v1871, %v1873
        %v1876 = vmul.u32 %v1871, %v1874
        %v1877 = vmul.u32 %v1872, %v1873
        %v1878 = vmul.u32 %v1872, %v1874
        %v1879 = vshll.u32 %v1876, 16
        %v1880 = vshrl.u32 %v1876, 16
        %v1881 = vshll.u32 %v1877, 16
        %v1882 = vshrl.u32 %v1877, 16
        %vm1883 = vc.u32 %v1875, %v1879
        %v1884 = vsel %vm1883, 1, 0
        %v1885 = vadd.s32 %v1875, %v1879
        %v1886 = vadd.s32 %v1878, %v1884
        %vm1887 = vc.u32 %v1885, %v1881
        %v1888 = vsel %vm1887, 1, 0
        %v1889 = vadd.s32 %v1885, %v1881
        %v1890 = vadd.s32 %v1886, %v1888
        %v1891 = vadd.s32 %v1890, %v1880
        %v1892 = vadd.s32 %v1891, %v1882
        %v1893 = vmul.u32 %v1848, %v1839
        %v1894 = vadd.s32 %v1870, %v1889
        %vm1895 = vc.u32 %v1870, %v1889
        %v1896 = vadd.s32 %v1892, 1
        %v1897 = vsel %vm1895, %v1896, %v1892
        %v1898 = vadd.s32 %v1893, %v1897
        %v1899 = vadd.s32 %v1898, 536870912
        %v1900 = vshrl.u32 %v1899, 30
        %v1901 = vshll.u32 %v1900, 30
        %v1902 = vsub.s32 %v1898, %v1901
        %vm1903 = vcmp.lt.s32.totalorder %v1902, 0
        %v1904 = vsub.s32 0, %v1902
        %v1905 = vsel %vm1903, %v1904, %v1902
        %v1906 = vclz %v1905
        %v1907 = vsub.s32 %v1906, 2
        %vm1908 = vcmp.gt.s32.totalorder 0, %v1907
        %v1909 = vsel %vm1908, 0, %v1907
        %v1910 = vsub.s32 32, %v1909
        %v1911 = vshll.u32 %v1902, %v1909
        %v1912 = vshrl.u32 %v1894, %v1910
        %v1913 = vor.u32 %v1911, %v1912
        %v1914 = vsub.s32 4294967266, %v1909
        %v1915 = vadd.s32 %v1914, 127
        %v1916 = vshll.u32 %v1915, 23
        %v1917 = vor.u32 4788187, %v1916
        %v1918 = vand.u32 2147483647, %v1917
        %v1920 = vcvt.s32.f32 %v1913
        %v1921 = vmul.f32 %v1920, %v1918
        %v1922 = vxor.u32 %v1921, 2147483648
        %v1923 = vsel %vm1802, %v1922, %v1921
        %v1924 = vsub.s32 4, %v1900
        %v1925 = vsel %vm1802, %v1924, %v1900
        %v1926 = vsel %vm1801, %v382, %v1923
        %v1927 = vsel %vm1801, 0, %v1925
        %v1928 = vmul.f32 %v1926, %v1926
        %v1929 = vmul.f32 %v1928, -0.001358992
        %v1930 = vadd.f32 %v1929, 0.041655596
        %v1931 = vmul.f32 %v1928, %v1930
        %v1932 = vadd.f32 %v1931, -0.4999988
        %v1933 = vmul.f32 %v1928, %v1932
        %v1934 = vadd.f32 1.0, %v1933
        %v1935 = vmul.f32 %v1926, %v1926
        %v1936 = vmul.f32 %v1935, -0.00019511016
        %v1937 = vadd.f32 %v1936, 0.008332121
        %v1938 = vmul.f32 %v1935, %v1937
        %v1939 = vadd.f32 %v1938, -0.16666654
        %v1940 = vmul.f32 %v1935, %v1939
        %v1941 = vadd.f32 %v1940, 1.0
        %v1942 = vmul.f32 %v1941, %v1926
        %vm1943 = vweird.f32 %v382
        %v1944 = vadd.s32 %v1927, 3
        %v1945 = vand.u32 %v1944, 3
        %vm1946 = vcmp.lt.s32.totalorder %v1945, 2
        %vm1947 = vcmp.eq.s32.totalorder %v1945, 0
        %v1948 = vxor.u32 %v1942, 2147483648
        %v1949 = vsel %vm1947, %v1934, %v1948
        %vm1950 = vcmp.eq.s32.totalorder %v1945, 2
        %v1951 = vxor.u32 %v1934, 2147483648
        %v1952 = vsel %vm1950, %v1951, %v1942
        %v1953 = vsel %vm1946, %v1949, %v1952
        %v1954 = vsel %vm1943, nan, %v1953
        %v1955 = vand.u32 2147483647, %v383
        %vm1956 = vcmp.le.f32.partialorder %v1955, 0.7853982
        %vm1957 = vcmp.lt.s32.totalorder %v383, 0
        %v1958 = vand.u32 %v383, 2139095040
        %v1959 = vshrl.u32 %v1958, 23
        %v1960 = vsub.s32 %v1959, 127
        %v1961 = vand.u32 2147483647, %v383
        %v1962 = vand.u32 %v1961, 8388607
        %v1963 = vor.u32 %v1962, 8388608
        %v1964 = vsub.s32 0, %v1963
        %v1965 = vadd.s32 %v1960, 1
        %vm1966 = vcmp.gt.s32.totalorder %v1965, 0
        %v1967 = vsel %vm1966, %v1965, 0
        %v1968 = vshrl.u32 %v1967, 5
        %v1969 = vand.u32 %v1967, 31
        %v1970 = vsub.s32 32, %v1969
        %v1971 = vshrl.u32 683565275, %v1970
        %v1972 = vshll.u32 683565275, %v1969
        %v1973 = vshrl.u32 2475754826, %v1970
        %v1974 = vor.u32 %v1972, %v1973
        %v1975 = vshll.u32 2475754826, %v1969
        %v1976 = vshrl.u32 2131351028, %v1970
        %v1977 = vor.u32 %v1975, %v1976
        %v1978 = vshll.u32 2131351028, %v1969
        %v1979 = vshrl.u32 2102212464, %v1970
        %v1980 = vor.u32 %v1978, %v1979
        %v1981 = vshll.u32 2102212464, %v1969
        %v1982 = vshrl.u32 920167782, %v1970
        %v1983 = vor.u32 %v1981, %v1982
        %v1984 = vshll.u32 920167782, %v1969
        %v1985 = vshrl.u32 1326507024, %v1970
        %v1986 = vor.u32 %v1984, %v1985
        %vm1987 = vcmp.lt.s32.totalorder %v1968, 1
        %vm1988 = vcmp.lt.s32.totalorder %v1968, 2
        %vm1989 = vcmp.lt.s32.totalorder %v1968, 3
        %vm1990 = vcmp.lt.s32.totalorder %v1968, 4
        %v1991 = vsel %vm1987, %v1971, %v1974
        %v1992 = vsel %vm1990, %v1980, 2102212464
        %v1993 = vsel %vm1989, %v1977, %v1992
        %v1994 = vsel %vm1988, %v1991, %v1993
        %v1995 = vsel %vm1987, %v1974, %v1977
        %v1996 = vsel %vm1990, %v1983, 920167782
        %v1997 = vsel %vm1989, %v1980, %v1996
        %v1998 = vsel %vm1988, %v1995, %v1997
        %v1999 = vsel %vm1987, %v1977, %v1980
        %v2000 = vsel %vm1990, %v1986, 1326507024
        %v2001 = vsel %vm1989, %v1983, %v2000
        %v2002 = vsel %vm1988, %v1999, %v2001
        %v2003 = vshll.u32 %v1963, 8
        %v2004 = vand.u32 %v2003, 65535
        %v2005 = vshrl.u32 %v2003, 16
        %v2006 = vand.u32 %v2002, 65535
        %v2007 = vshrl.u32 %v2002, 16
        %v2008 = vmul.u32 %v2004, %v2006
        %v2009 = vmul.u32 %v2004, %v2007
        %v2010 = vmul.u32 %v2005, %v2006
        %v2011 = vmul.u32 %v2005, %v2007
        %v2012 = vshll.u32 %v2009, 16
        %v2013 = vshrl.u32 %v2009, 16
        %v2014 = vshll.u32 %v2010, 16
        %v2015 = vshrl.u32 %v2010, 16
        %vm2016 = vc.u32 %v2008, %v2012
        %v2017 = vsel %vm2016, 1, 0
        %v2018 = vadd.s32 %v2008, %v2012
        %v2019 = vadd.s32 %v2011, %v2017
        %vm2020 = vc.u32 %v2018, %v2014
        %v2021 = vsel %vm2020, 1, 0
        %v2022 = vadd.s32 %v2018, %v2014
        %v2023 = vadd.s32 %v2019, %v2021
        %v2024 = vadd.s32 %v2023, %v2013
        %v2025 = vadd.s32 %v2024, %v2015
        %v2026 = vand.u32 %v2003, 65535
        %v2027 = vshrl.u32 %v2003, 16
        %v2028 = vand.u32 %v1998, 65535
        %v2029 = vshrl.u32 %v1998, 16
        %v2030 = vmul.u32 %v2026, %v2028
        %v2031 = vmul.u32 %v2026, %v2029
        %v2032 = vmul.u32 %v2027, %v2028
        %v2033 = vmul.u32 %v2027, %v2029
        %v2034 = vshll.u32 %v2031, 16
        %v2035 = vshrl.u32 %v2031, 16
        %v2036 = vshll.u32 %v2032, 16
        %v2037 = vshrl.u32 %v2032, 16
        %vm2038 = vc.u32 %v2030, %v2034
        %v2039 = vsel %vm2038, 1, 0
        %v2040 = vadd.s32 %v2030, %v2034
        %v2041 = vadd.s32 %v2033, %v2039
        %vm2042 = vc.u32 %v2040, %v2036
        %v2043 = vsel %vm2042, 1, 0
        %v2044 = vadd.s32 %v2040, %v2036
        %v2045 = vadd.s32 %v2041, %v2043
        %v2046 = vadd.s32 %v2045, %v2035
        %v2047 = vadd.s32 %v2046, %v2037
        %v2048 = vmul.u32 %v2003, %v1994
        %v2049 = vadd.s32 %v2025, %v2044
        %vm2050 = vc.u32 %v2025, %v2044
        %v2051 = vadd.s32 %v2047, 1
        %v2052 = vsel %vm2050, %v2051, %v2047
        %v2053 = vadd.s32 %v2048, %v2052
        %v2054 = vadd.s32 %v2053, 536870912
        %v2055 = vshrl.u32 %v2054, 30
        %v2056 = vshll.u32 %v2055, 30
        %v2057 = vsub.s32 %v2053, %v2056
        %vm2058 = vcmp.lt.s32.totalorder %v2057, 0
        %v2059 = vsub.s32 0, %v2057
        %v2060 = vsel %vm2058, %v2059, %v2057
        %v2061 = vclz %v2060
        %v2062 = vsub.s32 %v2061, 2
        %vm2063 = vcmp.gt.s32.totalorder 0, %v2062
        %v2064 = vsel %vm2063, 0, %v2062
        %v2065 = vsub.s32 32, %v2064
        %v2066 = vshll.u32 %v2057, %v2064
        %v2067 = vshrl.u32 %v2049, %v2065
        %v2068 = vor.u32 %v2066, %v2067
        %v2069 = vsub.s32 4294967266, %v2064
        %v2070 = vadd.s32 %v2069, 127
        %v2071 = vshll.u32 %v2070, 23
        %v2072 = vor.u32 4788187, %v2071
        %v2073 = vand.u32 2147483647, %v2072
        %v2075 = vcvt.s32.f32 %v2068
        %v2076 = vmul.f32 %v2075, %v2073
        %v2077 = vxor.u32 %v2076, 2147483648
        %v2078 = vsel %vm1957, %v2077, %v2076
        %v2079 = vsub.s32 4, %v2055
        %v2080 = vsel %vm1957, %v2079, %v2055
        %v2081 = vsel %vm1956, %v383, %v2078
        %v2082 = vsel %vm1956, 0, %v2080
        %v2083 = vmul.f32 %v2081, %v2081
        %v2084 = vmul.f32 %v2083, -0.001358992
        %v2085 = vadd.f32 %v2084, 0.041655596
        %v2086 = vmul.f32 %v2083, %v2085
        %v2087 = vadd.f32 %v2086, -0.4999988
        %v2088 = vmul.f32 %v2083, %v2087
        %v2089 = vadd.f32 1.0, %v2088
        %v2090 = vmul.f32 %v2081, %v2081
        %v2091 = vmul.f32 %v2090, -0.00019511016
        %v2092 = vadd.f32 %v2091, 0.008332121
        %v2093 = vmul.f32 %v2090, %v2092
        %v2094 = vadd.f32 %v2093, -0.16666654
        %v2095 = vmul.f32 %v2090, %v2094
        %v2096 = vadd.f32 %v2095, 1.0
        %v2097 = vmul.f32 %v2096, %v2081
        %vm2098 = vweird.f32 %v383
        %v2099 = vadd.s32 %v2082, 3
        %v2100 = vand.u32 %v2099, 3
        %vm2101 = vcmp.lt.s32.totalorder %v2100, 2
        %vm2102 = vcmp.eq.s32.totalorder %v2100, 0
        %v2103 = vxor.u32 %v2097, 2147483648
        %v2104 = vsel %vm2102, %v2089, %v2103
        %vm2105 = vcmp.eq.s32.totalorder %v2100, 2
        %v2106 = vxor.u32 %v2089, 2147483648
        %v2107 = vsel %vm2105, %v2106, %v2097
        %v2108 = vsel %vm2101, %v2104, %v2107
        %v2109 = vsel %vm2098, nan, %v2108
        %v2110 = vand.u32 2147483647, %v384
        %vm2111 = vcmp.le.f32.partialorder %v2110, 0.7853982
        %vm2112 = vcmp.lt.s32.totalorder %v384, 0
        %v2113 = vand.u32 %v384, 2139095040
        %v2114 = vshrl.u32 %v2113, 23
        %v2115 = vsub.s32 %v2114, 127
        %v2116 = vand.u32 2147483647, %v384
        %v2117 = vand.u32 %v2116, 8388607
        %v2118 = vor.u32 %v2117, 8388608
        %v2119 = vsub.s32 0, %v2118
        %v2120 = vadd.s32 %v2115, 1
        %vm2121 = vcmp.gt.s32.totalorder %v2120, 0
        %v2122 = vsel %vm2121, %v2120, 0
        %v2123 = vshrl.u32 %v2122, 5
        %v2124 = vand.u32 %v2122, 31
        %v2125 = vsub.s32 32, %v2124
        %v2126 = vshrl.u32 683565275, %v2125
        %v2127 = vshll.u32 683565275, %v2124
        %v2128 = vshrl.u32 2475754826, %v2125
        %v2129 = vor.u32 %v2127, %v2128
        %v2130 = vshll.u32 2475754826, %v2124
        %v2131 = vshrl.u32 2131351028, %v2125
        %v2132 = vor.u32 %v2130, %v2131
        %v2133 = vshll.u32 2131351028, %v2124
        %v2134 = vshrl.u32 2102212464, %v2125
        %v2135 = vor.u32 %v2133, %v2134
        %v2136 = vshll.u32 2102212464, %v2124
        %v2137 = vshrl.u32 920167782, %v2125
        %v2138 = vor.u32 %v2136, %v2137
        %v2139 = vshll.u32 920167782, %v2124
        %v2140 = vshrl.u32 1326507024, %v2125
        %v2141 = vor.u32 %v2139, %v2140
        %vm2142 = vcmp.lt.s32.totalorder %v2123, 1
        %vm2143 = vcmp.lt.s32.totalorder %v2123, 2
        %vm2144 = vcmp.lt.s32.totalorder %v2123, 3
        %vm2145 = vcmp.lt.s32.totalorder %v2123, 4
        %v2146 = vsel %vm2142, %v2126, %v2129
        %v2147 = vsel %vm2145, %v2135, 2102212464
        %v2148 = vsel %vm2144, %v2132, %v2147
        %v2149 = vsel %vm2143, %v2146, %v2148
        %v2150 = vsel %vm2142, %v2129, %v2132
        %v2151 = vsel %vm2145, %v2138, 920167782
        %v2152 = vsel %vm2144, %v2135, %v2151
        %v2153 = vsel %vm2143, %v2150, %v2152
        %v2154 = vsel %vm2142, %v2132, %v2135
        %v2155 = vsel %vm2145, %v2141, 1326507024
        %v2156 = vsel %vm2144, %v2138, %v2155
        %v2157 = vsel %vm2143, %v2154, %v2156
        %v2158 = vshll.u32 %v2118, 8
        %v2159 = vand.u32 %v2158, 65535
        %v2160 = vshrl.u32 %v2158, 16
        %v2161 = vand.u32 %v2157, 65535
        %v2162 = vshrl.u32 %v2157, 16
        %v2163 = vmul.u32 %v2159, %v2161
        %v2164 = vmul.u32 %v2159, %v2162
        %v2165 = vmul.u32 %v2160, %v2161
        %v2166 = vmul.u32 %v2160, %v2162
        %v2167 = vshll.u32 %v2164, 16
        %v2168 = vshrl.u32 %v2164, 16
        %v2169 = vshll.u32 %v2165, 16
        %v2170 = vshrl.u32 %v2165, 16
        %vm2171 = vc.u32 %v2163, %v2167
        %v2172 = vsel %vm2171, 1, 0
        %v2173 = vadd.s32 %v2163, %v2167
        %v2174 = vadd.s32 %v2166, %v2172
        %vm2175 = vc.u32 %v2173, %v2169
        %v2176 = vsel %vm2175, 1, 0
        %v2177 = vadd.s32 %v2173, %v2169
        %v2178 = vadd.s32 %v2174, %v2176
        %v2179 = vadd.s32 %v2178, %v2168
        %v2180 = vadd.s32 %v2179, %v2170
        %v2181 = vand.u32 %v2158, 65535
        %v2182 = vshrl.u32 %v2158, 16
        %v2183 = vand.u32 %v2153, 65535
        %v2184 = vshrl.u32 %v2153, 16
        %v2185 = vmul.u32 %v2181, %v2183
        %v2186 = vmul.u32 %v2181, %v2184
        %v2187 = vmul.u32 %v2182, %v2183
        %v2188 = vmul.u32 %v2182, %v2184
        %v2189 = vshll.u32 %v2186, 16
        %v2190 = vshrl.u32 %v2186, 16
        %v2191 = vshll.u32 %v2187, 16
        %v2192 = vshrl.u32 %v2187, 16
        %vm2193 = vc.u32 %v2185, %v2189
        %v2194 = vsel %vm2193, 1, 0
        %v2195 = vadd.s32 %v2185, %v2189
        %v2196 = vadd.s32 %v2188, %v2194
        %vm2197 = vc.u32 %v2195, %v2191
        %v2198 = vsel %vm2197, 1, 0
        %v2199 = vadd.s32 %v2195, %v2191
        %v2200 = vadd.s32 %v2196, %v2198
        %v2201 = vadd.s32 %v2200, %v2190
        %v2202 = vadd.s32 %v2201, %v2192
        %v2203 = vmul.u32 %v2158, %v2149
        %v2204 = vadd.s32 %v2180, %v2199
        %vm2205 = vc.u32 %v2180, %v2199
        %v2206 = vadd.s32 %v2202, 1
        %v2207 = vsel %vm2205, %v2206, %v2202
        %v2208 = vadd.s32 %v2203, %v2207
        %v2209 = vadd.s32 %v2208, 536870912
        %v2210 = vshrl.u32 %v2209, 30
        %v2211 = vshll.u32 %v2210, 30
        %v2212 = vsub.s32 %v2208, %v2211
        %vm2213 = vcmp.lt.s32.totalorder %v2212, 0
        %v2214 = vsub.s32 0, %v2212
        %v2215 = vsel %vm2213, %v2214, %v2212
        %v2216 = vclz %v2215
        %v2217 = vsub.s32 %v2216, 2
        %vm2218 = vcmp.gt.s32.totalorder 0, %v2217
        %v2219 = vsel %vm2218, 0, %v2217
        %v2220 = vsub.s32 32, %v2219
        %v2221 = vshll.u32 %v2212, %v2219
        %v2222 = vshrl.u32 %v2204, %v2220
        %v2223 = vor.u32 %v2221, %v2222
        %v2224 = vsub.s32 4294967266, %v2219
        %v2225 = vadd.s32 %v2224, 127
        %v2226 = vshll.u32 %v2225, 23
        %v2227 = vor.u32 4788187, %v2226
        %v2228 = vand.u32 2147483647, %v2227
        %v2230 = vcvt.s32.f32 %v2223
        %v2231 = vmul.f32 %v2230, %v2228
        %v2232 = vxor.u32 %v2231, 2147483648
        %v2233 = vsel %vm2112, %v2232, %v2231
        %v2234 = vsub.s32 4, %v2210
        %v2235 = vsel %vm2112, %v2234, %v2210
        %v2236 = vsel %vm2111, %v384, %v2233
        %v2237 = vsel %vm2111, 0, %v2235
        %v2238 = vmul.f32 %v2236, %v2236
        %v2239 = vmul.f32 %v2238, -0.001358992
        %v2240 = vadd.f32 %v2239, 0.041655596
        %v2241 = vmul.f32 %v2238, %v2240
        %v2242 = vadd.f32 %v2241, -0.4999988
        %v2243 = vmul.f32 %v2238, %v2242
        %v2244 = vadd.f32 1.0, %v2243
        %v2245 = vmul.f32 %v2236, %v2236
        %v2246 = vmul.f32 %v2245, -0.00019511016
        %v2247 = vadd.f32 %v2246, 0.008332121
        %v2248 = vmul.f32 %v2245, %v2247
        %v2249 = vadd.f32 %v2248, -0.16666654
        %v2250 = vmul.f32 %v2245, %v2249
        %v2251 = vadd.f32 %v2250, 1.0
        %v2252 = vmul.f32 %v2251, %v2236
        %vm2253 = vweird.f32 %v384
        %v2254 = vadd.s32 %v2237, 3
        %v2255 = vand.u32 %v2254, 3
        %vm2256 = vcmp.lt.s32.totalorder %v2255, 2
        %vm2257 = vcmp.eq.s32.totalorder %v2255, 0
        %v2258 = vxor.u32 %v2252, 2147483648
        %v2259 = vsel %vm2257, %v2244, %v2258
        %vm2260 = vcmp.eq.s32.totalorder %v2255, 2
        %v2261 = vxor.u32 %v2244, 2147483648
        %v2262 = vsel %vm2260, %v2261, %v2252
        %v2263 = vsel %vm2256, %v2259, %v2262
        %v2264 = vsel %vm2253, nan, %v2263
        %v2265 = vand.u32 2147483647, %v385
        %vm2266 = vcmp.le.f32.partialorder %v2265, 0.7853982
        %vm2267 = vcmp.lt.s32.totalorder %v385, 0
        %v2268 = vand.u32 %v385, 2139095040
        %v2269 = vshrl.u32 %v2268, 23
        %v2270 = vsub.s32 %v2269, 127
        %v2271 = vand.u32 2147483647, %v385
        %v2272 = vand.u32 %v2271, 8388607
        %v2273 = vor.u32 %v2272, 8388608
        %v2274 = vsub.s32 0, %v2273
        %v2275 = vadd.s32 %v2270, 1
        %vm2276 = vcmp.gt.s32.totalorder %v2275, 0
        %v2277 = vsel %vm2276, %v2275, 0
        %v2278 = vshrl.u32 %v2277, 5
        %v2279 = vand.u32 %v2277, 31
        %v2280 = vsub.s32 32, %v2279
        %v2281 = vshrl.u32 683565275, %v2280
        %v2282 = vshll.u32 683565275, %v2279
        %v2283 = vshrl.u32 2475754826, %v2280
        %v2284 = vor.u32 %v2282, %v2283
        %v2285 = vshll.u32 2475754826, %v2279
        %v2286 = vshrl.u32 2131351028, %v2280
        %v2287 = vor.u32 %v2285, %v2286
        %v2288 = vshll.u32 2131351028, %v2279
        %v2289 = vshrl.u32 2102212464, %v2280
        %v2290 = vor.u32 %v2288, %v2289
        %v2291 = vshll.u32 2102212464, %v2279
        %v2292 = vshrl.u32 920167782, %v2280
        %v2293 = vor.u32 %v2291, %v2292
        %v2294 = vshll.u32 920167782, %v2279
        %v2295 = vshrl.u32 1326507024, %v2280
        %v2296 = vor.u32 %v2294, %v2295
        %vm2297 = vcmp.lt.s32.totalorder %v2278, 1
        %vm2298 = vcmp.lt.s32.totalorder %v2278, 2
        %vm2299 = vcmp.lt.s32.totalorder %v2278, 3
        %vm2300 = vcmp.lt.s32.totalorder %v2278, 4
        %v2301 = vsel %vm2297, %v2281, %v2284
        %v2302 = vsel %vm2300, %v2290, 2102212464
        %v2303 = vsel %vm2299, %v2287, %v2302
        %v2304 = vsel %vm2298, %v2301, %v2303
        %v2305 = vsel %vm2297, %v2284, %v2287
        %v2306 = vsel %vm2300, %v2293, 920167782
        %v2307 = vsel %vm2299, %v2290, %v2306
        %v2308 = vsel %vm2298, %v2305, %v2307
        %v2309 = vsel %vm2297, %v2287, %v2290
        %v2310 = vsel %vm2300, %v2296, 1326507024
        %v2311 = vsel %vm2299, %v2293, %v2310
        %v2312 = vsel %vm2298, %v2309, %v2311
        %v2313 = vshll.u32 %v2273, 8
        %v2314 = vand.u32 %v2313, 65535
        %v2315 = vshrl.u32 %v2313, 16
        %v2316 = vand.u32 %v2312, 65535
        %v2317 = vshrl.u32 %v2312, 16
        %v2318 = vmul.u32 %v2314, %v2316
        %v2319 = vmul.u32 %v2314, %v2317
        %v2320 = vmul.u32 %v2315, %v2316
        %v2321 = vmul.u32 %v2315, %v2317
        %v2322 = vshll.u32 %v2319, 16
        %v2323 = vshrl.u32 %v2319, 16
        %v2324 = vshll.u32 %v2320, 16
        %v2325 = vshrl.u32 %v2320, 16
        %vm2326 = vc.u32 %v2318, %v2322
        %v2327 = vsel %vm2326, 1, 0
        %v2328 = vadd.s32 %v2318, %v2322
        %v2329 = vadd.s32 %v2321, %v2327
        %vm2330 = vc.u32 %v2328, %v2324
        %v2331 = vsel %vm2330, 1, 0
        %v2332 = vadd.s32 %v2328, %v2324
        %v2333 = vadd.s32 %v2329, %v2331
        %v2334 = vadd.s32 %v2333, %v2323
        %v2335 = vadd.s32 %v2334, %v2325
        %v2336 = vand.u32 %v2313, 65535
        %v2337 = vshrl.u32 %v2313, 16
        %v2338 = vand.u32 %v2308, 65535
        %v2339 = vshrl.u32 %v2308, 16
        %v2340 = vmul.u32 %v2336, %v2338
        %v2341 = vmul.u32 %v2336, %v2339
        %v2342 = vmul.u32 %v2337, %v2338
        %v2343 = vmul.u32 %v2337, %v2339
        %v2344 = vshll.u32 %v2341, 16
        %v2345 = vshrl.u32 %v2341, 16
        %v2346 = vshll.u32 %v2342, 16
        %v2347 = vshrl.u32 %v2342, 16
        %vm2348 = vc.u32 %v2340, %v2344
        %v2349 = vsel %vm2348, 1, 0
        %v2350 = vadd.s32 %v2340, %v2344
        %v2351 = vadd.s32 %v2343, %v2349
        %vm2352 = vc.u32 %v2350, %v2346
        %v2353 = vsel %vm2352, 1, 0
        %v2354 = vadd.s32 %v2350, %v2346
        %v2355 = vadd.s32 %v2351, %v2353
        %v2356 = vadd.s32 %v2355, %v2345
        %v2357 = vadd.s32 %v2356, %v2347
        %v2358 = vmul.u32 %v2313, %v2304
        %v2359 = vadd.s32 %v2335, %v2354
        %vm2360 = vc.u32 %v2335, %v2354
        %v2361 = vadd.s32 %v2357, 1
        %v2362 = vsel %vm2360, %v2361, %v2357
        %v2363 = vadd.s32 %v2358, %v2362
        %v2364 = vadd.s32 %v2363, 536870912
        %v2365 = vshrl.u32 %v2364, 30
        %v2366 = vshll.u32 %v2365, 30
        %v2367 = vsub.s32 %v2363, %v2366
        %vm2368 = vcmp.lt.s32.totalorder %v2367, 0
        %v2369 = vsub.s32 0, %v2367
        %v2370 = vsel %vm2368, %v2369, %v2367
        %v2371 = vclz %v2370
        %v2372 = vsub.s32 %v2371, 2
        %vm2373 = vcmp.gt.s32.totalorder 0, %v2372
        %v2374 = vsel %vm2373, 0, %v2372
        %v2375 = vsub.s32 32, %v2374
        %v2376 = vshll.u32 %v2367, %v2374
        %v2377 = vshrl.u32 %v2359, %v2375
        %v2378 = vor.u32 %v2376, %v2377
        %v2379 = vsub.s32 4294967266, %v2374
        %v2380 = vadd.s32 %v2379, 127
        %v2381 = vshll.u32 %v2380, 23
        %v2382 = vor.u32 4788187, %v2381
        %v2383 = vand.u32 2147483647, %v2382
        %v2385 = vcvt.s32.f32 %v2378
        %v2386 = vmul.f32 %v2385, %v2383
        %v2387 = vxor.u32 %v2386, 2147483648
        %v2388 = vsel %vm2267, %v2387, %v2386
        %v2389 = vsub.s32 4, %v2365
        %v2390 = vsel %vm2267, %v2389, %v2365
        %v2391 = vsel %vm2266, %v385, %v2388
        %v2392 = vsel %vm2266, 0, %v2390
        %v2393 = vmul.f32 %v2391, %v2391
        %v2394 = vmul.f32 %v2393, -0.001358992
        %v2395 = vadd.f32 %v2394, 0.041655596
        %v2396 = vmul.f32 %v2393, %v2395
        %v2397 = vadd.f32 %v2396, -0.4999988
        %v2398 = vmul.f32 %v2393, %v2397
        %v2399 = vadd.f32 1.0, %v2398
        %v2400 = vmul.f32 %v2391, %v2391
        %v2401 = vmul.f32 %v2400, -0.00019511016
        %v2402 = vadd.f32 %v2401, 0.008332121
        %v2403 = vmul.f32 %v2400, %v2402
        %v2404 = vadd.f32 %v2403, -0.16666654
        %v2405 = vmul.f32 %v2400, %v2404
        %v2406 = vadd.f32 %v2405, 1.0
        %v2407 = vmul.f32 %v2406, %v2391
        %vm2408 = vweird.f32 %v385
        %v2409 = vadd.s32 %v2392, 3
        %v2410 = vand.u32 %v2409, 3
        %vm2411 = vcmp.lt.s32.totalorder %v2410, 2
        %vm2412 = vcmp.eq.s32.totalorder %v2410, 0
        %v2413 = vxor.u32 %v2407, 2147483648
        %v2414 = vsel %vm2412, %v2399, %v2413
        %vm2415 = vcmp.eq.s32.totalorder %v2410, 2
        %v2416 = vxor.u32 %v2399, 2147483648
        %v2417 = vsel %vm2415, %v2416, %v2407
        %v2418 = vsel %vm2411, %v2414, %v2417
        %v2419 = vsel %vm2408, nan, %v2418
        %v2420 = vand.u32 2147483647, %v386
        %vm2421 = vcmp.le.f32.partialorder %v2420, 0.7853982
        %vm2422 = vcmp.lt.s32.totalorder %v386, 0
        %v2423 = vand.u32 %v386, 2139095040
        %v2424 = vshrl.u32 %v2423, 23
        %v2425 = vsub.s32 %v2424, 127
        %v2426 = vand.u32 2147483647, %v386
        %v2427 = vand.u32 %v2426, 8388607
        %v2428 = vor.u32 %v2427, 8388608
        %v2429 = vsub.s32 0, %v2428
        %v2430 = vadd.s32 %v2425, 1
        %vm2431 = vcmp.gt.s32.totalorder %v2430, 0
        %v2432 = vsel %vm2431, %v2430, 0
        %v2433 = vshrl.u32 %v2432, 5
        %v2434 = vand.u32 %v2432, 31
        %v2435 = vsub.s32 32, %v2434
        %v2436 = vshrl.u32 683565275, %v2435
        %v2437 = vshll.u32 683565275, %v2434
        %v2438 = vshrl.u32 2475754826, %v2435
        %v2439 = vor.u32 %v2437, %v2438
        %v2440 = vshll.u32 2475754826, %v2434
        %v2441 = vshrl.u32 2131351028, %v2435
        %v2442 = vor.u32 %v2440, %v2441
        %v2443 = vshll.u32 2131351028, %v2434
        %v2444 = vshrl.u32 2102212464, %v2435
        %v2445 = vor.u32 %v2443, %v2444
        %v2446 = vshll.u32 2102212464, %v2434
        %v2447 = vshrl.u32 920167782, %v2435
        %v2448 = vor.u32 %v2446, %v2447
        %v2449 = vshll.u32 920167782, %v2434
        %v2450 = vshrl.u32 1326507024, %v2435
        %v2451 = vor.u32 %v2449, %v2450
        %vm2452 = vcmp.lt.s32.totalorder %v2433, 1
        %vm2453 = vcmp.lt.s32.totalorder %v2433, 2
        %vm2454 = vcmp.lt.s32.totalorder %v2433, 3
        %vm2455 = vcmp.lt.s32.totalorder %v2433, 4
        %v2456 = vsel %vm2452, %v2436, %v2439
        %v2457 = vsel %vm2455, %v2445, 2102212464
        %v2458 = vsel %vm2454, %v2442, %v2457
        %v2459 = vsel %vm2453, %v2456, %v2458
        %v2460 = vsel %vm2452, %v2439, %v2442
        %v2461 = vsel %vm2455, %v2448, 920167782
        %v2462 = vsel %vm2454, %v2445, %v2461
        %v2463 = vsel %vm2453, %v2460, %v2462
        %v2464 = vsel %vm2452, %v2442, %v2445
        %v2465 = vsel %vm2455, %v2451, 1326507024
        %v2466 = vsel %vm2454, %v2448, %v2465
        %v2467 = vsel %vm2453, %v2464, %v2466
        %v2468 = vshll.u32 %v2428, 8
        %v2469 = vand.u32 %v2468, 65535
        %v2470 = vshrl.u32 %v2468, 16
        %v2471 = vand.u32 %v2467, 65535
        %v2472 = vshrl.u32 %v2467, 16
        %v2473 = vmul.u32 %v2469, %v2471
        %v2474 = vmul.u32 %v2469, %v2472
        %v2475 = vmul.u32 %v2470, %v2471
        %v2476 = vmul.u32 %v2470, %v2472
        %v2477 = vshll.u32 %v2474, 16
        %v2478 = vshrl.u32 %v2474, 16
        %v2479 = vshll.u32 %v2475, 16
        %v2480 = vshrl.u32 %v2475, 16
        %vm2481 = vc.u32 %v2473, %v2477
        %v2482 = vsel %vm2481, 1, 0
        %v2483 = vadd.s32 %v2473, %v2477
        %v2484 = vadd.s32 %v2476, %v2482
        %vm2485 = vc.u32 %v2483, %v2479
        %v2486 = vsel %vm2485, 1, 0
        %v2487 = vadd.s32 %v2483, %v2479
        %v2488 = vadd.s32 %v2484, %v2486
        %v2489 = vadd.s32 %v2488, %v2478
        %v2490 = vadd.s32 %v2489, %v2480
        %v2491 = vand.u32 %v2468, 65535
        %v2492 = vshrl.u32 %v2468, 16
        %v2493 = vand.u32 %v2463, 65535
        %v2494 = vshrl.u32 %v2463, 16
        %v2495 = vmul.u32 %v2491, %v2493
        %v2496 = vmul.u32 %v2491, %v2494
        %v2497 = vmul.u32 %v2492, %v2493
        %v2498 = vmul.u32 %v2492, %v2494
        %v2499 = vshll.u32 %v2496, 16
        %v2500 = vshrl.u32 %v2496, 16
        %v2501 = vshll.u32 %v2497, 16
        %v2502 = vshrl.u32 %v2497, 16
        %vm2503 = vc.u32 %v2495, %v2499
        %v2504 = vsel %vm2503, 1, 0
        %v2505 = vadd.s32 %v2495, %v2499
        %v2506 = vadd.s32 %v2498, %v2504
        %vm2507 = vc.u32 %v2505, %v2501
        %v2508 = vsel %vm2507, 1, 0
        %v2509 = vadd.s32 %v2505, %v2501
        %v2510 = vadd.s32 %v2506, %v2508
        %v2511 = vadd.s32 %v2510, %v2500
        %v2512 = vadd.s32 %v2511, %v2502
        %v2513 = vmul.u32 %v2468, %v2459
        %v2514 = vadd.s32 %v2490, %v2509
        %vm2515 = vc.u32 %v2490, %v2509
        %v2516 = vadd.s32 %v2512, 1
        %v2517 = vsel %vm2515, %v2516, %v2512
        %v2518 = vadd.s32 %v2513, %v2517
        %v2519 = vadd.s32 %v2518, 536870912
        %v2520 = vshrl.u32 %v2519, 30
        %v2521 = vshll.u32 %v2520, 30
        %v2522 = vsub.s32 %v2518, %v2521
        %vm2523 = vcmp.lt.s32.totalorder %v2522, 0
        %v2524 = vsub.s32 0, %v2522
        %v2525 = vsel %vm2523, %v2524, %v2522
        %v2526 = vclz %v2525
        %v2527 = vsub.s32 %v2526, 2
        %vm2528 = vcmp.gt.s32.totalorder 0, %v2527
        %v2529 = vsel %vm2528, 0, %v2527
        %v2530 = vsub.s32 32, %v2529
        %v2531 = vshll.u32 %v2522, %v2529
        %v2532 = vshrl.u32 %v2514, %v2530
        %v2533 = vor.u32 %v2531, %v2532
        %v2534 = vsub.s32 4294967266, %v2529
        %v2535 = vadd.s32 %v2534, 127
        %v2536 = vshll.u32 %v2535, 23
        %v2537 = vor.u32 4788187, %v2536
        %v2538 = vand.u32 2147483647, %v2537
        %v2540 = vcvt.s32.f32 %v2533
        %v2541 = vmul.f32 %v2540, %v2538
        %v2542 = vxor.u32 %v2541, 2147483648
        %v2543 = vsel %vm2422, %v2542, %v2541
        %v2544 = vsub.s32 4, %v2520
        %v2545 = vsel %vm2422, %v2544, %v2520
        %v2546 = vsel %vm2421, %v386, %v2543
        %v2547 = vsel %vm2421, 0, %v2545
        %v2548 = vmul.f32 %v2546, %v2546
        %v2549 = vmul.f32 %v2548, -0.001358992
        %v2550 = vadd.f32 %v2549, 0.041655596
        %v2551 = vmul.f32 %v2548, %v2550
        %v2552 = vadd.f32 %v2551, -0.4999988
        %v2553 = vmul.f32 %v2548, %v2552
        %v2554 = vadd.f32 1.0, %v2553
        %v2555 = vmul.f32 %v2546, %v2546
        %v2556 = vmul.f32 %v2555, -0.00019511016
        %v2557 = vadd.f32 %v2556, 0.008332121
        %v2558 = vmul.f32 %v2555, %v2557
        %v2559 = vadd.f32 %v2558, -0.16666654
        %v2560 = vmul.f32 %v2555, %v2559
        %v2561 = vadd.f32 %v2560, 1.0
        %v2562 = vmul.f32 %v2561, %v2546
        %vm2563 = vweird.f32 %v386
        %v2564 = vadd.s32 %v2547, 3
        %v2565 = vand.u32 %v2564, 3
        %vm2566 = vcmp.lt.s32.totalorder %v2565, 2
        %vm2567 = vcmp.eq.s32.totalorder %v2565, 0
        %v2568 = vxor.u32 %v2562, 2147483648
        %v2569 = vsel %vm2567, %v2554, %v2568
        %vm2570 = vcmp.eq.s32.totalorder %v2565, 2
        %v2571 = vxor.u32 %v2554, 2147483648
        %v2572 = vsel %vm2570, %v2571, %v2562
        %v2573 = vsel %vm2566, %v2569, %v2572
        %v2574 = vsel %vm2563, nan, %v2573
        %v2575 = vand.u32 2147483647, %v387
        %vm2576 = vcmp.le.f32.partialorder %v2575, 0.7853982
        %vm2577 = vcmp.lt.s32.totalorder %v387, 0
        %v2578 = vand.u32 %v387, 2139095040
        %v2579 = vshrl.u32 %v2578, 23
        %v2580 = vsub.s32 %v2579, 127
        %v2581 = vand.u32 2147483647, %v387
        %v2582 = vand.u32 %v2581, 8388607
        %v2583 = vor.u32 %v2582, 8388608
        %v2584 = vsub.s32 0, %v2583
        %v2585 = vadd.s32 %v2580, 1
        %vm2586 = vcmp.gt.s32.totalorder %v2585, 0
        %v2587 = vsel %vm2586, %v2585, 0
        %v2588 = vshrl.u32 %v2587, 5
        %v2589 = vand.u32 %v2587, 31
        %v2590 = vsub.s32 32, %v2589
        %v2591 = vshrl.u32 683565275, %v2590
        %v2592 = vshll.u32 683565275, %v2589
        %v2593 = vshrl.u32 2475754826, %v2590
        %v2594 = vor.u32 %v2592, %v2593
        %v2595 = vshll.u32 2475754826, %v2589
        %v2596 = vshrl.u32 2131351028, %v2590
        %v2597 = vor.u32 %v2595, %v2596
        %v2598 = vshll.u32 2131351028, %v2589
        %v2599 = vshrl.u32 2102212464, %v2590
        %v2600 = vor.u32 %v2598, %v2599
        %v2601 = vshll.u32 2102212464, %v2589
        %v2602 = vshrl.u32 920167782, %v2590
        %v2603 = vor.u32 %v2601, %v2602
        %v2604 = vshll.u32 920167782, %v2589
        %v2605 = vshrl.u32 1326507024, %v2590
        %v2606 = vor.u32 %v2604, %v2605
        %vm2607 = vcmp.lt.s32.totalorder %v2588, 1
        %vm2608 = vcmp.lt.s32.totalorder %v2588, 2
        %vm2609 = vcmp.lt.s32.totalorder %v2588, 3
        %vm2610 = vcmp.lt.s32.totalorder %v2588, 4
        %v2611 = vsel %vm2607, %v2591, %v2594
        %v2612 = vsel %vm2610, %v2600, 2102212464
        %v2613 = vsel %vm2609, %v2597, %v2612
        %v2614 = vsel %vm2608, %v2611, %v2613
        %v2615 = vsel %vm2607, %v2594, %v2597
        %v2616 = vsel %vm2610, %v2603, 920167782
        %v2617 = vsel %vm2609, %v2600, %v2616
        %v2618 = vsel %vm2608, %v2615, %v2617
        %v2619 = vsel %vm2607, %v2597, %v2600
        %v2620 = vsel %vm2610, %v2606, 1326507024
        %v2621 = vsel %vm2609, %v2603, %v2620
        %v2622 = vsel %vm2608, %v2619, %v2621
        %v2623 = vshll.u32 %v2583, 8
        %v2624 = vand.u32 %v2623, 65535
        %v2625 = vshrl.u32 %v2623, 16
        %v2626 = vand.u32 %v2622, 65535
        %v2627 = vshrl.u32 %v2622, 16
        %v2628 = vmul.u32 %v2624, %v2626
        %v2629 = vmul.u32 %v2624, %v2627
        %v2630 = vmul.u32 %v2625, %v2626
        %v2631 = vmul.u32 %v2625, %v2627
        %v2632 = vshll.u32 %v2629, 16
        %v2633 = vshrl.u32 %v2629, 16
        %v2634 = vshll.u32 %v2630, 16
        %v2635 = vshrl.u32 %v2630, 16
        %vm2636 = vc.u32 %v2628, %v2632
        %v2637 = vsel %vm2636, 1, 0
        %v2638 = vadd.s32 %v2628, %v2632
        %v2639 = vadd.s32 %v2631, %v2637
        %vm2640 = vc.u32 %v2638, %v2634
        %v2641 = vsel %vm2640, 1, 0
        %v2642 = vadd.s32 %v2638, %v2634
        %v2643 = vadd.s32 %v2639, %v2641
        %v2644 = vadd.s32 %v2643, %v2633
        %v2645 = vadd.s32 %v2644, %v2635
        %v2646 = vand.u32 %v2623, 65535
        %v2647 = vshrl.u32 %v2623, 16
        %v2648 = vand.u32 %v2618, 65535
        %v2649 = vshrl.u32 %v2618, 16
        %v2650 = vmul.u32 %v2646, %v2648
        %v2651 = vmul.u32 %v2646, %v2649
        %v2652 = vmul.u32 %v2647, %v2648
        %v2653 = vmul.u32 %v2647, %v2649
        %v2654 = vshll.u32 %v2651, 16
        %v2655 = vshrl.u32 %v2651, 16
        %v2656 = vshll.u32 %v2652, 16
        %v2657 = vshrl.u32 %v2652, 16
        %vm2658 = vc.u32 %v2650, %v2654
        %v2659 = vsel %vm2658, 1, 0
        %v2660 = vadd.s32 %v2650, %v2654
        %v2661 = vadd.s32 %v2653, %v2659
        %vm2662 = vc.u32 %v2660, %v2656
        %v2663 = vsel %vm2662, 1, 0
        %v2664 = vadd.s32 %v2660, %v2656
        %v2665 = vadd.s32 %v2661, %v2663
        %v2666 = vadd.s32 %v2665, %v2655
        %v2667 = vadd.s32 %v2666, %v2657
        %v2668 = vmul.u32 %v2623, %v2614
        %v2669 = vadd.s32 %v2645, %v2664
        %vm2670 = vc.u32 %v2645, %v2664
        %v2671 = vadd.s32 %v2667, 1
        %v2672 = vsel %vm2670, %v2671, %v2667
        %v2673 = vadd.s32 %v2668, %v2672
        %v2674 = vadd.s32 %v2673, 536870912
        %v2675 = vshrl.u32 %v2674, 30
        %v2676 = vshll.u32 %v2675, 30
        %v2677 = vsub.s32 %v2673, %v2676
        %vm2678 = vcmp.lt.s32.totalorder %v2677, 0
        %v2679 = vsub.s32 0, %v2677
        %v2680 = vsel %vm2678, %v2679, %v2677
        %v2681 = vclz %v2680
        %v2682 = vsub.s32 %v2681, 2
        %vm2683 = vcmp.gt.s32.totalorder 0, %v2682
        %v2684 = vsel %vm2683, 0, %v2682
        %v2685 = vsub.s32 32, %v2684
        %v2686 = vshll.u32 %v2677, %v2684
        %v2687 = vshrl.u32 %v2669, %v2685
        %v2688 = vor.u32 %v2686, %v2687
        %v2689 = vsub.s32 4294967266, %v2684
        %v2690 = vadd.s32 %v2689, 127
        %v2691 = vshll.u32 %v2690, 23
        %v2692 = vor.u32 4788187, %v2691
        %v2693 = vand.u32 2147483647, %v2692
        %v2695 = vcvt.s32.f32 %v2688
        %v2696 = vmul.f32 %v2695, %v2693
        %v2697 = vxor.u32 %v2696, 2147483648
        %v2698 = vsel %vm2577, %v2697, %v2696
        %v2699 = vsub.s32 4, %v2675
        %v2700 = vsel %vm2577, %v2699, %v2675
        %v2701 = vsel %vm2576, %v387, %v2698
        %v2702 = vsel %vm2576, 0, %v2700
        %v2703 = vmul.f32 %v2701, %v2701
        %v2704 = vmul.f32 %v2703, -0.001358992
        %v2705 = vadd.f32 %v2704, 0.041655596
        %v2706 = vmul.f32 %v2703, %v2705
        %v2707 = vadd.f32 %v2706, -0.4999988
        %v2708 = vmul.f32 %v2703, %v2707
        %v2709 = vadd.f32 1.0, %v2708
        %v2710 = vmul.f32 %v2701, %v2701
        %v2711 = vmul.f32 %v2710, -0.00019511016
        %v2712 = vadd.f32 %v2711, 0.008332121
        %v2713 = vmul.f32 %v2710, %v2712
        %v2714 = vadd.f32 %v2713, -0.16666654
        %v2715 = vmul.f32 %v2710, %v2714
        %v2716 = vadd.f32 %v2715, 1.0
        %v2717 = vmul.f32 %v2716, %v2701
        %vm2718 = vweird.f32 %v387
        %v2719 = vadd.s32 %v2702, 3
        %v2720 = vand.u32 %v2719, 3
        %vm2721 = vcmp.lt.s32.totalorder %v2720, 2
        %vm2722 = vcmp.eq.s32.totalorder %v2720, 0
        %v2723 = vxor.u32 %v2717, 2147483648
        %v2724 = vsel %vm2722, %v2709, %v2723
        %vm2725 = vcmp.eq.s32.totalorder %v2720, 2
        %v2726 = vxor.u32 %v2709, 2147483648
        %v2727 = vsel %vm2725, %v2726, %v2717
        %v2728 = vsel %vm2721, %v2724, %v2727
        %v2729 = vsel %vm2718, nan, %v2728
        %v2730 = vand.u32 2147483647, %v388
        %vm2731 = vcmp.le.f32.partialorder %v2730, 0.7853982
        %vm2732 = vcmp.lt.s32.totalorder %v388, 0
        %v2733 = vand.u32 %v388, 2139095040
        %v2734 = vshrl.u32 %v2733, 23
        %v2735 = vsub.s32 %v2734, 127
        %v2736 = vand.u32 2147483647, %v388
        %v2737 = vand.u32 %v2736, 8388607
        %v2738 = vor.u32 %v2737, 8388608
        %v2739 = vsub.s32 0, %v2738
        %v2740 = vadd.s32 %v2735, 1
        %vm2741 = vcmp.gt.s32.totalorder %v2740, 0
        %v2742 = vsel %vm2741, %v2740, 0
        %v2743 = vshrl.u32 %v2742, 5
        %v2744 = vand.u32 %v2742, 31
        %v2745 = vsub.s32 32, %v2744
        %v2746 = vshrl.u32 683565275, %v2745
        %v2747 = vshll.u32 683565275, %v2744
        %v2748 = vshrl.u32 2475754826, %v2745
        %v2749 = vor.u32 %v2747, %v2748
        %v2750 = vshll.u32 2475754826, %v2744
        %v2751 = vshrl.u32 2131351028, %v2745
        %v2752 = vor.u32 %v2750, %v2751
        %v2753 = vshll.u32 2131351028, %v2744
        %v2754 = vshrl.u32 2102212464, %v2745
        %v2755 = vor.u32 %v2753, %v2754
        %v2756 = vshll.u32 2102212464, %v2744
        %v2757 = vshrl.u32 920167782, %v2745
        %v2758 = vor.u32 %v2756, %v2757
        %v2759 = vshll.u32 920167782, %v2744
        %v2760 = vshrl.u32 1326507024, %v2745
        %v2761 = vor.u32 %v2759, %v2760
        %vm2762 = vcmp.lt.s32.totalorder %v2743, 1
        %vm2763 = vcmp.lt.s32.totalorder %v2743, 2
        %vm2764 = vcmp.lt.s32.totalorder %v2743, 3
        %vm2765 = vcmp.lt.s32.totalorder %v2743, 4
        %v2766 = vsel %vm2762, %v2746, %v2749
        %v2767 = vsel %vm2765, %v2755, 2102212464
        %v2768 = vsel %vm2764, %v2752, %v2767
        %v2769 = vsel %vm2763, %v2766, %v2768
        %v2770 = vsel %vm2762, %v2749, %v2752
        %v2771 = vsel %vm2765, %v2758, 920167782
        %v2772 = vsel %vm2764, %v2755, %v2771
        %v2773 = vsel %vm2763, %v2770, %v2772
        %v2774 = vsel %vm2762, %v2752, %v2755
        %v2775 = vsel %vm2765, %v2761, 1326507024
        %v2776 = vsel %vm2764, %v2758, %v2775
        %v2777 = vsel %vm2763, %v2774, %v2776
        %v2778 = vshll.u32 %v2738, 8
        %v2779 = vand.u32 %v2778, 65535
        %v2780 = vshrl.u32 %v2778, 16
        %v2781 = vand.u32 %v2777, 65535
        %v2782 = vshrl.u32 %v2777, 16
        %v2783 = vmul.u32 %v2779, %v2781
        %v2784 = vmul.u32 %v2779, %v2782
        %v2785 = vmul.u32 %v2780, %v2781
        %v2786 = vmul.u32 %v2780, %v2782
        %v2787 = vshll.u32 %v2784, 16
        %v2788 = vshrl.u32 %v2784, 16
        %v2789 = vshll.u32 %v2785, 16
        %v2790 = vshrl.u32 %v2785, 16
        %vm2791 = vc.u32 %v2783, %v2787
        %v2792 = vsel %vm2791, 1, 0
        %v2793 = vadd.s32 %v2783, %v2787
        %v2794 = vadd.s32 %v2786, %v2792
        %vm2795 = vc.u32 %v2793, %v2789
        %v2796 = vsel %vm2795, 1, 0
        %v2797 = vadd.s32 %v2793, %v2789
        %v2798 = vadd.s32 %v2794, %v2796
        %v2799 = vadd.s32 %v2798, %v2788
        %v2800 = vadd.s32 %v2799, %v2790
        %v2801 = vand.u32 %v2778, 65535
        %v2802 = vshrl.u32 %v2778, 16
        %v2803 = vand.u32 %v2773, 65535
        %v2804 = vshrl.u32 %v2773, 16
        %v2805 = vmul.u32 %v2801, %v2803
        %v2806 = vmul.u32 %v2801, %v2804
        %v2807 = vmul.u32 %v2802, %v2803
        %v2808 = vmul.u32 %v2802, %v2804
        %v2809 = vshll.u32 %v2806, 16
        %v2810 = vshrl.u32 %v2806, 16
        %v2811 = vshll.u32 %v2807, 16
        %v2812 = vshrl.u32 %v2807, 16
        %vm2813 = vc.u32 %v2805, %v2809
        %v2814 = vsel %vm2813, 1, 0
        %v2815 = vadd.s32 %v2805, %v2809
        %v2816 = vadd.s32 %v2808, %v2814
        %vm2817 = vc.u32 %v2815, %v2811
        %v2818 = vsel %vm2817, 1, 0
        %v2819 = vadd.s32 %v2815, %v2811
        %v2820 = vadd.s32 %v2816, %v2818
        %v2821 = vadd.s32 %v2820, %v2810
        %v2822 = vadd.s32 %v2821, %v2812
        %v2823 = vmul.u32 %v2778, %v2769
        %v2824 = vadd.s32 %v2800, %v2819
        %vm2825 = vc.u32 %v2800, %v2819
        %v2826 = vadd.s32 %v2822, 1
        %v2827 = vsel %vm2825, %v2826, %v2822
        %v2828 = vadd.s32 %v2823, %v2827
        %v2829 = vadd.s32 %v2828, 536870912
        %v2830 = vshrl.u32 %v2829, 30
        %v2831 = vshll.u32 %v2830, 30
        %v2832 = vsub.s32 %v2828, %v2831
        %vm2833 = vcmp.lt.s32.totalorder %v2832, 0
        %v2834 = vsub.s32 0, %v2832
        %v2835 = vsel %vm2833, %v2834, %v2832
        %v2836 = vclz %v2835
        %v2837 = vsub.s32 %v2836, 2
        %vm2838 = vcmp.gt.s32.totalorder 0, %v2837
        %v2839 = vsel %vm2838, 0, %v2837
        %v2840 = vsub.s32 32, %v2839
        %v2841 = vshll.u32 %v2832, %v2839
        %v2842 = vshrl.u32 %v2824, %v2840
        %v2843 = vor.u32 %v2841, %v2842
        %v2844 = vsub.s32 4294967266, %v2839
        %v2845 = vadd.s32 %v2844, 127
        %v2846 = vshll.u32 %v2845, 23
        %v2847 = vor.u32 4788187, %v2846
        %v2848 = vand.u32 2147483647, %v2847
        %v2850 = vcvt.s32.f32 %v2843
        %v2851 = vmul.f32 %v2850, %v2848
        %v2852 = vxor.u32 %v2851, 2147483648
        %v2853 = vsel %vm2732, %v2852, %v2851
        %v2854 = vsub.s32 4, %v2830
        %v2855 = vsel %vm2732, %v2854, %v2830
        %v2856 = vsel %vm2731, %v388, %v2853
        %v2857 = vsel %vm2731, 0, %v2855
        %v2858 = vmul.f32 %v2856, %v2856
        %v2859 = vmul.f32 %v2858, -0.001358992
        %v2860 = vadd.f32 %v2859, 0.041655596
        %v2861 = vmul.f32 %v2858, %v2860
        %v2862 = vadd.f32 %v2861, -0.4999988
        %v2863 = vmul.f32 %v2858, %v2862
        %v2864 = vadd.f32 1.0, %v2863
        %v2865 = vmul.f32 %v2856, %v2856
        %v2866 = vmul.f32 %v2865, -0.00019511016
        %v2867 = vadd.f32 %v2866, 0.008332121
        %v2868 = vmul.f32 %v2865, %v2867
        %v2869 = vadd.f32 %v2868, -0.16666654
        %v2870 = vmul.f32 %v2865, %v2869
        %v2871 = vadd.f32 %v2870, 1.0
        %v2872 = vmul.f32 %v2871, %v2856
        %vm2873 = vweird.f32 %v388
        %v2874 = vadd.s32 %v2857, 3
        %v2875 = vand.u32 %v2874, 3
        %vm2876 = vcmp.lt.s32.totalorder %v2875, 2
        %vm2877 = vcmp.eq.s32.totalorder %v2875, 0
        %v2878 = vxor.u32 %v2872, 2147483648
        %v2879 = vsel %vm2877, %v2864, %v2878
        %vm2880 = vcmp.eq.s32.totalorder %v2875, 2
        %v2881 = vxor.u32 %v2864, 2147483648
        %v2882 = vsel %vm2880, %v2881, %v2872
        %v2883 = vsel %vm2876, %v2879, %v2882
        %v2884 = vsel %vm2873, nan, %v2883
        %v2885 = vsel %vm412, %v566, %v1799
        %v2886 = vsel %vm412, %v720, %v1954
        %v2887 = vsel %vm412, %v874, %v2109
        %v2888 = vsel %vm412, %v1028, %v2264
        %v2889 = vsel %vm412, %v1182, %v2419
        %v2890 = vsel %vm412, %v1336, %v2574
        %v2891 = vsel %vm412, %v1490, %v2729
        %v2892 = vsel %vm412, %v1644, %v2884
        %vm2893 = vcmp.eq.s32.totalorder %v411, 3
        %vm2894 = vmor %vm412, %vm2893
        %v2895 = vsel %vm2894, %v2885, %v402
        %v2896 = vsel %vm2894, %v2886, %v403
        %v2897 = vsel %vm2894, %v2887, %v404
        %v2898 = vsel %vm2894, %v2888, %v405
        %v2899 = vsel %vm2894, %v2889, %v406
        %v2900 = vsel %vm2894, %v2890, %v407
        %v2901 = vsel %vm2894, %v2891, %v408
        %v2902 = vsel %vm2894, %v2892, %v409
        %v2903 = vpack.c.bf16 %v2896, %v2895
        %v2904 = vpack.c.bf16 %v2898, %v2897
        %v2905 = vpack.c.bf16 %v2900, %v2899
        %v2906 = vpack.c.bf16 %v2902, %v2901
        %v2907 = vld [vmem:[%s2] sm:$0xf]
        %v2908 = vld [vmem:[%s3] sm:$0x1]
        %v2910 = vperm.slane %v2908, 0
        %vm2912 = vcmask 64512
        %v2914 = vsel %vm2912, %v2903, 0
        %v2917 = vsel %vm2912, %v2904, 0
        %v2920 = vsel %vm2912, %v2905, 0
        %v2923 = vsel %vm2912, %v2906, 0
        %vm2925 = vcmask 1043456
        %v2927 = vsel %vm2925, %v2907, 0
        %2929 = vmatpush.bf16.msra.mxu0 0
        %2930 = vmatpush.bf16.msra.mxu0 0
        %2931 = vmatpush.bf16.msra.mxu0 0
        %2932 = vmatpush.bf16.msra.mxu0 0
        %2933 = vmatpush.bf16.msra.mxu0 0
        %2934 = vmatpush.bf16.msra.mxu0 0
        %2935 = vmatpush.bf16.msra.mxu0 0
        %2936 = vmatpush.bf16.msra.mxu0 %v2927
        %2937 = vmatmul.bf16.gmra.mxu0 %v2914
        %v2938 = vpop.f32.mrf.mxu0
        %v2939 = vadd.f32 %v2910, %v2938
        %v2940 = vpop.f32.mrf.mxu0
        %v2941 = vadd.f32 %v2910, %v2940
        %2942 = vmatmul.bf16.gmra.mxu0 %v2917
        %v2943 = vpop.f32.mrf.mxu0
        %v2944 = vadd.f32 %v2910, %v2943
        %v2945 = vpop.f32.mrf.mxu0
        %v2946 = vadd.f32 %v2910, %v2945
        %2947 = vmatmul.bf16.gmra.mxu0 %v2920
        %v2948 = vpop.f32.mrf.mxu0
        %v2949 = vadd.f32 %v2910, %v2948
        %v2950 = vpop.f32.mrf.mxu0
        %v2951 = vadd.f32 %v2910, %v2950
        %2952 = vmatmul.bf16.gmra.mxu0 %v2923
        %v2953 = vpop.f32.mrf.mxu0
        %v2954 = vadd.f32 %v2910, %v2953
        %v2955 = vpop.f32.mrf.mxu0
        %v2956 = vadd.f32 %v2910, %v2955
        %2957 = vdwg.mxu0
        %v2958 = vmax.f32 %v2939, 0.0
        %v2959 = vmax.f32 %v2941, 0.0
        %v2960 = vmax.f32 %v2944, 0.0
        %v2961 = vmax.f32 %v2946, 0.0
        %v2962 = vmax.f32 %v2949, 0.0
        %v2963 = vmax.f32 %v2951, 0.0
        %v2964 = vmax.f32 %v2954, 0.0
        %v2965 = vmax.f32 %v2956, 0.0
        %v2966 = vpack.c.bf16 %v2959, %v2958
        %v2967 = vpack.c.bf16 %v2961, %v2960
        %v2968 = vpack.c.bf16 %v2963, %v2962
        %v2969 = vpack.c.bf16 %v2965, %v2964
        %v2970 = vld [vmem:[%s4] sm:$0xf]
        %v2971 = vld [vmem:[%s4 + $0x4] sm:$0xf]
        %v2972 = vld [vmem:[%s4 + $0x8] sm:$0xf]
        %v2973 = vld [vmem:[%s4 + $0xc] sm:$0xf]
        %v2974 = vld [vmem:[%s4 + $0x10] sm:$0xf]
        %v2975 = vld [vmem:[%s4 + $0x14] sm:$0xf]
        %v2976 = vld [vmem:[%s4 + $0x18] sm:$0xf]
        %v2977 = vld [vmem:[%s4 + $0x1c] sm:$0xf]
        %v2978 = vld [vmem:[%s4 + $0x20] sm:$0xf]
        %v2979 = vld [vmem:[%s4 + $0x24] sm:$0xf]
        %v2980 = vld [vmem:[%s4 + $0x28] sm:$0xf]
        %v2981 = vld [vmem:[%s4 + $0x2c] sm:$0xf]
        %v2982 = vld [vmem:[%s4 + $0x30] sm:$0xf]
        %v2983 = vld [vmem:[%s4 + $0x34] sm:$0xf]
        %v2984 = vld [vmem:[%s4 + $0x38] sm:$0xf]
        %v2985 = vld [vmem:[%s4 + $0x3c] sm:$0xf]
        %v2986 = vld [vmem:[%s5] sm:$0x1]
        %v2988 = vperm.slane %v2986, 0
        %v3006 = vunpack.c.l.b16 %v2970
        %v3007 = vunpack.c.l.b16 %v2971
        %v3008 = vunpack.c.l.b16 %v2972
        %v3009 = vunpack.c.l.b16 %v2973
        %v3010 = vunpack.c.l.b16 %v2974
        %v3011 = vunpack.c.l.b16 %v2975
        %v3012 = vunpack.c.l.b16 %v2976
        %v3013 = vunpack.c.l.b16 %v2977
        %v3014 = vunpack.c.l.b16 %v2978
        %v3015 = vunpack.c.l.b16 %v2979
        %v3016 = vunpack.c.l.b16 %v2980
        %v3017 = vunpack.c.l.b16 %v2981
        %v3018 = vunpack.c.l.b16 %v2982
        %v3019 = vunpack.c.l.b16 %v2983
        %v3020 = vunpack.c.l.b16 %v2984
        %v3021 = vunpack.c.l.b16 %v2985
        %v3022 = vpack.c.b16 %v3007, %v3006
        %v3023 = vpack.c.b16 %v3009, %v3008
        %v3024 = vpack.c.b16 %v3011, %v3010
        %v3025 = vpack.c.b16 %v3013, %v3012
        %v3026 = vpack.c.b16 %v3015, %v3014
        %v3027 = vpack.c.b16 %v3017, %v3016
        %v3028 = vpack.c.b16 %v3019, %v3018
        %v3029 = vpack.c.b16 %v3021, %v3020
        %3038 = vmatpush.bf16.msra.mxu0 %v3029
        %3039 = vmatpush.bf16.msra.mxu0 %v3028
        %3040 = vmatpush.bf16.msra.mxu0 %v3027
        %3041 = vmatpush.bf16.msra.mxu0 %v3026
        %3042 = vmatpush.bf16.msra.mxu0 %v3025
        %3043 = vmatpush.bf16.msra.mxu0 %v3024
        %3044 = vmatpush.bf16.msra.mxu0 %v3023
        %3045 = vmatpush.bf16.msra.mxu0 %v3022
        %3046 = vmatmul.bf16.gmra.mxu0 %v2966
        %v3047 = vpop.f32.mrf.mxu0
        %v3048 = vadd.f32 %v2988, %v3047
        %v3049 = vpop.f32.mrf.mxu0
        %v3050 = vadd.f32 %v2988, %v3049
        %3051 = vmatmul.bf16.gmra.mxu0 %v2967
        %v3052 = vpop.f32.mrf.mxu0
        %v3053 = vadd.f32 %v2988, %v3052
        %v3054 = vpop.f32.mrf.mxu0
        %v3055 = vadd.f32 %v2988, %v3054
        %3056 = vmatmul.bf16.gmra.mxu0 %v2968
        %v3057 = vpop.f32.mrf.mxu0
        %v3058 = vadd.f32 %v2988, %v3057
        %v3059 = vpop.f32.mrf.mxu0
        %v3060 = vadd.f32 %v2988, %v3059
        %3061 = vmatmul.bf16.gmra.mxu0 %v2969
        %v3062 = vpop.f32.mrf.mxu0
        %v3063 = vadd.f32 %v2988, %v3062
        %v3064 = vpop.f32.mrf.mxu0
        %v3065 = vadd.f32 %v2988, %v3064
        %3066 = vdwg.mxu0
        %v3067 = vmax.f32 %v3048, 0.0
        %v3068 = vmax.f32 %v3050, 0.0
        %v3069 = vmax.f32 %v3053, 0.0
        %v3070 = vmax.f32 %v3055, 0.0
        %v3071 = vmax.f32 %v3058, 0.0
        %v3072 = vmax.f32 %v3060, 0.0
        %v3073 = vmax.f32 %v3063, 0.0
        %v3074 = vmax.f32 %v3065, 0.0
        %v3075 = vpack.c.bf16 %v3068, %v3067
        %v3076 = vpack.c.bf16 %v3070, %v3069
        %v3077 = vpack.c.bf16 %v3072, %v3071
        %v3078 = vpack.c.bf16 %v3074, %v3073
        %v3079 = vld [vmem:[%s6] sm:$0xf]
        %v3080 = vld [vmem:[%s6 + $0x4] sm:$0xf]
        %v3081 = vld [vmem:[%s6 + $0x8] sm:$0xf]
        %v3082 = vld [vmem:[%s6 + $0xc] sm:$0xf]
        %v3083 = vld [vmem:[%s6 + $0x10] sm:$0xf]
        %v3084 = vld [vmem:[%s6 + $0x14] sm:$0xf]
        %v3085 = vld [vmem:[%s6 + $0x18] sm:$0xf]
        %v3086 = vld [vmem:[%s6 + $0x1c] sm:$0xf]
        %v3087 = vld [vmem:[%s6 + $0x20] sm:$0xf]
        %v3088 = vld [vmem:[%s6 + $0x24] sm:$0xf]
        %v3089 = vld [vmem:[%s6 + $0x28] sm:$0xf]
        %v3090 = vld [vmem:[%s6 + $0x2c] sm:$0xf]
        %v3091 = vld [vmem:[%s6 + $0x30] sm:$0xf]
        %v3092 = vld [vmem:[%s6 + $0x34] sm:$0xf]
        %v3093 = vld [vmem:[%s6 + $0x38] sm:$0xf]
        %v3094 = vld [vmem:[%s6 + $0x3c] sm:$0xf]
        %v3095 = vld [vmem:[%s7] sm:$0x1]
        %v3097 = vperm.slane %v3095, 0
        %v3115 = vunpack.c.l.b16 %v3079
        %v3116 = vunpack.c.l.b16 %v3080
        %v3117 = vunpack.c.l.b16 %v3081
        %v3118 = vunpack.c.l.b16 %v3082
        %v3119 = vunpack.c.l.b16 %v3083
        %v3120 = vunpack.c.l.b16 %v3084
        %v3121 = vunpack.c.l.b16 %v3085
        %v3122 = vunpack.c.l.b16 %v3086
        %v3123 = vunpack.c.l.b16 %v3087
        %v3124 = vunpack.c.l.b16 %v3088
        %v3125 = vunpack.c.l.b16 %v3089
        %v3126 = vunpack.c.l.b16 %v3090
        %v3127 = vunpack.c.l.b16 %v3091
        %v3128 = vunpack.c.l.b16 %v3092
        %v3129 = vunpack.c.l.b16 %v3093
        %v3130 = vunpack.c.l.b16 %v3094
        %v3131 = vpack.c.b16 %v3116, %v3115
        %v3132 = vpack.c.b16 %v3118, %v3117
        %v3133 = vpack.c.b16 %v3120, %v3119
        %v3134 = vpack.c.b16 %v3122, %v3121
        %v3135 = vpack.c.b16 %v3124, %v3123
        %v3136 = vpack.c.b16 %v3126, %v3125
        %v3137 = vpack.c.b16 %v3128, %v3127
        %v3138 = vpack.c.b16 %v3130, %v3129
        %3147 = vmatpush.bf16.msra.mxu0 %v3138
        %3148 = vmatpush.bf16.msra.mxu0 %v3137
        %3149 = vmatpush.bf16.msra.mxu0 %v3136
        %3150 = vmatpush.bf16.msra.mxu0 %v3135
        %3151 = vmatpush.bf16.msra.mxu0 %v3134
        %3152 = vmatpush.bf16.msra.mxu0 %v3133
        %3153 = vmatpush.bf16.msra.mxu0 %v3132
        %3154 = vmatpush.bf16.msra.mxu0 %v3131
        %3155 = vmatmul.bf16.gmra.mxu0 %v3075
        %v3156 = vpop.f32.mrf.mxu0
        %v3157 = vadd.f32 %v3097, %v3156
        %v3158 = vpop.f32.mrf.mxu0
        %v3159 = vadd.f32 %v3097, %v3158
        %3160 = vmatmul.bf16.gmra.mxu0 %v3076
        %v3161 = vpop.f32.mrf.mxu0
        %v3162 = vadd.f32 %v3097, %v3161
        %v3163 = vpop.f32.mrf.mxu0
        %v3164 = vadd.f32 %v3097, %v3163
        %3165 = vmatmul.bf16.gmra.mxu0 %v3077
        %v3166 = vpop.f32.mrf.mxu0
        %v3167 = vadd.f32 %v3097, %v3166
        %v3168 = vpop.f32.mrf.mxu0
        %v3169 = vadd.f32 %v3097, %v3168
        %3170 = vmatmul.bf16.gmra.mxu0 %v3078
        %v3171 = vpop.f32.mrf.mxu0
        %v3172 = vadd.f32 %v3097, %v3171
        %v3173 = vpop.f32.mrf.mxu0
        %v3174 = vadd.f32 %v3097, %v3173
        %3175 = vdwg.mxu0
        %v3176 = vmax.f32 %v3157, 0.0
        %v3177 = vmax.f32 %v3159, 0.0
        %v3178 = vmax.f32 %v3162, 0.0
        %v3179 = vmax.f32 %v3164, 0.0
        %v3180 = vmax.f32 %v3167, 0.0
        %v3181 = vmax.f32 %v3169, 0.0
        %v3182 = vmax.f32 %v3172, 0.0
        %v3183 = vmax.f32 %v3174, 0.0
        %v3184 = vpack.c.bf16 %v3177, %v3176
        %v3185 = vpack.c.bf16 %v3179, %v3178
        %v3186 = vpack.c.bf16 %v3181, %v3180
        %v3187 = vpack.c.bf16 %v3183, %v3182
        %v3188 = vld [vmem:[#allocation2] sm:$0xf]
        %v3189 = vld [vmem:[#allocation2 + $0x4] sm:$0xf]
        %v3190 = vld [vmem:[#allocation2 + $0x8] sm:$0xf]
        %v3191 = vld [vmem:[#allocation2 + $0xc] sm:$0xf]
        %v3192 = vld [vmem:[#allocation2 + $0x10] sm:$0xf]
        %v3193 = vld [vmem:[#allocation2 + $0x14] sm:$0xf]
        %v3194 = vld [vmem:[#allocation2 + $0x18] sm:$0xf]
        %v3195 = vld [vmem:[#allocation2 + $0x1c] sm:$0xf]
        %v3196 = vld [vmem:[#allocation2 + $0x20] sm:$0xf]
        %v3197 = vld [vmem:[#allocation2 + $0x24] sm:$0xf]
        %v3198 = vld [vmem:[#allocation2 + $0x28] sm:$0xf]
        %v3199 = vld [vmem:[#allocation2 + $0x2c] sm:$0xf]
        %v3200 = vld [vmem:[#allocation2 + $0x30] sm:$0xf]
        %v3201 = vld [vmem:[#allocation2 + $0x34] sm:$0xf]
        %v3202 = vld [vmem:[#allocation2 + $0x38] sm:$0xf]
        %v3203 = vld [vmem:[#allocation2 + $0x3c] sm:$0xf]
        %v3204 = vld [vmem:[%s9] sm:$0x1]
        %v3206 = vperm.slane %v3204, 0
        %v3224 = vunpack.c.l.b16 %v3188
        %v3225 = vunpack.c.l.b16 %v3189
        %v3226 = vunpack.c.l.b16 %v3190
        %v3227 = vunpack.c.l.b16 %v3191
        %v3228 = vunpack.c.l.b16 %v3192
        %v3229 = vunpack.c.l.b16 %v3193
        %v3230 = vunpack.c.l.b16 %v3194
        %v3231 = vunpack.c.l.b16 %v3195
        %v3232 = vunpack.c.l.b16 %v3196
        %v3233 = vunpack.c.l.b16 %v3197
        %v3234 = vunpack.c.l.b16 %v3198
        %v3235 = vunpack.c.l.b16 %v3199
        %v3236 = vunpack.c.l.b16 %v3200
        %v3237 = vunpack.c.l.b16 %v3201
        %v3238 = vunpack.c.l.b16 %v3202
        %v3239 = vunpack.c.l.b16 %v3203
        %v3240 = vpack.c.b16 %v3225, %v3224
        %v3241 = vpack.c.b16 %v3227, %v3226
        %v3242 = vpack.c.b16 %v3229, %v3228
        %v3243 = vpack.c.b16 %v3231, %v3230
        %v3244 = vpack.c.b16 %v3233, %v3232
        %v3245 = vpack.c.b16 %v3235, %v3234
        %v3246 = vpack.c.b16 %v3237, %v3236
        %v3247 = vpack.c.b16 %v3239, %v3238
        %3256 = vmatpush.bf16.msra.mxu0 %v3247
        %3257 = vmatpush.bf16.msra.mxu0 %v3246
        %3258 = vmatpush.bf16.msra.mxu0 %v3245
        %3259 = vmatpush.bf16.msra.mxu0 %v3244
        %3260 = vmatpush.bf16.msra.mxu0 %v3243
        %3261 = vmatpush.bf16.msra.mxu0 %v3242
        %3262 = vmatpush.bf16.msra.mxu0 %v3241
        %3263 = vmatpush.bf16.msra.mxu0 %v3240
        %3264 = vmatmul.bf16.gmra.mxu0 %v3184
        %v3265 = vpop.f32.mrf.mxu0
        %v3266 = vadd.f32 %v3206, %v3265
        %v3267 = vpop.f32.mrf.mxu0
        %v3268 = vadd.f32 %v3206, %v3267
        %3269 = vmatmul.bf16.gmra.mxu0 %v3185
        %v3270 = vpop.f32.mrf.mxu0
        %v3271 = vadd.f32 %v3206, %v3270
        %v3272 = vpop.f32.mrf.mxu0
        %v3273 = vadd.f32 %v3206, %v3272
        %3274 = vmatmul.bf16.gmra.mxu0 %v3186
        %v3275 = vpop.f32.mrf.mxu0
        %v3276 = vadd.f32 %v3206, %v3275
        %v3277 = vpop.f32.mrf.mxu0
        %v3278 = vadd.f32 %v3206, %v3277
        %3279 = vmatmul.bf16.gmra.mxu0 %v3187
        %v3280 = vpop.f32.mrf.mxu0
        %v3281 = vadd.f32 %v3206, %v3280
        %v3282 = vpop.f32.mrf.mxu0
        %v3283 = vadd.f32 %v3206, %v3282
        %3284 = vdwg.mxu0
        %v3285 = vperm.slane %v391, 0
        %v3286 = vmul.f32 %v3266, %v3285
        %v3287 = vmul.f32 %v3268, %v3285
        %v3288 = vmul.f32 %v3271, %v3285
        %v3289 = vmul.f32 %v3273, %v3285
        %v3290 = vmul.f32 %v3276, %v3285
        %v3291 = vmul.f32 %v3278, %v3285
        %v3292 = vmul.f32 %v3281, %v3285
        %v3293 = vmul.f32 %v3283, %v3285
        %v3294 = vadd.f32 %v381, %v3286
        %v3295 = vadd.f32 %v382, %v3287
        %v3296 = vadd.f32 %v383, %v3288
        %v3297 = vadd.f32 %v384, %v3289
        %v3298 = vadd.f32 %v385, %v3290
        %v3299 = vadd.f32 %v386, %v3291
        %v3300 = vadd.f32 %v387, %v3292
        %v3301 = vadd.f32 %v388, %v3293
        %v3302 = vadd.f32 %v3294, 3.1415927
        %v3303 = vadd.f32 %v3295, 3.1415927
        %v3304 = vadd.f32 %v3296, 3.1415927
        %v3305 = vadd.f32 %v3297, 3.1415927
        %v3306 = vadd.f32 %v3298, 3.1415927
        %v3307 = vadd.f32 %v3299, 3.1415927
        %v3308 = vadd.f32 %v3300, 3.1415927
        %v3309 = vadd.f32 %v3301, 3.1415927
        %v3310 = vrcp.pop 6.2831855
        %v3311 = vmul.f32 6.2831855, %v3310
        %v3312 = vsub.f32 1.0, %v3311
        %v3313 = vmul.f32 %v3310, %v3312
        %v3314 = vadd.f32 %v3310, %v3313
        %vm3315 = vweird.f32 %v3310
        %v3316 = vsel %vm3315, %v3310, %v3314
        %v3317 = vmul.f32 %v3302, %v3316
        %v3318 = vmul.f32 %v3303, %v3316
        %v3319 = vmul.f32 %v3304, %v3316
        %v3320 = vmul.f32 %v3305, %v3316
        %v3321 = vmul.f32 %v3306, %v3316
        %v3322 = vmul.f32 %v3307, %v3316
        %v3323 = vmul.f32 %v3308, %v3316
        %v3324 = vmul.f32 %v3309, %v3316
        %v3325 = vfloor.f32 %v3317
        %v3326 = vfloor.f32 %v3318
        %v3327 = vfloor.f32 %v3319
        %v3328 = vfloor.f32 %v3320
        %v3329 = vfloor.f32 %v3321
        %v3330 = vfloor.f32 %v3322
        %v3331 = vfloor.f32 %v3323
        %v3332 = vfloor.f32 %v3324
        %v3333 = vmul.f32 %v3325, 6.2831855
        %v3334 = vmul.f32 %v3326, 6.2831855
        %v3335 = vmul.f32 %v3327, 6.2831855
        %v3336 = vmul.f32 %v3328, 6.2831855
        %v3337 = vmul.f32 %v3329, 6.2831855
        %v3338 = vmul.f32 %v3330, 6.2831855
        %v3339 = vmul.f32 %v3331, 6.2831855
        %v3340 = vmul.f32 %v3332, 6.2831855
        %v3341 = vsub.f32 %v3294, %v3333
        %v3342 = vsub.f32 %v3295, %v3334
        %v3343 = vsub.f32 %v3296, %v3335
        %v3344 = vsub.f32 %v3297, %v3336
        %v3345 = vsub.f32 %v3298, %v3337
        %v3346 = vsub.f32 %v3299, %v3338
        %v3347 = vsub.f32 %v3300, %v3339
        %v3348 = vsub.f32 %v3301, %v3340
        %v3349 = vsel %vm412, %v3341, %v3294
        %v3350 = vsel %vm412, %v3342, %v3295
        %v3351 = vsel %vm412, %v3343, %v3296
        %v3352 = vsel %vm412, %v3344, %v3297
        %v3353 = vsel %vm412, %v3345, %v3298
        %v3354 = vsel %vm412, %v3346, %v3299
        %v3355 = vsel %vm412, %v3347, %v3300
        %v3356 = vsel %vm412, %v3348, %v3301
        %vm3357 = vcmask 23552
        %3358 = vst.msk [vmem:[%s378] sm:$0xff] %vm3357, %v3349
        %3359 = vst.msk [vmem:[%s378 + $0x8] sm:$0xff] %vm3357, %v3350
        %3360 = vst.msk [vmem:[%s378 + $0x10] sm:$0xff] %vm3357, %v3351
        %3361 = vst.msk [vmem:[%s378 + $0x18] sm:$0xff] %vm3357, %v3352
        %3362 = vst.msk [vmem:[%s378 + $0x20] sm:$0xff] %vm3357, %v3353
        %3363 = vst.msk [vmem:[%s378 + $0x28] sm:$0xff] %vm3357, %v3354
        %3364 = vst.msk [vmem:[%s378 + $0x30] sm:$0xff] %vm3357, %v3355
        %3365 = vst.msk [vmem:[%s378 + $0x38] sm:$0xff] %vm3357, %v3356
        %s3366 = smul.u32 8, %s22
        %p3367 = scmp.lt.s32.totalorder %s3366, 15
        %s3368 = scalar_select %p3367, %s3366, 15
        %s3369 = smul.addr %s3368, 8
        %s3370 = scalar_lea.vmem %s10, %s3369
        // Predicated region
        $region65: #{tpu_custom_call.1} parent=59 // pred_check
          %p3371 = pneg %p255
        $region66: #{tpu_custom_call.1} parent=59 // pred_check_branch
          %3373 = sbr.rel (%p3371) target = $region68
        $region67: #{tpu_custom_call.1} parent=59 // pred_region
          %s3374 = smul.u32 8, %s22
        $region68: #{tpu_custom_call.1} parent=59 // pred_fallthru
          _
      $region60: #{tpu_custom_call.1} parent=5 // pred_fallthru
        _
      %p3375 = scmp.le.s32.totalorder 2, %s17
      // Predicated region
      $region69: #{tpu_custom_call.1} parent=5 // pred_check
        %p3376 = pneg %p3375
      $region70: #{tpu_custom_call.1} parent=5 // pred_check_branch
        %3378 = sbr.rel (%p3376) target = $region72
      $region71: #{tpu_custom_call.1} parent=5 // pred_region
        %s3379 = ssub.s32 %s17, 2
        // Predicated region
        $region73: #{tpu_custom_call.1} parent=71 // pred_check
          %p3380 = pneg %p261
        $region74: #{tpu_custom_call.1} parent=71 // pred_check_branch
          %3382 = sbr.rel (%p3380) target = $region76
        $region75: #{tpu_custom_call.1} parent=71 // pred_region
          %s3383 = smul.u32 8, %s23
          %p3384 = scmp.lt.s32.totalorder %s3383, 15
          %s3385 = scalar_select %p3384, %s3383, 15
          %s3386 = smul.addr %s3385, 8
          %s3387 = scalar_lea.vmem %s10, %s3386
        $region76: #{tpu_custom_call.1} parent=71 // pred_fallthru
          _
      $region72: #{tpu_custom_call.1} parent=5 // pred_fallthru
        _
    $region6: #{tpu_custom_call.1} parent=1 // loop_footer
      %s21 = sadd.s32 1, %s17
    $region7: #{tpu_custom_call.1} parent=1 // loop_footer_branch
      %16 = sbr.rel target = $region3
    $region8: #{tpu_custom_call.1} parent=1 // loop_exit
      _
    %3388 = vsyncpa [#allocation3], 1
    %s3389 = scalar_lea.sflag [#allocation3], 1
    %3390 = vsyncpa %s3389, 1

</llo_original>
